<compile_context>
chip_gen: v5e
topology: v5e:2x2
jax: 0.10.0
libtpu: 0.0.40
codegen_flags: <defaults>
</compile_context>

<pallas_src>
import functools
import math

import numpy as np

import jax
import jax.numpy as jnp
from jax.experimental import pallas as pl
from jax.experimental.pallas import tpu as pltpu


def _channel_constants(num_pos_feats, temperature):
    """Per-output-channel constants over the 2F channel (lane) axis.

    channel c < F  -> y-feature d = c;   c >= F -> x-feature d = c - F
    dim_t[d] = T**(2*(d//2)/F); even d -> sin, odd d -> cos = sin(. + pi/2).
    """
    F = int(num_pos_feats)
    c = np.arange(2 * F)
    d = np.where(c < F, c, c - F)                      # feature index per half
    half = d // 2
    inv_dim_t = (float(temperature) ** (-2.0 * half / F)).astype(np.float32)
    phase = ((d % 2) * (math.pi / 2.0)).astype(np.float32)
    is_y = (c < F).astype(np.float32)
    return inv_dim_t, phase, is_y


def _pos_embed_kernel(*refs, normalize):
    # refs (normalize=True):
    #   tril (tile_h,H) bf16, nm_full (H,W) bf16, nm_tile (tile_h,W) bf16,
    #   triu (W,W) bf16, inv_dim_t (1,1,2F) f32, phase (1,1,2F) f32,
    #   is_y (1,1,2F) f32, y_norm (1,W) f32, x_norm (tile_h,1) f32,
    #   out (tile_h,W,2F) f32
    if normalize:
        (tril_ref, nm_full_ref, nm_tile_ref, triu_ref,
         invdt_ref, phase_ref, isy_ref, ynorm_ref, xnorm_ref, out_ref) = refs
    else:
        (tril_ref, nm_full_ref, nm_tile_ref, triu_ref,
         invdt_ref, phase_ref, isy_ref, out_ref) = refs

    # cumsum along H for this tile's rows (bf16 0/1 operands, f32 accumulate
    # -> exact integer counts):  y[r, w] = sum_{h' <= row0+r} nm[h', w]
    y_emb = jnp.dot(tril_ref[...], nm_full_ref[...],
                    preferred_element_type=jnp.float32)           # (tile_h, W)
    # cumsum along W for this tile's rows: x[r, w] = sum_{w' <= w} nm[r, w']
    x_emb = jnp.dot(nm_tile_ref[...], triu_ref[...],
                    preferred_element_type=jnp.float32)           # (tile_h, W)

    if normalize:
        # Reciprocal factors scale/(denom+eps) precomputed at trace time.
        y_emb = y_emb * ynorm_ref[...]                            # (1, W)
        x_emb = x_emb * xnorm_ref[...]                            # (tile_h, 1)

    shape = out_ref.shape                                         # (th, W, 2F)
    is_y = isy_ref[...] > 0.5                                     # (1, 1, 2F)
    y_b = jnp.broadcast_to(y_emb[:, :, None], shape)
    x_b = jnp.broadcast_to(x_emb[:, :, None], shape)
    emb = jnp.where(is_y, y_b, x_b)

    # cos(t) == sin(t + pi/2): one EUP transcendental stream over the whole
    # lane-dense slab, followed by a single full-width store.
    out_ref[...] = jnp.sin(emb * invdt_ref[...] + phase_ref[...])


def _pick_tile_h(H, W, C, budget_bytes=4 << 20, prefer_tiles=2):
    """8-aligned row-tile height (or tile_h == H).

    Keeps the (tile_h, W, C) f32 output block under `budget_bytes` so that
    2x double-buffered output blocks + the elementwise temps + the small
    resident inputs stay well under v7x's 64 MiB VMEM, and prefers
    >= `prefer_tiles` grid steps when H >= 16 so both v7x TensorCores get
    work on the "parallel" grid axis (neutral on single-TC v5e/v6e).
    """
    row_bytes = max(1, W * C * 4)
    if H <= 8 or (H < 16 and H * row_bytes <= budget_bytes):
        return H                               # single full-height tile
    max_rows = max(8, (budget_bytes // row_bytes) // 8 * 8)
    target = max(8, (pl.cdiv(H, prefer_tiles) // 8) * 8) if H >= 16 else 8
    return min(target, max_rows)


def _position_embedding_slab(not_mask_hw, num_pos_feats, temperature,
                             normalize, scale):
    """Pallas call: (H, W) not_mask -> (H, W, 2*num_pos_feats) embedding."""
    H, W = int(not_mask_hw.shape[0]), int(not_mask_hw.shape[1])
    F = int(num_pos_feats)
    C = 2 * F
    tile_h = _pick_tile_h(H, W, C)
    grid = (pl.cdiv(H, tile_h),)

    nm_f32 = not_mask_hw.astype(jnp.float32)
    nm_bf16 = nm_f32.astype(jnp.bfloat16)          # 0/1 values -> exact

    # Grid-invariant constants built once at trace time (hoisted out of the
    # per-step kernel body) and fed as small resident / row-tiled inputs.
    rh = np.arange(H)
    tril = jnp.asarray(rh[None, :] <= rh[:, None], dtype=jnp.bfloat16)  # (H,H)
    rw = np.arange(W)
    triu = jnp.asarray(rw[:, None] <= rw[None, :], dtype=jnp.bfloat16)  # (W,W)

    inv_dim_t, phase, is_y = _channel_constants(F, temperature)
    invdt_j = jnp.asarray(inv_dim_t).reshape(1, 1, C)
    phase_j = jnp.asarray(phase).reshape(1, 1, C)
    isy_j = jnp.asarray(is_y).reshape(1, 1, C)

    in_arrays = [tril, nm_bf16, nm_bf16, triu, invdt_j, phase_j, isy_j]
    in_specs = [
        pl.BlockSpec((tile_h, H), lambda i: (i, 0)),     # tril rows of tile
        pl.BlockSpec((H, W), lambda i: (0, 0)),          # resident full nm
        pl.BlockSpec((tile_h, W), lambda i: (i, 0)),     # row-tiled nm
        pl.BlockSpec((W, W), lambda i: (0, 0)),          # resident triu
        pl.BlockSpec((1, 1, C), lambda i: (0, 0, 0)),
        pl.BlockSpec((1, 1, C), lambda i: (0, 0, 0)),
        pl.BlockSpec((1, 1, C), lambda i: (0, 0, 0)),
    ]
    if normalize:
        eps = 1e-6
        # denominators: y_embed[-1,:] = column totals, x_embed[:,-1] = row
        # totals -- computed once in the wrapper, passed as reciprocals.
        y_norm = scale / (jnp.sum(nm_f32, axis=0, keepdims=True) + eps)  # (1,W)
        x_norm = scale / (jnp.sum(nm_f32, axis=1, keepdims=True) + eps)  # (H,1)
        in_arrays += [y_norm, x_norm]
        in_specs += [pl.BlockSpec((1, W), lambda i: (0, 0)),
                     pl.BlockSpec((tile_h, 1), lambda i: (i, 0))]

    kernel = functools.partial(_pos_embed_kernel, normalize=bool(normalize))

    return pl.pallas_call(
        kernel,
        out_shape=jax.ShapeDtypeStruct((H, W, C), jnp.float32),
        grid=grid,
        in_specs=in_specs,
        out_specs=pl.BlockSpec((tile_h, W, C), lambda i: (i, 0, 0)),
        compiler_params=pltpu.CompilerParams(
            dimension_semantics=("parallel",),
            # ~4 MiB out block x2 buffers + f32 elementwise temps + resident
            # masks stays well below this on all of v5e/v6e/v7x.
            vmem_limit_bytes=40 * 1024 * 1024),
    )(*in_arrays)


def position_embedding_sine(x, num_pos_feats=128, temperature=1000,
                            normalize=False, scale=None,
                            use_fast_constant_path=True):
    """Pallas implementation of PositionEmbeddingSine.forward.

    Returns (B, 2*num_pos_feats, H, W) where (B, H, W) = x.shape[:3],
    matching `pos = cat(pos_y, pos_x, dim=3).permute(0, 3, 1, 2)`.
    """
    if scale is not None and normalize is False:
        raise ValueError('normalize should be True if scale is passed')
    if scale is None:
        scale = 2 * math.pi

    B, H, W = int(x.shape[0]), int(x.shape[1]), int(x.shape[2])
    F = int(num_pos_feats)
    C = 2 * F

    if use_fast_constant_path:
        # The module builds mask = ones(B,H,W) -> not_mask == 0 everywhere,
        # so both cumsum embeddings are identically 0 (also after normalize:
        # 0/(0+eps)*scale == 0) and every output element is
        # sin(0*inv_dim_t + phase) = sin(phase): 0 for even feature index,
        # 1 for odd.  No kernel / MXU / EUP work and no HBM transpose needed.
        _, phase, _ = _channel_constants(F, temperature)
        chan = jnp.sin(jnp.asarray(phase))                          # (2F,)
        return jnp.broadcast_to(chan[None, :, None, None], (B, C, H, W))

    # General Pallas path (also used for real masks via the slab helper).
    # The slab only depends on (H, W); compute once and broadcast over B.
    not_mask_hw = jnp.zeros((H, W), dtype=jnp.float32)
    slab = _position_embedding_slab(not_mask_hw, F, temperature,
                                    normalize, scale)               # (H,W,2F)
    # TODO(synk): for W >= 128 a channel-first in-kernel store variant would
    # remove this (tiny, B-collapsed) transpose; below 128 lanes it would
    # force masked sub-width stores, so channels-last + transpose is kept.
    pos = jnp.transpose(slab, (2, 0, 1))                            # (2F,H,W)
    return jnp.broadcast_to(pos[None], (B, C, H, W))


def _reference_jax(not_mask, num_pos_feats, temperature, normalize, scale):
    """Plain-JAX transliteration of the PyTorch forward (ground truth),
    parameterized by an explicit not_mask of shape (B, H, W)."""
    B, H, W = not_mask.shape
    y_embed = jnp.cumsum(not_mask, axis=1)
    x_embed = jnp.cumsum(not_mask, axis=2)
    if normalize:
        eps = 1e-6
        y_embed = y_embed / (y_embed[:, -1:, :] + eps) * scale
        x_embed = x_embed / (x_embed[:, :, -1:] + eps) * scale
    dim_t = jnp.arange(num_pos_feats, dtype=jnp.float32)
    dim_t = temperature ** (2 * jnp.floor(dim_t / 2) / num_pos_feats)
    pos_x = x_embed[:, :, :, None] / dim_t
    pos_y = y_embed[:, :, :, None] / dim_t
    pos_x = jnp.stack((jnp.sin(pos_x[..., 0::2]), jnp.cos(pos_x[..., 1::2])),
                      axis=4).reshape(B, H, W, -1)
    pos_y = jnp.stack((jnp.sin(pos_y[..., 0::2]), jnp.cos(pos_y[..., 1::2])),
                      axis=4).reshape(B, H, W, -1)
    return jnp.concatenate((pos_y, pos_x), axis=3).transpose(0, 3, 1, 2)


if __name__ == "__main__":
    # Small shapes: B=2, H=W=16, C=4 (the module only reads x.shape[0:3]).
    key = jax.random.PRNGKey(0)
    x = jax.random.normal(key, (2, 16, 16, 4), dtype=jnp.float32)

    num_pos_feats = 64   # -> 128 output channels (lane-dense)
    temperature = 1000

    # --- Module path, fast constant route (default) ------------------------
    out_fast = position_embedding_sine(x, num_pos_feats=num_pos_feats,
                                       temperature=temperature,
                                       normalize=False)
    out_fast = jax.block_until_ready(out_fast)

    # --- Module path forced through the Pallas kernel (zero not_mask) ------
    out_kernel = position_embedding_sine(x, num_pos_feats=num_pos_feats,
                                         temperature=temperature,
                                         normalize=False,
                                         use_fast_constant_path=False)
    out_kernel = jax.block_until_ready(out_kernel)

    zeros_mask = jnp.zeros((2, 16, 16), dtype=jnp.float32)  # ~ones(...).bool()
    ref = _reference_jax(zeros_mask, num_pos_feats, temperature,
                         normalize=False, scale=2 * math.pi)

    assert out_fast.shape == (2, 2 * num_pos_feats, 16, 16), out_fast.shape
    assert out_fast.dtype == jnp.float32
    assert jnp.allclose(out_fast, ref, atol=1e-5, rtol=1e-5), \
        "fast constant path does not match reference"
    assert jnp.allclose(out_kernel, ref, atol=1e-5, rtol=1e-5), \
        "Pallas output does not match reference (module path)"

    # --- General-path check: nonzero not_mask + normalize=True -------------
    # Validates cumsum orientation, normalize denominators and the even/odd
    # sin/cos interleave (these are degenerate under the all-zero mask).
    hh = jnp.arange(16)[:, None]
    ww = jnp.arange(16)[None, :]
    nm_hw = ((hh < 14) & (ww < 12)).astype(jnp.float32)      # ragged valid box
    slab = _position_embedding_slab(nm_hw, num_pos_feats, temperature,
                                    True, 2 * math.pi)        # (H, W, 2F)
    slab = jax.block_until_ready(slab)
    got2 = jnp.transpose(slab, (2, 0, 1))[None]               # (1, 2F, H, W)
    ref2 = _reference_jax(nm_hw[None], num_pos_feats, temperature,
                          normalize=True, scale=2 * math.pi)
    assert jnp.allclose(got2, ref2, atol=1e-5, rtol=1e-5), \
        "Pallas output does not match reference (general not_mask path)"

    print("KERNEL_OK")
</pallas_src>

<mosaic_0001>
module attributes {stable_mosaic.version = 11 : i64} {
  func.func @_pos_embed_kernel(%arg0: i32, %arg1: memref<8x16xbf16, #tpu.memory_space<vmem>>, %arg2: memref<16x16xbf16, #tpu.memory_space<vmem>>, %arg3: memref<8x16xbf16, #tpu.memory_space<vmem>>, %arg4: memref<16x16xbf16, #tpu.memory_space<vmem>>, %arg5: memref<1x1x128xf32, #tpu.memory_space<vmem>>, %arg6: memref<1x1x128xf32, #tpu.memory_space<vmem>>, %arg7: memref<1x1x128xf32, #tpu.memory_space<vmem>>, %arg8: memref<8x16x128xf32, #tpu.memory_space<vmem>>) attributes {dimension_semantics = [#tpu.dimension_semantics<parallel>], iteration_bounds = array<i64: 2>, scalar_prefetch = 0 : i64, scratch_operands = 0 : i64, tpu.core_type = #tpu.core_type<tc>, window_params = [{transform_indices = @transform_0, window_bounds = array<i64: 8, 16>}, {pipeline_mode = #tpu.pipeline_mode<synchronous>, transform_indices = @transform_1, window_bounds = array<i64: 16, 16>}, {transform_indices = @transform_2, window_bounds = array<i64: 8, 16>}, {pipeline_mode = #tpu.pipeline_mode<synchronous>, transform_indices = @transform_3, window_bounds = array<i64: 16, 16>}, {pipeline_mode = #tpu.pipeline_mode<synchronous>, transform_indices = @transform_4, window_bounds = array<i64: 1, 1, 128>}, {pipeline_mode = #tpu.pipeline_mode<synchronous>, transform_indices = @transform_5, window_bounds = array<i64: 1, 1, 128>}, {pipeline_mode = #tpu.pipeline_mode<synchronous>, transform_indices = @transform_6, window_bounds = array<i64: 1, 1, 128>}, {transform_indices = @transform_7, window_bounds = array<i64: 8, 16, 128>}]} {
    %c0 = arith.constant 0 : index
    %c0_0 = arith.constant 0 : index
    %0 = vector.load %arg1[%c0, %c0_0] : memref<8x16xbf16, #tpu.memory_space<vmem>>, vector<8x16xbf16>
    %c0_1 = arith.constant 0 : index
    %c0_2 = arith.constant 0 : index
    %1 = vector.load %arg2[%c0_1, %c0_2] : memref<16x16xbf16, #tpu.memory_space<vmem>>, vector<16x16xbf16>
    %cst = arith.constant dense<0.000000e+00> : vector<8x16xf32>
    %2 = tpu.matmul %0, %1, %cst {dimension_numbers = #tpu.dot_dimension_numbers<[1], [0], [0], [1], [0, 0, 1, 1], [], []>} : vector<8x16xbf16>, vector<16x16xbf16>, vector<8x16xf32> -> vector<8x16xf32>
    %c0_3 = arith.constant 0 : index
    %c0_4 = arith.constant 0 : index
    %3 = vector.load %arg3[%c0_3, %c0_4] : memref<8x16xbf16, #tpu.memory_space<vmem>>, vector<8x16xbf16>
    %c0_5 = arith.constant 0 : index
    %c0_6 = arith.constant 0 : index
    %4 = vector.load %arg4[%c0_5, %c0_6] : memref<16x16xbf16, #tpu.memory_space<vmem>>, vector<16x16xbf16>
    %cst_7 = arith.constant dense<0.000000e+00> : vector<8x16xf32>
    %5 = tpu.matmul %3, %4, %cst_7 {dimension_numbers = #tpu.dot_dimension_numbers<[1], [0], [0], [1], [0, 0, 1, 1], [], []>} : vector<8x16xbf16>, vector<16x16xbf16>, vector<8x16xf32> -> vector<8x16xf32>
    %c0_8 = arith.constant 0 : index
    %c0_9 = arith.constant 0 : index
    %c0_10 = arith.constant 0 : index
    %6 = vector.load %arg7[%c0_8, %c0_9, %c0_10] : memref<1x1x128xf32, #tpu.memory_space<vmem>>, vector<1x1x128xf32>
    %cst_11 = arith.constant 5.000000e-01 : f32
    %7 = vector.broadcast %cst_11 : f32 to vector<1x1x128xf32>
    %8 = arith.cmpf ogt, %6, %7 : vector<1x1x128xf32>
    %9 = vector.shape_cast %2 : vector<8x16xf32> to vector<8x16x1xf32>
    %10 = vector.shape_cast %9 : vector<8x16x1xf32> to vector<8x16x1xf32>
    %11 = vector.broadcast %10 : vector<8x16x1xf32> to vector<8x16x128xf32>
    %12 = vector.shape_cast %5 : vector<8x16xf32> to vector<8x16x1xf32>
    %13 = vector.shape_cast %12 : vector<8x16x1xf32> to vector<8x16x1xf32>
    %14 = vector.broadcast %13 : vector<8x16x1xf32> to vector<8x16x128xf32>
    %15 = vector.shape_cast %8 : vector<1x1x128xi1> to vector<1x1x128xi1>
    %16 = vector.broadcast %15 : vector<1x1x128xi1> to vector<8x16x128xi1>
    %17 = arith.select %16, %11, %14 : vector<8x16x128xi1>, vector<8x16x128xf32>
    %c0_12 = arith.constant 0 : index
    %c0_13 = arith.constant 0 : index
    %c0_14 = arith.constant 0 : index
    %18 = vector.load %arg5[%c0_12, %c0_13, %c0_14] : memref<1x1x128xf32, #tpu.memory_space<vmem>>, vector<1x1x128xf32>
    %19 = vector.broadcast %18 : vector<1x1x128xf32> to vector<8x16x128xf32>
    %20 = arith.mulf %17, %19 : vector<8x16x128xf32>
    %c0_15 = arith.constant 0 : index
    %c0_16 = arith.constant 0 : index
    %c0_17 = arith.constant 0 : index
    %21 = vector.load %arg6[%c0_15, %c0_16, %c0_17] : memref<1x1x128xf32, #tpu.memory_space<vmem>>, vector<1x1x128xf32>
    %22 = vector.broadcast %21 : vector<1x1x128xf32> to vector<8x16x128xf32>
    %23 = arith.addf %20, %22 : vector<8x16x128xf32>
    %24 = math.sin %23 : vector<8x16x128xf32>
    %c0_18 = arith.constant 0 : index
    %c0_19 = arith.constant 0 : index
    %c0_20 = arith.constant 0 : index
    %25 = vector.load %arg8[%c0_18, %c0_19, %c0_20] : memref<8x16x128xf32, #tpu.memory_space<vmem>>, vector<8x16x128xf32>
    tpu.vector_store %arg8[%c0_18, %c0_19, %c0_20], %24 {strides = array<i32>} : memref<8x16x128xf32, #tpu.memory_space<vmem>>, vector<8x16x128xf32>,
    return
  }
  func.func @transform_0(%arg0: i32) -> (i32, i32) {
    %c0_i32 = arith.constant 0 : i32
    %c0_i32_0 = arith.constant 0 : i32
    return %arg0, %c0_i32 : i32, i32
  }
  func.func @transform_1(%arg0: i32) -> (i32, i32) {
    %c0_i32 = arith.constant 0 : i32
    %c0_i32_0 = arith.constant 0 : i32
    %c0_i32_1 = arith.constant 0 : i32
    return %c0_i32, %c0_i32_0 : i32, i32
  }
  func.func @transform_2(%arg0: i32) -> (i32, i32) {
    %c0_i32 = arith.constant 0 : i32
    %c0_i32_0 = arith.constant 0 : i32
    return %arg0, %c0_i32 : i32, i32
  }
  func.func @transform_3(%arg0: i32) -> (i32, i32) {
    %c0_i32 = arith.constant 0 : i32
    %c0_i32_0 = arith.constant 0 : i32
    %c0_i32_1 = arith.constant 0 : i32
    return %c0_i32, %c0_i32_0 : i32, i32
  }
  func.func @transform_4(%arg0: i32) -> (i32, i32, i32) {
    %c0_i32 = arith.constant 0 : i32
    %c0_i32_0 = arith.constant 0 : i32
    %c0_i32_1 = arith.constant 0 : i32
    %c0_i32_2 = arith.constant 0 : i32
    return %c0_i32, %c0_i32_0, %c0_i32_1 : i32, i32, i32
  }
  func.func @transform_5(%arg0: i32) -> (i32, i32, i32) {
    %c0_i32 = arith.constant 0 : i32
    %c0_i32_0 = arith.constant 0 : i32
    %c0_i32_1 = arith.constant 0 : i32
    %c0_i32_2 = arith.constant 0 : i32
    return %c0_i32, %c0_i32_0, %c0_i32_1 : i32, i32, i32
  }
  func.func @transform_6(%arg0: i32) -> (i32, i32, i32) {
    %c0_i32 = arith.constant 0 : i32
    %c0_i32_0 = arith.constant 0 : i32
    %c0_i32_1 = arith.constant 0 : i32
    %c0_i32_2 = arith.constant 0 : i32
    return %c0_i32, %c0_i32_0, %c0_i32_1 : i32, i32, i32
  }
  func.func @transform_7(%arg0: i32) -> (i32, i32, i32) {
    %c0_i32 = arith.constant 0 : i32
    %c0_i32_0 = arith.constant 0 : i32
    %c0_i32_1 = arith.constant 0 : i32
    return %arg0, %c0_i32, %c0_i32_0 : i32, i32, i32
  }
}

</mosaic_0001>

<llo_original>
// kernel: tpu_custom_call.1
$region0: #{tpu_custom_call.1}
  #allocation0 [shape = 'u32[]', space=smem, size = 0x4, offset = 0x4, fixed_abs, tag = 'smem constant byte address 0x4 - core index']
  #allocation1 [shape = 'u32[72,128]{1,0:T(1,128)}', space=vmem, size = 0x9000, scoped, tag = 'internal scratch']
  %s0 = inlined_call_operand.hbm [shape: bf16[16,16], index: 0, kind: input, shape index: {}]
  %s1 = inlined_call_operand.hbm [shape: bf16[16,16], index: 1, kind: input, shape index: {}]
  %s2 = inlined_call_operand.hbm [shape: bf16[16,16], index: 2, kind: input, shape index: {}]
  %s3 = inlined_call_operand.hbm [shape: bf16[16,16], index: 3, kind: input, shape index: {}]
  %s4 = inlined_call_operand.vmem [shape: f32[1,1,128], index: 4, kind: input, shape index: {}]
  %s5 = inlined_call_operand.vmem [shape: f32[1,1,128], index: 5, kind: input, shape index: {}]
  %s6 = inlined_call_operand.vmem [shape: f32[1,1,128], index: 6, kind: input, shape index: {}]
  %s7 = inlined_call_operand.hbm [shape: f32[16,16,128], index: 7, kind: output, shape index: {}]
  %s8 = sld [smem:[#allocation0]]
  $region77: #{tpu_custom_call.1} parent=0
    _
  %s10 = ssub.s32 1, %s8
  %s11 = scalar_select 0, %s10, %s8
  $region1: #{tpu_custom_call.1} parent=0
    #allocation2 [shape = 'u8[4096]{0}', space=vmem, size = 0x1000, scoped, tag = 'input window, operand 0']
    #allocation3 [shape = 's32[2]{0}', space=sflag, size = 0x8, scoped, tag = 'scoped memory for tpu_custom_call.1']
    #allocation4 [shape = 's32[2]{0}', space=sflag, size = 0x8, scoped, tag = 'scoped memory for tpu_custom_call.1']
    #allocation5 [shape = 'u8[4096]{0}', space=vmem, size = 0x1000, scoped, tag = 'input window, operand 1, single buffered']
    #allocation6 [shape = 's32[1]{0}', space=sflag, size = 0x4, scoped, tag = 'scoped memory for tpu_custom_call.1']
    #allocation7 [shape = 'u8[4096]{0}', space=vmem, size = 0x1000, scoped, tag = 'input window, operand 2']
    #allocation8 [shape = 'u8[4096]{0}', space=vmem, size = 0x1000, scoped, tag = 'input window, operand 3, single buffered']
    #allocation9 [shape = 'u8[131072]{0}', space=vmem, size = 0x20000, scoped, tag = 'output window, operand 0']
    %12 = vsyncpa [#allocation3], 0
    %s13 = scalar_lea.sflag [#allocation3], 1
    %14 = vsyncpa %s13, 0
    %15 = vsyncpa [#allocation6], 0
    %16 = vsyncpa [#allocation4], 0
    %s17 = scalar_lea.sflag [#allocation4], 1
    %18 = vsyncpa %s17, 0
    loop: start=0, step=1, limit=4
    $region2: #{tpu_custom_call.1} parent=1 // loop_pre_header
      _
    $region3: #{tpu_custom_call.1} parent=1 // loop_header
      %s20 = sphi 0, %s24
      %p21 = scmp.ge.s32.totalorder %s20, 4
      %s30 = sphi 0, %s32
      %s33 = sphi 0, %s30
      %s34 = sphi 0, %s33
      %s50 = sphi 0, %s34
      %s54 = sphi 0, %s54
      %s56 = sphi 0, %s54
      %s57 = sphi 0, %s56
      %s71 = sphi 0, %s57
      %s77 = sphi 0, %s79
      %s80 = sphi 0, %s77
      %s81 = sphi 0, %s80
      %s97 = sphi 0, %s81
      %s101 = sphi 0, %s101
      %s103 = sphi 0, %s101
      %s104 = sphi 0, %s103
      %s118 = sphi 0, %s104
      %s122 = sphi 0, %s122
      %s124 = sphi 0, %s122
      %s125 = sphi 0, %s124
      %s139 = sphi 0, %s125
      %s143 = sphi 0, %s143
      %s145 = sphi 0, %s143
      %s146 = sphi 0, %s145
      %s160 = sphi 0, %s146
      %s164 = sphi 0, %s164
      %s166 = sphi 0, %s164
      %s167 = sphi 0, %s166
      %s181 = sphi 0, %s167
      %s187 = sphi 0, %s189
      %s190 = sphi 0, %s187
      %s191 = sphi 0, %s190
      %s207 = sphi 0, %s191
    $region4: #{tpu_custom_call.1} parent=1 // loop_header_branch
      %23 = sbr.rel (%p21) target = $region8
    $region5: #{tpu_custom_call.1} parent=1 // loop_body
      %s25 = ssub.s32 %s20, 1
      %s26 = ssub.s32 %s20, 2
      %s27 = sadd.s32 %s20, 1
      %s28 = ssub.s32 %s20, %s27
      %p29 = scmp.eq.s32.totalorder %s28, 0
      %s31 = sadd.s32 %s30, 1
      %s32 = scalar_select %p29, %s30, %s31
      %p35 = pneg %p29
      %p36 = scmp.eq.s32.totalorder %s20, 1
      %p37 = por %p35, %p36
      %p38 = scmp.ne.s32.totalorder %s30, %s33
      %p39 = scmp.eq.s32.totalorder %s20, 0
      %p40 = por %p38, %p39
      %p41 = scmp.ne.s32.totalorder %s30, %s33
      %p42 = scmp.eq.s32.totalorder %s25, 1
      %p43 = por %p41, %p42
      %p44 = scmp.ne.s32.totalorder %s33, %s34
      %p45 = scmp.eq.s32.totalorder %s25, 0
      %p46 = por %p44, %p45
      %p47 = scmp.ne.s32.totalorder %s33, %s34
      %p48 = scmp.eq.s32.totalorder %s26, 1
      %p49 = por %p47, %p48
      %p51 = scmp.ne.s32.totalorder %s34, %s50
      %p52 = scmp.eq.s32.totalorder %s26, 0
      %p53 = por %p51, %p52
      %s55 = sadd.s32 %s54, 1
      %p58 = scmp.eq.s32.totalorder %s20, 1
      %p59 = scmp.ne.s32.totalorder %s54, %s56
      %p60 = scmp.eq.s32.totalorder %s20, 0
      %p61 = por %p59, %p60
      %p62 = scmp.ne.s32.totalorder %s54, %s56
      %p63 = scmp.eq.s32.totalorder %s25, 1
      %p64 = por %p62, %p63
      %p65 = scmp.ne.s32.totalorder %s56, %s57
      %p66 = scmp.eq.s32.totalorder %s25, 0
      %p67 = por %p65, %p66
      %p68 = scmp.ne.s32.totalorder %s56, %s57
      %p69 = scmp.eq.s32.totalorder %s26, 1
      %p70 = por %p68, %p69
      %p72 = scmp.ne.s32.totalorder %s57, %s71
      %p73 = scmp.eq.s32.totalorder %s26, 0
      %p74 = por %p72, %p73
      %s75 = ssub.s32 %s20, %s27
      %p76 = scmp.eq.s32.totalorder %s75, 0
      %s78 = sadd.s32 %s77, 1
      %s79 = scalar_select %p76, %s77, %s78
      %p82 = pneg %p76
      %p83 = scmp.eq.s32.totalorder %s20, 1
      %p84 = por %p82, %p83
      %p85 = scmp.ne.s32.totalorder %s77, %s80
      %p86 = scmp.eq.s32.totalorder %s20, 0
      %p87 = por %p85, %p86
      %p88 = scmp.ne.s32.totalorder %s77, %s80
      %p89 = scmp.eq.s32.totalorder %s25, 1
      %p90 = por %p88, %p89
      %p91 = scmp.ne.s32.totalorder %s80, %s81
      %p92 = scmp.eq.s32.totalorder %s25, 0
      %p93 = por %p91, %p92
      %p94 = scmp.ne.s32.totalorder %s80, %s81
      %p95 = scmp.eq.s32.totalorder %s26, 1
      %p96 = por %p94, %p95
      %p98 = scmp.ne.s32.totalorder %s81, %s97
      %p99 = scmp.eq.s32.totalorder %s26, 0
      %p100 = por %p98, %p99
      %s102 = sadd.s32 %s101, 1
      %p105 = scmp.eq.s32.totalorder %s20, 1
      %p106 = scmp.ne.s32.totalorder %s101, %s103
      %p107 = scmp.eq.s32.totalorder %s20, 0
      %p108 = por %p106, %p107
      %p109 = scmp.ne.s32.totalorder %s101, %s103
      %p110 = scmp.eq.s32.totalorder %s25, 1
      %p111 = por %p109, %p110
      %p112 = scmp.ne.s32.totalorder %s103, %s104
      %p113 = scmp.eq.s32.totalorder %s25, 0
      %p114 = por %p112, %p113
      %p115 = scmp.ne.s32.totalorder %s103, %s104
      %p116 = scmp.eq.s32.totalorder %s26, 1
      %p117 = por %p115, %p116
      %p119 = scmp.ne.s32.totalorder %s104, %s118
      %p120 = scmp.eq.s32.totalorder %s26, 0
      %p121 = por %p119, %p120
      %s123 = sadd.s32 %s122, 1
      %p126 = scmp.eq.s32.totalorder %s20, 1
      %p127 = scmp.ne.s32.totalorder %s122, %s124
      %p128 = scmp.eq.s32.totalorder %s20, 0
      %p129 = por %p127, %p128
      %p130 = scmp.ne.s32.totalorder %s122, %s124
      %p131 = scmp.eq.s32.totalorder %s25, 1
      %p132 = por %p130, %p131
      %p133 = scmp.ne.s32.totalorder %s124, %s125
      %p134 = scmp.eq.s32.totalorder %s25, 0
      %p135 = por %p133, %p134
      %p136 = scmp.ne.s32.totalorder %s124, %s125
      %p137 = scmp.eq.s32.totalorder %s26, 1
      %p138 = por %p136, %p137
      %p140 = scmp.ne.s32.totalorder %s125, %s139
      %p141 = scmp.eq.s32.totalorder %s26, 0
      %p142 = por %p140, %p141
      %s144 = sadd.s32 %s143, 1
      %p147 = scmp.eq.s32.totalorder %s20, 1
      %p148 = scmp.ne.s32.totalorder %s143, %s145
      %p149 = scmp.eq.s32.totalorder %s20, 0
      %p150 = por %p148, %p149
      %p151 = scmp.ne.s32.totalorder %s143, %s145
      %p152 = scmp.eq.s32.totalorder %s25, 1
      %p153 = por %p151, %p152
      %p154 = scmp.ne.s32.totalorder %s145, %s146
      %p155 = scmp.eq.s32.totalorder %s25, 0
      %p156 = por %p154, %p155
      %p157 = scmp.ne.s32.totalorder %s145, %s146
      %p158 = scmp.eq.s32.totalorder %s26, 1
      %p159 = por %p157, %p158
      %p161 = scmp.ne.s32.totalorder %s146, %s160
      %p162 = scmp.eq.s32.totalorder %s26, 0
      %p163 = por %p161, %p162
      %s165 = sadd.s32 %s164, 1
      %p168 = scmp.eq.s32.totalorder %s20, 1
      %p169 = scmp.ne.s32.totalorder %s164, %s166
      %p170 = scmp.eq.s32.totalorder %s20, 0
      %p171 = por %p169, %p170
      %p172 = scmp.ne.s32.totalorder %s164, %s166
      %p173 = scmp.eq.s32.totalorder %s25, 1
      %p174 = por %p172, %p173
      %p175 = scmp.ne.s32.totalorder %s166, %s167
      %p176 = scmp.eq.s32.totalorder %s25, 0
      %p177 = por %p175, %p176
      %p178 = scmp.ne.s32.totalorder %s166, %s167
      %p179 = scmp.eq.s32.totalorder %s26, 1
      %p180 = por %p178, %p179
      %p182 = scmp.ne.s32.totalorder %s167, %s181
      %p183 = scmp.eq.s32.totalorder %s26, 0
      %p184 = por %p182, %p183
      %s185 = ssub.s32 %s20, %s27
      %p186 = scmp.eq.s32.totalorder %s185, 0
      %s188 = sadd.s32 %s187, 1
      %s189 = scalar_select %p186, %s187, %s188
      %p192 = pneg %p186
      %p193 = scmp.eq.s32.totalorder %s20, 1
      %p194 = por %p192, %p193
      %p195 = scmp.ne.s32.totalorder %s187, %s190
      %p196 = scmp.eq.s32.totalorder %s20, 0
      %p197 = por %p195, %p196
      %p198 = scmp.ne.s32.totalorder %s187, %s190
      %p199 = scmp.eq.s32.totalorder %s25, 1
      %p200 = por %p198, %p199
      %p201 = scmp.ne.s32.totalorder %s190, %s191
      %p202 = scmp.eq.s32.totalorder %s25, 0
      %p203 = por %p201, %p202
      %p204 = scmp.ne.s32.totalorder %s190, %s191
      %p205 = scmp.eq.s32.totalorder %s26, 1
      %p206 = por %p204, %p205
      %p208 = scmp.ne.s32.totalorder %s191, %s207
      %p209 = scmp.eq.s32.totalorder %s26, 0
      %p210 = por %p208, %p209
      %p211 = scmp.le.s32.totalorder 1, %s20
      %p212 = scmp.lt.s32.totalorder %s20, 3
      %p213 = pnand %p211, %p212
      %p214 = pneg %p213
      // Predicated region
      $region9: #{tpu_custom_call.1} parent=5 // pred_check
        _
      $region10: #{tpu_custom_call.1} parent=5 // pred_check_branch
        %216 = sbr.rel (%p213) target = $region12
      $region11: #{tpu_custom_call.1} parent=5 // pred_region
        %s217 = ssub.s32 %s20, 1
        // Predicated region
        $region13: #{tpu_custom_call.1} parent=11 // pred_check
          %p218 = pneg %p67
        $region14: #{tpu_custom_call.1} parent=11 // pred_check_branch
          %220 = sbr.rel (%p218) target = $region16
        $region15: #{tpu_custom_call.1} parent=11 // pred_region
          %222 = vsyncadd [#allocation6], 0
          %s223 = sshll.u32 %s1, 4
          %s224 = int_to_ptr.hbm [resolvable:$true] %s223
          %s225 = sshll.u32 [#allocation5], 4
          %s226 = int_to_ptr.vmem [resolvable:$true] %s225
          %231 = dma.hbm_to_vmem [thread:$0]  %s224, 128, %s226, [#allocation6], 64, 64, 4
        $region16: #{tpu_custom_call.1} parent=11 // pred_fallthru
          _
        // Predicated region
        $region17: #{tpu_custom_call.1} parent=11 // pred_check
          %p232 = pneg %p114
        $region18: #{tpu_custom_call.1} parent=11 // pred_check_branch
          %234 = sbr.rel (%p232) target = $region20
        $region19: #{tpu_custom_call.1} parent=11 // pred_region
          %236 = vsyncadd [#allocation6], 0
          %s237 = sshll.u32 %s3, 4
          %s238 = int_to_ptr.hbm [resolvable:$true] %s237
          %s239 = sshll.u32 [#allocation8], 4
          %s240 = int_to_ptr.vmem [resolvable:$true] %s239
          %245 = dma.hbm_to_vmem [thread:$0]  %s238, 128, %s240, [#allocation6], 64, 64, 4
        $region20: #{tpu_custom_call.1} parent=11 // pred_fallthru
          _
        // Predicated region
        $region21: #{tpu_custom_call.1} parent=11 // pred_check
          %p246 = pneg %p135
        $region22: #{tpu_custom_call.1} parent=11 // pred_check_branch
          %248 = sbr.rel (%p246) target = $region24
        $region23: #{tpu_custom_call.1} parent=11 // pred_region
          _
        $region24: #{tpu_custom_call.1} parent=11 // pred_fallthru
          _
        // Predicated region
        $region25: #{tpu_custom_call.1} parent=11 // pred_check
          %p249 = pneg %p156
        $region26: #{tpu_custom_call.1} parent=11 // pred_check_branch
          %251 = sbr.rel (%p249) target = $region28
        $region27: #{tpu_custom_call.1} parent=11 // pred_region
          _
        $region28: #{tpu_custom_call.1} parent=11 // pred_fallthru
          _
        // Predicated region
        $region29: #{tpu_custom_call.1} parent=11 // pred_check
          %p252 = pneg %p177
        $region30: #{tpu_custom_call.1} parent=11 // pred_check_branch
          %254 = sbr.rel (%p252) target = $region32
        $region31: #{tpu_custom_call.1} parent=11 // pred_region
          _
        $region32: #{tpu_custom_call.1} parent=11 // pred_fallthru
          _
      $region12: #{tpu_custom_call.1} parent=5 // pred_fallthru
        _
      %p255 = scmp.lt.s32.totalorder %s20, 2
      // Predicated region
      $region33: #{tpu_custom_call.1} parent=5 // pred_check
        %p256 = pneg %p255
      $region34: #{tpu_custom_call.1} parent=5 // pred_check_branch
        %258 = sbr.rel (%p256) target = $region36
      $region35: #{tpu_custom_call.1} parent=5 // pred_region
        // Predicated region
        $region37: #{tpu_custom_call.1} parent=35 // pred_check
          %p259 = pneg %p40
        $region38: #{tpu_custom_call.1} parent=35 // pred_check_branch
          %261 = sbr.rel (%p259) target = $region40
        $region39: #{tpu_custom_call.1} parent=35 // pred_region
          %s262 = sand.u32 %s20, 1
          %s263 = scalar_lea.sflag [#allocation3], %s262
          %s264 = sand.u32 %s30, 1
          %s265 = smul.addr %s264, 4
          %s266 = scalar_lea.vmem [#allocation2], %s265
          %268 = vsyncadd %s263, 0
          %s269 = smul.addr %s20, 4
          %s270 = scalar_lea.hbm %s0, %s269
          %s272 = sshll.u32 %s270, 4
          %s273 = int_to_ptr.hbm [resolvable:$true] %s272
          %s274 = sshll.u32 %s266, 4
          %s275 = int_to_ptr.vmem [resolvable:$true] %s274
          %277 = dma.hbm_to_vmem [thread:$0]  %s273, 64, %s275, %s263
        $region40: #{tpu_custom_call.1} parent=35 // pred_fallthru
          _
        // Predicated region
        $region41: #{tpu_custom_call.1} parent=35 // pred_check
          %p278 = pneg %p87
        $region42: #{tpu_custom_call.1} parent=35 // pred_check_branch
          %280 = sbr.rel (%p278) target = $region44
        $region43: #{tpu_custom_call.1} parent=35 // pred_region
          %s281 = sand.u32 %s20, 1
          %s282 = scalar_lea.sflag [#allocation3], %s281
          %s283 = sand.u32 %s77, 1
          %s284 = smul.addr %s283, 4
          %s285 = scalar_lea.vmem [#allocation7], %s284
          %287 = vsyncadd %s282, 0
          %s288 = smul.addr %s20, 4
          %s289 = scalar_lea.hbm %s2, %s288
          %s291 = sshll.u32 %s289, 4
          %s292 = int_to_ptr.hbm [resolvable:$true] %s291
          %s293 = sshll.u32 %s285, 4
          %s294 = int_to_ptr.vmem [resolvable:$true] %s293
          %296 = dma.hbm_to_vmem [thread:$0]  %s292, 64, %s294, %s282
        $region44: #{tpu_custom_call.1} parent=35 // pred_fallthru
          _
      $region36: #{tpu_custom_call.1} parent=5 // pred_fallthru
        _
      %p297 = scmp.le.s32.totalorder 1, %s20
      %p298 = scmp.lt.s32.totalorder %s20, 3
      %p299 = pnand %p297, %p298
      %p300 = pneg %p299
      // Predicated region
      $region45: #{tpu_custom_call.1} parent=5 // pred_check
        _
      $region46: #{tpu_custom_call.1} parent=5 // pred_check_branch
        %302 = sbr.rel (%p299) target = $region48
      $region47: #{tpu_custom_call.1} parent=5 // pred_region
        %s303 = ssub.s32 %s20, 1
        %s304 = sand.u32 %s25, 1
        %s305 = scalar_lea.sflag [#allocation3], %s304
        %s306 = sand.u32 %s33, 1
        %s307 = smul.addr %s306, 4
        %s308 = scalar_lea.vmem [#allocation2], %s307
        // Predicated region
        $region49: #{tpu_custom_call.1} parent=47 // pred_check
          %p309 = pneg %p46
        $region50: #{tpu_custom_call.1} parent=47 // pred_check_branch
          %311 = sbr.rel (%p309) target = $region52
        $region51: #{tpu_custom_call.1} parent=47 // pred_region
          %313 = dma.done %s305, 64
        $region52: #{tpu_custom_call.1} parent=47 // pred_fallthru
          _
        // Predicated region
        $region53: #{tpu_custom_call.1} parent=47 // pred_check
          %p314 = pneg %p67
        $region54: #{tpu_custom_call.1} parent=47 // pred_check_branch
          %316 = sbr.rel (%p314) target = $region56
        $region55: #{tpu_custom_call.1} parent=47 // pred_region
          %318 = dma.done [#allocation6], 128
        $region56: #{tpu_custom_call.1} parent=47 // pred_fallthru
          _
        %s319 = sand.u32 %s25, 1
        %s320 = scalar_lea.sflag [#allocation3], %s319
        %s321 = sand.u32 %s80, 1
        %s322 = smul.addr %s321, 4
        %s323 = scalar_lea.vmem [#allocation7], %s322
        // Predicated region
        $region57: #{tpu_custom_call.1} parent=47 // pred_check
          %p324 = pneg %p93
        $region58: #{tpu_custom_call.1} parent=47 // pred_check_branch
          %326 = sbr.rel (%p324) target = $region60
        $region59: #{tpu_custom_call.1} parent=47 // pred_region
          %328 = dma.done %s320, 64
        $region60: #{tpu_custom_call.1} parent=47 // pred_fallthru
          _
        // Predicated region
        $region61: #{tpu_custom_call.1} parent=47 // pred_check
          %p329 = pneg %p114
        $region62: #{tpu_custom_call.1} parent=47 // pred_check_branch
          %331 = sbr.rel (%p329) target = $region64
        $region63: #{tpu_custom_call.1} parent=47 // pred_region
          %333 = dma.done [#allocation6], 128
        $region64: #{tpu_custom_call.1} parent=47 // pred_fallthru
          _
        %s334 = sand.u32 %s25, 1
        %s335 = scalar_lea.sflag [#allocation3], %s334
        %s336 = sand.u32 %s33, 1
        %s337 = smul.addr %s336, 4
        %s338 = scalar_lea.vmem [#allocation2], %s337
        %p339 = pneg %p46
        %p340 = pneg %p43
        %p341 = pneg %p67
        %p342 = pneg %p64
        %s343 = sand.u32 %s25, 1
        %s344 = scalar_lea.sflag [#allocation3], %s343
        %s345 = sand.u32 %s80, 1
        %s346 = smul.addr %s345, 4
        %s347 = scalar_lea.vmem [#allocation7], %s346
        %p348 = pneg %p93
        %p349 = pneg %p90
        %p350 = pneg %p114
        %p351 = pneg %p111
        %p352 = pneg %p135
        %p353 = pneg %p132
        %p354 = pneg %p156
        %p355 = pneg %p153
        %p356 = pneg %p177
        %p357 = pneg %p174
        %p358 = pneg %p203
        %p359 = pneg %p200
        %s360 = sand.u32 %s190, 1
        %s361 = scalar_lea.sflag [#allocation4], %s360
        %s362 = sand.u32 %s190, 1
        %s363 = smul.addr %s362, 128
        %s364 = scalar_lea.vmem [#allocation9], %s363
        %s365 = smul.u32 8, %s25
        %v367 = vld [vmem:[%s308] sm:$0xf]
        %v368 = vld [vmem:[#allocation5] sm:$0xf]
        %v369 = vld [vmem:[#allocation5 + $0x4] sm:$0xf]
        %v372 = vunpack.c.l.b16 %v368
        %v373 = vunpack.c.l.b16 %v369
        %v374 = vpack.c.b16 %v373, %v372
        %vm376 = vcmask 130048
        %v378 = vsel %vm376, %v367, 0
        %380 = vmatpush.bf16.msra.mxu0 0
        %381 = vmatpush.bf16.msra.mxu0 0
        %382 = vmatpush.bf16.msra.mxu0 0
        %383 = vmatpush.bf16.msra.mxu0 0
        %384 = vmatpush.bf16.msra.mxu0 0
        %385 = vmatpush.bf16.msra.mxu0 0
        %386 = vmatpush.bf16.msra.mxu0 0
        %387 = vmatpush.bf16.msra.mxu0 %v374
        %388 = vmatmul.bf16.gmra.mxu0 %v378
        %v389 = vpop.f32.mrf.mxu0
        %v390 = vadd.f32 0.0, %v389
        %v391 = vpop.f32.mrf.mxu0
        %392 = vdwg.mxu0
        %v393 = vld [vmem:[%s323] sm:$0xf]
        %v394 = vld [vmem:[#allocation8] sm:$0xf]
        %v395 = vld [vmem:[#allocation8 + $0x4] sm:$0xf]
        %v398 = vunpack.c.l.b16 %v394
        %v399 = vunpack.c.l.b16 %v395
        %v400 = vpack.c.b16 %v399, %v398
        %v403 = vsel %vm376, %v393, 0
        %405 = vmatpush.bf16.msra.mxu0 0
        %406 = vmatpush.bf16.msra.mxu0 0
        %407 = vmatpush.bf16.msra.mxu0 0
        %408 = vmatpush.bf16.msra.mxu0 0
        %409 = vmatpush.bf16.msra.mxu0 0
        %410 = vmatpush.bf16.msra.mxu0 0
        %411 = vmatpush.bf16.msra.mxu0 0
        %412 = vmatpush.bf16.msra.mxu0 %v400
        %413 = vmatmul.bf16.gmra.mxu0 %v403
        %v414 = vpop.f32.mrf.mxu0
        %v415 = vadd.f32 0.0, %v414
        %v416 = vpop.f32.mrf.mxu0
        %417 = vdwg.mxu0
        %v418 = vld [vmem:[%s6] sm:$0x1]
        %vm419 = vcmp.gt.f32.partialorder %v418, 0.5
        %v420 = vperm.slane %v390, 0
        %v421 = vlaneseq
        %v422 = vshrl.u32 %v421, 7
        %424 = vset.pattern.permute.xlu0 %v422
        %425 = vperm.xlu0 %424, %v420
        %v426 = vpop.permute.xlu0 %425
        %v427 = vlaneseq
        %v428 = vshrl.u32 %v427, 7
        %v429 = vadd.s32 %v428, 8
        %430 = vset.pattern.permute.xlu0 %v429
        %431 = vperm.xlu0 %430, %v420
        %v432 = vpop.permute.xlu0 %431
        %v433 = vperm.slane %v390, 1
        %v434 = vlaneseq
        %v435 = vshrl.u32 %v434, 7
        %437 = vset.pattern.permute.xlu0 %v435
        %438 = vperm.xlu0 %437, %v433
        %v439 = vpop.permute.xlu0 %438
        %v440 = vlaneseq
        %v441 = vshrl.u32 %v440, 7
        %v442 = vadd.s32 %v441, 8
        %443 = vset.pattern.permute.xlu0 %v442
        %444 = vperm.xlu0 %443, %v433
        %v445 = vpop.permute.xlu0 %444
        %v446 = vperm.slane %v390, 2
        %v447 = vlaneseq
        %v448 = vshrl.u32 %v447, 7
        %450 = vset.pattern.permute.xlu0 %v448
        %451 = vperm.xlu0 %450, %v446
        %v452 = vpop.permute.xlu0 %451
        %v453 = vlaneseq
        %v454 = vshrl.u32 %v453, 7
        %v455 = vadd.s32 %v454, 8
        %456 = vset.pattern.permute.xlu0 %v455
        %457 = vperm.xlu0 %456, %v446
        %v458 = vpop.permute.xlu0 %457
        %v459 = vperm.slane %v390, 3
        %v460 = vlaneseq
        %v461 = vshrl.u32 %v460, 7
        %463 = vset.pattern.permute.xlu0 %v461
        %464 = vperm.xlu0 %463, %v459
        %v465 = vpop.permute.xlu0 %464
        %v466 = vlaneseq
        %v467 = vshrl.u32 %v466, 7
        %v468 = vadd.s32 %v467, 8
        %469 = vset.pattern.permute.xlu0 %v468
        %470 = vperm.xlu0 %469, %v459
        %v471 = vpop.permute.xlu0 %470
        %v472 = vperm.slane %v390, 4
        %v473 = vlaneseq
        %v474 = vshrl.u32 %v473, 7
        %476 = vset.pattern.permute.xlu0 %v474
        %477 = vperm.xlu0 %476, %v472
        %v478 = vpop.permute.xlu0 %477
        %v479 = vlaneseq
        %v480 = vshrl.u32 %v479, 7
        %v481 = vadd.s32 %v480, 8
        %482 = vset.pattern.permute.xlu0 %v481
        %483 = vperm.xlu0 %482, %v472
        %v484 = vpop.permute.xlu0 %483
        %v485 = vperm.slane %v390, 5
        %v486 = vlaneseq
        %v487 = vshrl.u32 %v486, 7
        %489 = vset.pattern.permute.xlu0 %v487
        %490 = vperm.xlu0 %489, %v485
        %v491 = vpop.permute.xlu0 %490
        %v492 = vlaneseq
        %v493 = vshrl.u32 %v492, 7
        %v494 = vadd.s32 %v493, 8
        %495 = vset.pattern.permute.xlu0 %v494
        %496 = vperm.xlu0 %495, %v485
        %v497 = vpop.permute.xlu0 %496
        %v498 = vperm.slane %v390, 6
        %v499 = vlaneseq
        %v500 = vshrl.u32 %v499, 7
        %502 = vset.pattern.permute.xlu0 %v500
        %503 = vperm.xlu0 %502, %v498
        %v504 = vpop.permute.xlu0 %503
        %v505 = vlaneseq
        %v506 = vshrl.u32 %v505, 7
        %v507 = vadd.s32 %v506, 8
        %508 = vset.pattern.permute.xlu0 %v507
        %509 = vperm.xlu0 %508, %v498
        %v510 = vpop.permute.xlu0 %509
        %v511 = vperm.slane %v390, 7
        %v512 = vlaneseq
        %v513 = vshrl.u32 %v512, 7
        %515 = vset.pattern.permute.xlu0 %v513
        %516 = vperm.xlu0 %515, %v511
        %v517 = vpop.permute.xlu0 %516
        %v518 = vlaneseq
        %v519 = vshrl.u32 %v518, 7
        %v520 = vadd.s32 %v519, 8
        %521 = vset.pattern.permute.xlu0 %v520
        %522 = vperm.xlu0 %521, %v511
        %v523 = vpop.permute.xlu0 %522
        %v524 = vperm.slane %v415, 0
        %v525 = vlaneseq
        %v526 = vshrl.u32 %v525, 7
        %528 = vset.pattern.permute.xlu0 %v526
        %529 = vperm.xlu0 %528, %v524
        %v530 = vpop.permute.xlu0 %529
        %v531 = vlaneseq
        %v532 = vshrl.u32 %v531, 7
        %v533 = vadd.s32 %v532, 8
        %534 = vset.pattern.permute.xlu0 %v533
        %535 = vperm.xlu0 %534, %v524
        %v536 = vpop.permute.xlu0 %535
        %v537 = vperm.slane %v415, 1
        %v538 = vlaneseq
        %v539 = vshrl.u32 %v538, 7
        %541 = vset.pattern.permute.xlu0 %v539
        %542 = vperm.xlu0 %541, %v537
        %v543 = vpop.permute.xlu0 %542
        %v544 = vlaneseq
        %v545 = vshrl.u32 %v544, 7
        %v546 = vadd.s32 %v545, 8
        %547 = vset.pattern.permute.xlu0 %v546
        %548 = vperm.xlu0 %547, %v537
        %v549 = vpop.permute.xlu0 %548
        %v550 = vperm.slane %v415, 2
        %v551 = vlaneseq
        %v552 = vshrl.u32 %v551, 7
        %554 = vset.pattern.permute.xlu0 %v552
        %555 = vperm.xlu0 %554, %v550
        %v556 = vpop.permute.xlu0 %555
        %v557 = vlaneseq
        %v558 = vshrl.u32 %v557, 7
        %v559 = vadd.s32 %v558, 8
        %560 = vset.pattern.permute.xlu0 %v559
        %561 = vperm.xlu0 %560, %v550
        %v562 = vpop.permute.xlu0 %561
        %v563 = vperm.slane %v415, 3
        %v564 = vlaneseq
        %v565 = vshrl.u32 %v564, 7
        %567 = vset.pattern.permute.xlu0 %v565
        %568 = vperm.xlu0 %567, %v563
        %v569 = vpop.permute.xlu0 %568
        %v570 = vlaneseq
        %v571 = vshrl.u32 %v570, 7
        %v572 = vadd.s32 %v571, 8
        %573 = vset.pattern.permute.xlu0 %v572
        %574 = vperm.xlu0 %573, %v563
        %v575 = vpop.permute.xlu0 %574
        %v576 = vperm.slane %v415, 4
        %v577 = vlaneseq
        %v578 = vshrl.u32 %v577, 7
        %580 = vset.pattern.permute.xlu0 %v578
        %581 = vperm.xlu0 %580, %v576
        %v582 = vpop.permute.xlu0 %581
        %v583 = vlaneseq
        %v584 = vshrl.u32 %v583, 7
        %v585 = vadd.s32 %v584, 8
        %586 = vset.pattern.permute.xlu0 %v585
        %587 = vperm.xlu0 %586, %v576
        %v588 = vpop.permute.xlu0 %587
        %v589 = vperm.slane %v415, 5
        %v590 = vlaneseq
        %v591 = vshrl.u32 %v590, 7
        %593 = vset.pattern.permute.xlu0 %v591
        %594 = vperm.xlu0 %593, %v589
        %v595 = vpop.permute.xlu0 %594
        %v596 = vlaneseq
        %v597 = vshrl.u32 %v596, 7
        %v598 = vadd.s32 %v597, 8
        %599 = vset.pattern.permute.xlu0 %v598
        %600 = vperm.xlu0 %599, %v589
        %v601 = vpop.permute.xlu0 %600
        %v602 = vperm.slane %v415, 6
        %v603 = vlaneseq
        %v604 = vshrl.u32 %v603, 7
        %606 = vset.pattern.permute.xlu0 %v604
        %607 = vperm.xlu0 %606, %v602
        %v608 = vpop.permute.xlu0 %607
        %v609 = vlaneseq
        %v610 = vshrl.u32 %v609, 7
        %v611 = vadd.s32 %v610, 8
        %612 = vset.pattern.permute.xlu0 %v611
        %613 = vperm.xlu0 %612, %v602
        %v614 = vpop.permute.xlu0 %613
        %v615 = vperm.slane %v415, 7
        %v616 = vlaneseq
        %v617 = vshrl.u32 %v616, 7
        %619 = vset.pattern.permute.xlu0 %v617
        %620 = vperm.xlu0 %619, %v615
        %v621 = vpop.permute.xlu0 %620
        %v622 = vlaneseq
        %v623 = vshrl.u32 %v622, 7
        %v624 = vadd.s32 %v623, 8
        %625 = vset.pattern.permute.xlu0 %v624
        %626 = vperm.xlu0 %625, %v615
        %v627 = vpop.permute.xlu0 %626
        %v628 = vsel %vm419, 1, 0
        %v629 = vperm.slane %v628, 0
        %vm630 = vcmp.eq.s32.totalorder %v629, 1
        %v631 = vsel %vm630, %v426, %v530
        %v632 = vsel %vm630, %v432, %v536
        %v633 = vsel %vm630, %v439, %v543
        %v634 = vsel %vm630, %v445, %v549
        %v635 = vsel %vm630, %v452, %v556
        %v636 = vsel %vm630, %v458, %v562
        %v637 = vsel %vm630, %v465, %v569
        %v638 = vsel %vm630, %v471, %v575
        %v639 = vsel %vm630, %v478, %v582
        %v640 = vsel %vm630, %v484, %v588
        %v641 = vsel %vm630, %v491, %v595
        %v642 = vsel %vm630, %v497, %v601
        %v643 = vsel %vm630, %v504, %v608
        %v644 = vsel %vm630, %v510, %v614
        %v645 = vsel %vm630, %v517, %v621
        %v646 = vsel %vm630, %v523, %v627
        %v647 = vld [vmem:[%s4] sm:$0x1]
        %v649 = vperm.slane %v647, 0
        %v651 = vmul.f32 %v631, %v649
        %v652 = vmul.f32 %v632, %v649
        %v653 = vmul.f32 %v633, %v649
        %v654 = vmul.f32 %v634, %v649
        %v655 = vmul.f32 %v635, %v649
        %v656 = vmul.f32 %v636, %v649
        %v657 = vmul.f32 %v637, %v649
        %v658 = vmul.f32 %v638, %v649
        %v659 = vmul.f32 %v639, %v649
        %v660 = vmul.f32 %v640, %v649
        %v661 = vmul.f32 %v641, %v649
        %v662 = vmul.f32 %v642, %v649
        %v663 = vmul.f32 %v643, %v649
        %v664 = vmul.f32 %v644, %v649
        %v665 = vmul.f32 %v645, %v649
        %v666 = vmul.f32 %v646, %v649
        %v667 = vld [vmem:[%s5] sm:$0x1]
        %v669 = vperm.slane %v667, 0
        %v671 = vadd.f32 %v651, %v669
        %v672 = vadd.f32 %v652, %v669
        %v673 = vadd.f32 %v653, %v669
        %v674 = vadd.f32 %v654, %v669
        %v675 = vadd.f32 %v655, %v669
        %v676 = vadd.f32 %v656, %v669
        %v677 = vadd.f32 %v657, %v669
        %v678 = vadd.f32 %v658, %v669
        %v679 = vadd.f32 %v659, %v669
        %v680 = vadd.f32 %v660, %v669
        %v681 = vadd.f32 %v661, %v669
        %v682 = vadd.f32 %v662, %v669
        %v683 = vadd.f32 %v663, %v669
        %v684 = vadd.f32 %v664, %v669
        %v685 = vadd.f32 %v665, %v669
        %v686 = vadd.f32 %v666, %v669
        %v687 = vand.u32 2147483647, %v671
        %vm688 = vcmp.le.f32.partialorder %v687, 0.7853982
        %vm689 = vcmp.lt.s32.totalorder %v671, 0
        %v690 = vand.u32 %v671, 2139095040
        %v691 = vshrl.u32 %v690, 23
        %v692 = vsub.s32 %v691, 127
        %v693 = vand.u32 2147483647, %v671
        %v694 = vand.u32 %v693, 8388607
        %v695 = vor.u32 %v694, 8388608
        %v696 = vsub.s32 0, %v695
        %v697 = vadd.s32 %v692, 1
        %vm698 = vcmp.gt.s32.totalorder %v697, 0
        %v699 = vsel %vm698, %v697, 0
        %v700 = vshrl.u32 %v699, 5
        %v701 = vand.u32 %v699, 31
        %v702 = vsub.s32 32, %v701
        %v703 = vshrl.u32 683565275, %v702
        %v704 = vshll.u32 683565275, %v701
        %v705 = vshrl.u32 2475754826, %v702
        %v706 = vor.u32 %v704, %v705
        %v707 = vshll.u32 2475754826, %v701
        %v708 = vshrl.u32 2131351028, %v702
        %v709 = vor.u32 %v707, %v708
        %v710 = vshll.u32 2131351028, %v701
        %v711 = vshrl.u32 2102212464, %v702
        %v712 = vor.u32 %v710, %v711
        %v713 = vshll.u32 2102212464, %v701
        %v714 = vshrl.u32 920167782, %v702
        %v715 = vor.u32 %v713, %v714
        %v716 = vshll.u32 920167782, %v701
        %v717 = vshrl.u32 1326507024, %v702
        %v718 = vor.u32 %v716, %v717
        %vm719 = vcmp.lt.s32.totalorder %v700, 1
        %vm720 = vcmp.lt.s32.totalorder %v700, 2
        %vm721 = vcmp.lt.s32.totalorder %v700, 3
        %vm722 = vcmp.lt.s32.totalorder %v700, 4
        %v723 = vsel %vm719, %v703, %v706
        %v724 = vsel %vm722, %v712, 2102212464
        %v725 = vsel %vm721, %v709, %v724
        %v726 = vsel %vm720, %v723, %v725
        %v727 = vsel %vm719, %v706, %v709
        %v728 = vsel %vm722, %v715, 920167782
        %v729 = vsel %vm721, %v712, %v728
        %v730 = vsel %vm720, %v727, %v729
        %v731 = vsel %vm719, %v709, %v712
        %v732 = vsel %vm722, %v718, 1326507024
        %v733 = vsel %vm721, %v715, %v732
        %v734 = vsel %vm720, %v731, %v733
        %v735 = vshll.u32 %v695, 8
        %v736 = vand.u32 %v735, 65535
        %v737 = vshrl.u32 %v735, 16
        %v738 = vand.u32 %v734, 65535
        %v739 = vshrl.u32 %v734, 16
        %v740 = vmul.u32 %v736, %v738
        %v741 = vmul.u32 %v736, %v739
        %v742 = vmul.u32 %v737, %v738
        %v743 = vmul.u32 %v737, %v739
        %v744 = vshll.u32 %v741, 16
        %v745 = vshrl.u32 %v741, 16
        %v746 = vshll.u32 %v742, 16
        %v747 = vshrl.u32 %v742, 16
        %vm748 = vc.u32 %v740, %v744
        %v749 = vsel %vm748, 1, 0
        %v750 = vadd.s32 %v740, %v744
        %v751 = vadd.s32 %v743, %v749
        %vm752 = vc.u32 %v750, %v746
        %v753 = vsel %vm752, 1, 0
        %v754 = vadd.s32 %v750, %v746
        %v755 = vadd.s32 %v751, %v753
        %v756 = vadd.s32 %v755, %v745
        %v757 = vadd.s32 %v756, %v747
        %v758 = vand.u32 %v735, 65535
        %v759 = vshrl.u32 %v735, 16
        %v760 = vand.u32 %v730, 65535
        %v761 = vshrl.u32 %v730, 16
        %v762 = vmul.u32 %v758, %v760
        %v763 = vmul.u32 %v758, %v761
        %v764 = vmul.u32 %v759, %v760
        %v765 = vmul.u32 %v759, %v761
        %v766 = vshll.u32 %v763, 16
        %v767 = vshrl.u32 %v763, 16
        %v768 = vshll.u32 %v764, 16
        %v769 = vshrl.u32 %v764, 16
        %vm770 = vc.u32 %v762, %v766
        %v771 = vsel %vm770, 1, 0
        %v772 = vadd.s32 %v762, %v766
        %v773 = vadd.s32 %v765, %v771
        %vm774 = vc.u32 %v772, %v768
        %v775 = vsel %vm774, 1, 0
        %v776 = vadd.s32 %v772, %v768
        %v777 = vadd.s32 %v773, %v775
        %v778 = vadd.s32 %v777, %v767
        %v779 = vadd.s32 %v778, %v769
        %v780 = vmul.u32 %v735, %v726
        %v781 = vadd.s32 %v757, %v776
        %vm782 = vc.u32 %v757, %v776
        %v783 = vadd.s32 %v779, 1
        %v784 = vsel %vm782, %v783, %v779
        %v785 = vadd.s32 %v780, %v784
        %v786 = vadd.s32 %v785, 536870912
        %v787 = vshrl.u32 %v786, 30
        %v788 = vshll.u32 %v787, 30
        %v789 = vsub.s32 %v785, %v788
        %vm790 = vcmp.lt.s32.totalorder %v789, 0
        %v791 = vsub.s32 0, %v789
        %v792 = vsel %vm790, %v791, %v789
        %v793 = vclz %v792
        %v794 = vsub.s32 %v793, 2
        %vm795 = vcmp.gt.s32.totalorder 0, %v794
        %v796 = vsel %vm795, 0, %v794
        %v797 = vsub.s32 32, %v796
        %v798 = vshll.u32 %v789, %v796
        %v799 = vshrl.u32 %v781, %v797
        %v800 = vor.u32 %v798, %v799
        %v801 = vsub.s32 4294967266, %v796
        %v802 = vadd.s32 %v801, 127
        %v803 = vshll.u32 %v802, 23
        %v804 = vor.u32 4788187, %v803
        %v805 = vand.u32 2147483647, %v804
        %v807 = vcvt.s32.f32 %v800
        %v808 = vmul.f32 %v807, %v805
        %v809 = vxor.u32 %v808, 2147483648
        %v810 = vsel %vm689, %v809, %v808
        %v811 = vsub.s32 4, %v787
        %v812 = vsel %vm689, %v811, %v787
        %v813 = vsel %vm688, %v671, %v810
        %v814 = vsel %vm688, 0, %v812
        %v815 = vmul.f32 %v813, %v813
        %v816 = vmul.f32 %v815, -0.001358992
        %v817 = vadd.f32 %v816, 0.041655596
        %v818 = vmul.f32 %v815, %v817
        %v819 = vadd.f32 %v818, -0.4999988
        %v820 = vmul.f32 %v815, %v819
        %v821 = vadd.f32 1.0, %v820
        %v822 = vmul.f32 %v813, %v813
        %v823 = vmul.f32 %v822, -0.00019511016
        %v824 = vadd.f32 %v823, 0.008332121
        %v825 = vmul.f32 %v822, %v824
        %v826 = vadd.f32 %v825, -0.16666654
        %v827 = vmul.f32 %v822, %v826
        %v828 = vadd.f32 %v827, 1.0
        %v829 = vmul.f32 %v828, %v813
        %vm830 = vweird.f32 %v671
        %v831 = vadd.s32 %v814, 3
        %v832 = vand.u32 %v831, 3
        %vm833 = vcmp.lt.s32.totalorder %v832, 2
        %vm834 = vcmp.eq.s32.totalorder %v832, 0
        %v835 = vxor.u32 %v829, 2147483648
        %v836 = vsel %vm834, %v821, %v835
        %vm837 = vcmp.eq.s32.totalorder %v832, 2
        %v838 = vxor.u32 %v821, 2147483648
        %v839 = vsel %vm837, %v838, %v829
        %v840 = vsel %vm833, %v836, %v839
        %v841 = vsel %vm830, nan, %v840
        %v842 = vand.u32 2147483647, %v672
        %vm843 = vcmp.le.f32.partialorder %v842, 0.7853982
        %vm844 = vcmp.lt.s32.totalorder %v672, 0
        %v845 = vand.u32 %v672, 2139095040
        %v846 = vshrl.u32 %v845, 23
        %v847 = vsub.s32 %v846, 127
        %v848 = vand.u32 2147483647, %v672
        %v849 = vand.u32 %v848, 8388607
        %v850 = vor.u32 %v849, 8388608
        %v851 = vsub.s32 0, %v850
        %v852 = vadd.s32 %v847, 1
        %vm853 = vcmp.gt.s32.totalorder %v852, 0
        %v854 = vsel %vm853, %v852, 0
        %v855 = vshrl.u32 %v854, 5
        %v856 = vand.u32 %v854, 31
        %v857 = vsub.s32 32, %v856
        %v858 = vshrl.u32 683565275, %v857
        %v859 = vshll.u32 683565275, %v856
        %v860 = vshrl.u32 2475754826, %v857
        %v861 = vor.u32 %v859, %v860
        %v862 = vshll.u32 2475754826, %v856
        %v863 = vshrl.u32 2131351028, %v857
        %v864 = vor.u32 %v862, %v863
        %v865 = vshll.u32 2131351028, %v856
        %v866 = vshrl.u32 2102212464, %v857
        %v867 = vor.u32 %v865, %v866
        %v868 = vshll.u32 2102212464, %v856
        %v869 = vshrl.u32 920167782, %v857
        %v870 = vor.u32 %v868, %v869
        %v871 = vshll.u32 920167782, %v856
        %v872 = vshrl.u32 1326507024, %v857
        %v873 = vor.u32 %v871, %v872
        %vm874 = vcmp.lt.s32.totalorder %v855, 1
        %vm875 = vcmp.lt.s32.totalorder %v855, 2
        %vm876 = vcmp.lt.s32.totalorder %v855, 3
        %vm877 = vcmp.lt.s32.totalorder %v855, 4
        %v878 = vsel %vm874, %v858, %v861
        %v879 = vsel %vm877, %v867, 2102212464
        %v880 = vsel %vm876, %v864, %v879
        %v881 = vsel %vm875, %v878, %v880
        %v882 = vsel %vm874, %v861, %v864
        %v883 = vsel %vm877, %v870, 920167782
        %v884 = vsel %vm876, %v867, %v883
        %v885 = vsel %vm875, %v882, %v884
        %v886 = vsel %vm874, %v864, %v867
        %v887 = vsel %vm877, %v873, 1326507024
        %v888 = vsel %vm876, %v870, %v887
        %v889 = vsel %vm875, %v886, %v888
        %v890 = vshll.u32 %v850, 8
        %v891 = vand.u32 %v890, 65535
        %v892 = vshrl.u32 %v890, 16
        %v893 = vand.u32 %v889, 65535
        %v894 = vshrl.u32 %v889, 16
        %v895 = vmul.u32 %v891, %v893
        %v896 = vmul.u32 %v891, %v894
        %v897 = vmul.u32 %v892, %v893
        %v898 = vmul.u32 %v892, %v894
        %v899 = vshll.u32 %v896, 16
        %v900 = vshrl.u32 %v896, 16
        %v901 = vshll.u32 %v897, 16
        %v902 = vshrl.u32 %v897, 16
        %vm903 = vc.u32 %v895, %v899
        %v904 = vsel %vm903, 1, 0
        %v905 = vadd.s32 %v895, %v899
        %v906 = vadd.s32 %v898, %v904
        %vm907 = vc.u32 %v905, %v901
        %v908 = vsel %vm907, 1, 0
        %v909 = vadd.s32 %v905, %v901
        %v910 = vadd.s32 %v906, %v908
        %v911 = vadd.s32 %v910, %v900
        %v912 = vadd.s32 %v911, %v902
        %v913 = vand.u32 %v890, 65535
        %v914 = vshrl.u32 %v890, 16
        %v915 = vand.u32 %v885, 65535
        %v916 = vshrl.u32 %v885, 16
        %v917 = vmul.u32 %v913, %v915
        %v918 = vmul.u32 %v913, %v916
        %v919 = vmul.u32 %v914, %v915
        %v920 = vmul.u32 %v914, %v916
        %v921 = vshll.u32 %v918, 16
        %v922 = vshrl.u32 %v918, 16
        %v923 = vshll.u32 %v919, 16
        %v924 = vshrl.u32 %v919, 16
        %vm925 = vc.u32 %v917, %v921
        %v926 = vsel %vm925, 1, 0
        %v927 = vadd.s32 %v917, %v921
        %v928 = vadd.s32 %v920, %v926
        %vm929 = vc.u32 %v927, %v923
        %v930 = vsel %vm929, 1, 0
        %v931 = vadd.s32 %v927, %v923
        %v932 = vadd.s32 %v928, %v930
        %v933 = vadd.s32 %v932, %v922
        %v934 = vadd.s32 %v933, %v924
        %v935 = vmul.u32 %v890, %v881
        %v936 = vadd.s32 %v912, %v931
        %vm937 = vc.u32 %v912, %v931
        %v938 = vadd.s32 %v934, 1
        %v939 = vsel %vm937, %v938, %v934
        %v940 = vadd.s32 %v935, %v939
        %v941 = vadd.s32 %v940, 536870912
        %v942 = vshrl.u32 %v941, 30
        %v943 = vshll.u32 %v942, 30
        %v944 = vsub.s32 %v940, %v943
        %vm945 = vcmp.lt.s32.totalorder %v944, 0
        %v946 = vsub.s32 0, %v944
        %v947 = vsel %vm945, %v946, %v944
        %v948 = vclz %v947
        %v949 = vsub.s32 %v948, 2
        %vm950 = vcmp.gt.s32.totalorder 0, %v949
        %v951 = vsel %vm950, 0, %v949
        %v952 = vsub.s32 32, %v951
        %v953 = vshll.u32 %v944, %v951
        %v954 = vshrl.u32 %v936, %v952
        %v955 = vor.u32 %v953, %v954
        %v956 = vsub.s32 4294967266, %v951
        %v957 = vadd.s32 %v956, 127
        %v958 = vshll.u32 %v957, 23
        %v959 = vor.u32 4788187, %v958
        %v960 = vand.u32 2147483647, %v959
        %v962 = vcvt.s32.f32 %v955
        %v963 = vmul.f32 %v962, %v960
        %v964 = vxor.u32 %v963, 2147483648
        %v965 = vsel %vm844, %v964, %v963
        %v966 = vsub.s32 4, %v942
        %v967 = vsel %vm844, %v966, %v942
        %v968 = vsel %vm843, %v672, %v965
        %v969 = vsel %vm843, 0, %v967
        %v970 = vmul.f32 %v968, %v968
        %v971 = vmul.f32 %v970, -0.001358992
        %v972 = vadd.f32 %v971, 0.041655596
        %v973 = vmul.f32 %v970, %v972
        %v974 = vadd.f32 %v973, -0.4999988
        %v975 = vmul.f32 %v970, %v974
        %v976 = vadd.f32 1.0, %v975
        %v977 = vmul.f32 %v968, %v968
        %v978 = vmul.f32 %v977, -0.00019511016
        %v979 = vadd.f32 %v978, 0.008332121
        %v980 = vmul.f32 %v977, %v979
        %v981 = vadd.f32 %v980, -0.16666654
        %v982 = vmul.f32 %v977, %v981
        %v983 = vadd.f32 %v982, 1.0
        %v984 = vmul.f32 %v983, %v968
        %vm985 = vweird.f32 %v672
        %v986 = vadd.s32 %v969, 3
        %v987 = vand.u32 %v986, 3
        %vm988 = vcmp.lt.s32.totalorder %v987, 2
        %vm989 = vcmp.eq.s32.totalorder %v987, 0
        %v990 = vxor.u32 %v984, 2147483648
        %v991 = vsel %vm989, %v976, %v990
        %vm992 = vcmp.eq.s32.totalorder %v987, 2
        %v993 = vxor.u32 %v976, 2147483648
        %v994 = vsel %vm992, %v993, %v984
        %v995 = vsel %vm988, %v991, %v994
        %v996 = vsel %vm985, nan, %v995
        %v997 = vand.u32 2147483647, %v673
        %vm998 = vcmp.le.f32.partialorder %v997, 0.7853982
        %vm999 = vcmp.lt.s32.totalorder %v673, 0
        %v1000 = vand.u32 %v673, 2139095040
        %v1001 = vshrl.u32 %v1000, 23
        %v1002 = vsub.s32 %v1001, 127
        %v1003 = vand.u32 2147483647, %v673
        %v1004 = vand.u32 %v1003, 8388607
        %v1005 = vor.u32 %v1004, 8388608
        %v1006 = vsub.s32 0, %v1005
        %v1007 = vadd.s32 %v1002, 1
        %vm1008 = vcmp.gt.s32.totalorder %v1007, 0
        %v1009 = vsel %vm1008, %v1007, 0
        %v1010 = vshrl.u32 %v1009, 5
        %v1011 = vand.u32 %v1009, 31
        %v1012 = vsub.s32 32, %v1011
        %v1013 = vshrl.u32 683565275, %v1012
        %v1014 = vshll.u32 683565275, %v1011
        %v1015 = vshrl.u32 2475754826, %v1012
        %v1016 = vor.u32 %v1014, %v1015
        %v1017 = vshll.u32 2475754826, %v1011
        %v1018 = vshrl.u32 2131351028, %v1012
        %v1019 = vor.u32 %v1017, %v1018
        %v1020 = vshll.u32 2131351028, %v1011
        %v1021 = vshrl.u32 2102212464, %v1012
        %v1022 = vor.u32 %v1020, %v1021
        %v1023 = vshll.u32 2102212464, %v1011
        %v1024 = vshrl.u32 920167782, %v1012
        %v1025 = vor.u32 %v1023, %v1024
        %v1026 = vshll.u32 920167782, %v1011
        %v1027 = vshrl.u32 1326507024, %v1012
        %v1028 = vor.u32 %v1026, %v1027
        %vm1029 = vcmp.lt.s32.totalorder %v1010, 1
        %vm1030 = vcmp.lt.s32.totalorder %v1010, 2
        %vm1031 = vcmp.lt.s32.totalorder %v1010, 3
        %vm1032 = vcmp.lt.s32.totalorder %v1010, 4
        %v1033 = vsel %vm1029, %v1013, %v1016
        %v1034 = vsel %vm1032, %v1022, 2102212464
        %v1035 = vsel %vm1031, %v1019, %v1034
        %v1036 = vsel %vm1030, %v1033, %v1035
        %v1037 = vsel %vm1029, %v1016, %v1019
        %v1038 = vsel %vm1032, %v1025, 920167782
        %v1039 = vsel %vm1031, %v1022, %v1038
        %v1040 = vsel %vm1030, %v1037, %v1039
        %v1041 = vsel %vm1029, %v1019, %v1022
        %v1042 = vsel %vm1032, %v1028, 1326507024
        %v1043 = vsel %vm1031, %v1025, %v1042
        %v1044 = vsel %vm1030, %v1041, %v1043
        %v1045 = vshll.u32 %v1005, 8
        %v1046 = vand.u32 %v1045, 65535
        %v1047 = vshrl.u32 %v1045, 16
        %v1048 = vand.u32 %v1044, 65535
        %v1049 = vshrl.u32 %v1044, 16
        %v1050 = vmul.u32 %v1046, %v1048
        %v1051 = vmul.u32 %v1046, %v1049
        %v1052 = vmul.u32 %v1047, %v1048
        %v1053 = vmul.u32 %v1047, %v1049
        %v1054 = vshll.u32 %v1051, 16
        %v1055 = vshrl.u32 %v1051, 16
        %v1056 = vshll.u32 %v1052, 16
        %v1057 = vshrl.u32 %v1052, 16
        %vm1058 = vc.u32 %v1050, %v1054
        %v1059 = vsel %vm1058, 1, 0
        %v1060 = vadd.s32 %v1050, %v1054
        %v1061 = vadd.s32 %v1053, %v1059
        %vm1062 = vc.u32 %v1060, %v1056
        %v1063 = vsel %vm1062, 1, 0
        %v1064 = vadd.s32 %v1060, %v1056
        %v1065 = vadd.s32 %v1061, %v1063
        %v1066 = vadd.s32 %v1065, %v1055
        %v1067 = vadd.s32 %v1066, %v1057
        %v1068 = vand.u32 %v1045, 65535
        %v1069 = vshrl.u32 %v1045, 16
        %v1070 = vand.u32 %v1040, 65535
        %v1071 = vshrl.u32 %v1040, 16
        %v1072 = vmul.u32 %v1068, %v1070
        %v1073 = vmul.u32 %v1068, %v1071
        %v1074 = vmul.u32 %v1069, %v1070
        %v1075 = vmul.u32 %v1069, %v1071
        %v1076 = vshll.u32 %v1073, 16
        %v1077 = vshrl.u32 %v1073, 16
        %v1078 = vshll.u32 %v1074, 16
        %v1079 = vshrl.u32 %v1074, 16
        %vm1080 = vc.u32 %v1072, %v1076
        %v1081 = vsel %vm1080, 1, 0
        %v1082 = vadd.s32 %v1072, %v1076
        %v1083 = vadd.s32 %v1075, %v1081
        %vm1084 = vc.u32 %v1082, %v1078
        %v1085 = vsel %vm1084, 1, 0
        %v1086 = vadd.s32 %v1082, %v1078
        %v1087 = vadd.s32 %v1083, %v1085
        %v1088 = vadd.s32 %v1087, %v1077
        %v1089 = vadd.s32 %v1088, %v1079
        %v1090 = vmul.u32 %v1045, %v1036
        %v1091 = vadd.s32 %v1067, %v1086
        %vm1092 = vc.u32 %v1067, %v1086
        %v1093 = vadd.s32 %v1089, 1
        %v1094 = vsel %vm1092, %v1093, %v1089
        %v1095 = vadd.s32 %v1090, %v1094
        %v1096 = vadd.s32 %v1095, 536870912
        %v1097 = vshrl.u32 %v1096, 30
        %v1098 = vshll.u32 %v1097, 30
        %v1099 = vsub.s32 %v1095, %v1098
        %vm1100 = vcmp.lt.s32.totalorder %v1099, 0
        %v1101 = vsub.s32 0, %v1099
        %v1102 = vsel %vm1100, %v1101, %v1099
        %v1103 = vclz %v1102
        %v1104 = vsub.s32 %v1103, 2
        %vm1105 = vcmp.gt.s32.totalorder 0, %v1104
        %v1106 = vsel %vm1105, 0, %v1104
        %v1107 = vsub.s32 32, %v1106
        %v1108 = vshll.u32 %v1099, %v1106
        %v1109 = vshrl.u32 %v1091, %v1107
        %v1110 = vor.u32 %v1108, %v1109
        %v1111 = vsub.s32 4294967266, %v1106
        %v1112 = vadd.s32 %v1111, 127
        %v1113 = vshll.u32 %v1112, 23
        %v1114 = vor.u32 4788187, %v1113
        %v1115 = vand.u32 2147483647, %v1114
        %v1117 = vcvt.s32.f32 %v1110
        %v1118 = vmul.f32 %v1117, %v1115
        %v1119 = vxor.u32 %v1118, 2147483648
        %v1120 = vsel %vm999, %v1119, %v1118
        %v1121 = vsub.s32 4, %v1097
        %v1122 = vsel %vm999, %v1121, %v1097
        %v1123 = vsel %vm998, %v673, %v1120
        %v1124 = vsel %vm998, 0, %v1122
        %v1125 = vmul.f32 %v1123, %v1123
        %v1126 = vmul.f32 %v1125, -0.001358992
        %v1127 = vadd.f32 %v1126, 0.041655596
        %v1128 = vmul.f32 %v1125, %v1127
        %v1129 = vadd.f32 %v1128, -0.4999988
        %v1130 = vmul.f32 %v1125, %v1129
        %v1131 = vadd.f32 1.0, %v1130
        %v1132 = vmul.f32 %v1123, %v1123
        %v1133 = vmul.f32 %v1132, -0.00019511016
        %v1134 = vadd.f32 %v1133, 0.008332121
        %v1135 = vmul.f32 %v1132, %v1134
        %v1136 = vadd.f32 %v1135, -0.16666654
        %v1137 = vmul.f32 %v1132, %v1136
        %v1138 = vadd.f32 %v1137, 1.0
        %v1139 = vmul.f32 %v1138, %v1123
        %vm1140 = vweird.f32 %v673
        %v1141 = vadd.s32 %v1124, 3
        %v1142 = vand.u32 %v1141, 3
        %vm1143 = vcmp.lt.s32.totalorder %v1142, 2
        %vm1144 = vcmp.eq.s32.totalorder %v1142, 0
        %v1145 = vxor.u32 %v1139, 2147483648
        %v1146 = vsel %vm1144, %v1131, %v1145
        %vm1147 = vcmp.eq.s32.totalorder %v1142, 2
        %v1148 = vxor.u32 %v1131, 2147483648
        %v1149 = vsel %vm1147, %v1148, %v1139
        %v1150 = vsel %vm1143, %v1146, %v1149
        %v1151 = vsel %vm1140, nan, %v1150
        %v1152 = vand.u32 2147483647, %v674
        %vm1153 = vcmp.le.f32.partialorder %v1152, 0.7853982
        %vm1154 = vcmp.lt.s32.totalorder %v674, 0
        %v1155 = vand.u32 %v674, 2139095040
        %v1156 = vshrl.u32 %v1155, 23
        %v1157 = vsub.s32 %v1156, 127
        %v1158 = vand.u32 2147483647, %v674
        %v1159 = vand.u32 %v1158, 8388607
        %v1160 = vor.u32 %v1159, 8388608
        %v1161 = vsub.s32 0, %v1160
        %v1162 = vadd.s32 %v1157, 1
        %vm1163 = vcmp.gt.s32.totalorder %v1162, 0
        %v1164 = vsel %vm1163, %v1162, 0
        %v1165 = vshrl.u32 %v1164, 5
        %v1166 = vand.u32 %v1164, 31
        %v1167 = vsub.s32 32, %v1166
        %v1168 = vshrl.u32 683565275, %v1167
        %v1169 = vshll.u32 683565275, %v1166
        %v1170 = vshrl.u32 2475754826, %v1167
        %v1171 = vor.u32 %v1169, %v1170
        %v1172 = vshll.u32 2475754826, %v1166
        %v1173 = vshrl.u32 2131351028, %v1167
        %v1174 = vor.u32 %v1172, %v1173
        %v1175 = vshll.u32 2131351028, %v1166
        %v1176 = vshrl.u32 2102212464, %v1167
        %v1177 = vor.u32 %v1175, %v1176
        %v1178 = vshll.u32 2102212464, %v1166
        %v1179 = vshrl.u32 920167782, %v1167
        %v1180 = vor.u32 %v1178, %v1179
        %v1181 = vshll.u32 920167782, %v1166
        %v1182 = vshrl.u32 1326507024, %v1167
        %v1183 = vor.u32 %v1181, %v1182
        %vm1184 = vcmp.lt.s32.totalorder %v1165, 1
        %vm1185 = vcmp.lt.s32.totalorder %v1165, 2
        %vm1186 = vcmp.lt.s32.totalorder %v1165, 3
        %vm1187 = vcmp.lt.s32.totalorder %v1165, 4
        %v1188 = vsel %vm1184, %v1168, %v1171
        %v1189 = vsel %vm1187, %v1177, 2102212464
        %v1190 = vsel %vm1186, %v1174, %v1189
        %v1191 = vsel %vm1185, %v1188, %v1190
        %v1192 = vsel %vm1184, %v1171, %v1174
        %v1193 = vsel %vm1187, %v1180, 920167782
        %v1194 = vsel %vm1186, %v1177, %v1193
        %v1195 = vsel %vm1185, %v1192, %v1194
        %v1196 = vsel %vm1184, %v1174, %v1177
        %v1197 = vsel %vm1187, %v1183, 1326507024
        %v1198 = vsel %vm1186, %v1180, %v1197
        %v1199 = vsel %vm1185, %v1196, %v1198
        %v1200 = vshll.u32 %v1160, 8
        %v1201 = vand.u32 %v1200, 65535
        %v1202 = vshrl.u32 %v1200, 16
        %v1203 = vand.u32 %v1199, 65535
        %v1204 = vshrl.u32 %v1199, 16
        %v1205 = vmul.u32 %v1201, %v1203
        %v1206 = vmul.u32 %v1201, %v1204
        %v1207 = vmul.u32 %v1202, %v1203
        %v1208 = vmul.u32 %v1202, %v1204
        %v1209 = vshll.u32 %v1206, 16
        %v1210 = vshrl.u32 %v1206, 16
        %v1211 = vshll.u32 %v1207, 16
        %v1212 = vshrl.u32 %v1207, 16
        %vm1213 = vc.u32 %v1205, %v1209
        %v1214 = vsel %vm1213, 1, 0
        %v1215 = vadd.s32 %v1205, %v1209
        %v1216 = vadd.s32 %v1208, %v1214
        %vm1217 = vc.u32 %v1215, %v1211
        %v1218 = vsel %vm1217, 1, 0
        %v1219 = vadd.s32 %v1215, %v1211
        %v1220 = vadd.s32 %v1216, %v1218
        %v1221 = vadd.s32 %v1220, %v1210
        %v1222 = vadd.s32 %v1221, %v1212
        %v1223 = vand.u32 %v1200, 65535
        %v1224 = vshrl.u32 %v1200, 16
        %v1225 = vand.u32 %v1195, 65535
        %v1226 = vshrl.u32 %v1195, 16
        %v1227 = vmul.u32 %v1223, %v1225
        %v1228 = vmul.u32 %v1223, %v1226
        %v1229 = vmul.u32 %v1224, %v1225
        %v1230 = vmul.u32 %v1224, %v1226
        %v1231 = vshll.u32 %v1228, 16
        %v1232 = vshrl.u32 %v1228, 16
        %v1233 = vshll.u32 %v1229, 16
        %v1234 = vshrl.u32 %v1229, 16
        %vm1235 = vc.u32 %v1227, %v1231
        %v1236 = vsel %vm1235, 1, 0
        %v1237 = vadd.s32 %v1227, %v1231
        %v1238 = vadd.s32 %v1230, %v1236
        %vm1239 = vc.u32 %v1237, %v1233
        %v1240 = vsel %vm1239, 1, 0
        %v1241 = vadd.s32 %v1237, %v1233
        %v1242 = vadd.s32 %v1238, %v1240
        %v1243 = vadd.s32 %v1242, %v1232
        %v1244 = vadd.s32 %v1243, %v1234
        %v1245 = vmul.u32 %v1200, %v1191
        %v1246 = vadd.s32 %v1222, %v1241
        %vm1247 = vc.u32 %v1222, %v1241
        %v1248 = vadd.s32 %v1244, 1
        %v1249 = vsel %vm1247, %v1248, %v1244
        %v1250 = vadd.s32 %v1245, %v1249
        %v1251 = vadd.s32 %v1250, 536870912
        %v1252 = vshrl.u32 %v1251, 30
        %v1253 = vshll.u32 %v1252, 30
        %v1254 = vsub.s32 %v1250, %v1253
        %vm1255 = vcmp.lt.s32.totalorder %v1254, 0
        %v1256 = vsub.s32 0, %v1254
        %v1257 = vsel %vm1255, %v1256, %v1254
        %v1258 = vclz %v1257
        %v1259 = vsub.s32 %v1258, 2
        %vm1260 = vcmp.gt.s32.totalorder 0, %v1259
        %v1261 = vsel %vm1260, 0, %v1259
        %v1262 = vsub.s32 32, %v1261
        %v1263 = vshll.u32 %v1254, %v1261
        %v1264 = vshrl.u32 %v1246, %v1262
        %v1265 = vor.u32 %v1263, %v1264
        %v1266 = vsub.s32 4294967266, %v1261
        %v1267 = vadd.s32 %v1266, 127
        %v1268 = vshll.u32 %v1267, 23
        %v1269 = vor.u32 4788187, %v1268
        %v1270 = vand.u32 2147483647, %v1269
        %v1272 = vcvt.s32.f32 %v1265
        %v1273 = vmul.f32 %v1272, %v1270
        %v1274 = vxor.u32 %v1273, 2147483648
        %v1275 = vsel %vm1154, %v1274, %v1273
        %v1276 = vsub.s32 4, %v1252
        %v1277 = vsel %vm1154, %v1276, %v1252
        %v1278 = vsel %vm1153, %v674, %v1275
        %v1279 = vsel %vm1153, 0, %v1277
        %v1280 = vmul.f32 %v1278, %v1278
        %v1281 = vmul.f32 %v1280, -0.001358992
        %v1282 = vadd.f32 %v1281, 0.041655596
        %v1283 = vmul.f32 %v1280, %v1282
        %v1284 = vadd.f32 %v1283, -0.4999988
        %v1285 = vmul.f32 %v1280, %v1284
        %v1286 = vadd.f32 1.0, %v1285
        %v1287 = vmul.f32 %v1278, %v1278
        %v1288 = vmul.f32 %v1287, -0.00019511016
        %v1289 = vadd.f32 %v1288, 0.008332121
        %v1290 = vmul.f32 %v1287, %v1289
        %v1291 = vadd.f32 %v1290, -0.16666654
        %v1292 = vmul.f32 %v1287, %v1291
        %v1293 = vadd.f32 %v1292, 1.0
        %v1294 = vmul.f32 %v1293, %v1278
        %vm1295 = vweird.f32 %v674
        %v1296 = vadd.s32 %v1279, 3
        %v1297 = vand.u32 %v1296, 3
        %vm1298 = vcmp.lt.s32.totalorder %v1297, 2
        %vm1299 = vcmp.eq.s32.totalorder %v1297, 0
        %v1300 = vxor.u32 %v1294, 2147483648
        %v1301 = vsel %vm1299, %v1286, %v1300
        %vm1302 = vcmp.eq.s32.totalorder %v1297, 2
        %v1303 = vxor.u32 %v1286, 2147483648
        %v1304 = vsel %vm1302, %v1303, %v1294
        %v1305 = vsel %vm1298, %v1301, %v1304
        %v1306 = vsel %vm1295, nan, %v1305
        %v1307 = vand.u32 2147483647, %v675
        %vm1308 = vcmp.le.f32.partialorder %v1307, 0.7853982
        %vm1309 = vcmp.lt.s32.totalorder %v675, 0
        %v1310 = vand.u32 %v675, 2139095040
        %v1311 = vshrl.u32 %v1310, 23
        %v1312 = vsub.s32 %v1311, 127
        %v1313 = vand.u32 2147483647, %v675
        %v1314 = vand.u32 %v1313, 8388607
        %v1315 = vor.u32 %v1314, 8388608
        %v1316 = vsub.s32 0, %v1315
        %v1317 = vadd.s32 %v1312, 1
        %vm1318 = vcmp.gt.s32.totalorder %v1317, 0
        %v1319 = vsel %vm1318, %v1317, 0
        %v1320 = vshrl.u32 %v1319, 5
        %v1321 = vand.u32 %v1319, 31
        %v1322 = vsub.s32 32, %v1321
        %v1323 = vshrl.u32 683565275, %v1322
        %v1324 = vshll.u32 683565275, %v1321
        %v1325 = vshrl.u32 2475754826, %v1322
        %v1326 = vor.u32 %v1324, %v1325
        %v1327 = vshll.u32 2475754826, %v1321
        %v1328 = vshrl.u32 2131351028, %v1322
        %v1329 = vor.u32 %v1327, %v1328
        %v1330 = vshll.u32 2131351028, %v1321
        %v1331 = vshrl.u32 2102212464, %v1322
        %v1332 = vor.u32 %v1330, %v1331
        %v1333 = vshll.u32 2102212464, %v1321
        %v1334 = vshrl.u32 920167782, %v1322
        %v1335 = vor.u32 %v1333, %v1334
        %v1336 = vshll.u32 920167782, %v1321
        %v1337 = vshrl.u32 1326507024, %v1322
        %v1338 = vor.u32 %v1336, %v1337
        %vm1339 = vcmp.lt.s32.totalorder %v1320, 1
        %vm1340 = vcmp.lt.s32.totalorder %v1320, 2
        %vm1341 = vcmp.lt.s32.totalorder %v1320, 3
        %vm1342 = vcmp.lt.s32.totalorder %v1320, 4
        %v1343 = vsel %vm1339, %v1323, %v1326
        %v1344 = vsel %vm1342, %v1332, 2102212464
        %v1345 = vsel %vm1341, %v1329, %v1344
        %v1346 = vsel %vm1340, %v1343, %v1345
        %v1347 = vsel %vm1339, %v1326, %v1329
        %v1348 = vsel %vm1342, %v1335, 920167782
        %v1349 = vsel %vm1341, %v1332, %v1348
        %v1350 = vsel %vm1340, %v1347, %v1349
        %v1351 = vsel %vm1339, %v1329, %v1332
        %v1352 = vsel %vm1342, %v1338, 1326507024
        %v1353 = vsel %vm1341, %v1335, %v1352
        %v1354 = vsel %vm1340, %v1351, %v1353
        %v1355 = vshll.u32 %v1315, 8
        %v1356 = vand.u32 %v1355, 65535
        %v1357 = vshrl.u32 %v1355, 16
        %v1358 = vand.u32 %v1354, 65535
        %v1359 = vshrl.u32 %v1354, 16
        %v1360 = vmul.u32 %v1356, %v1358
        %v1361 = vmul.u32 %v1356, %v1359
        %v1362 = vmul.u32 %v1357, %v1358
        %v1363 = vmul.u32 %v1357, %v1359
        %v1364 = vshll.u32 %v1361, 16
        %v1365 = vshrl.u32 %v1361, 16
        %v1366 = vshll.u32 %v1362, 16
        %v1367 = vshrl.u32 %v1362, 16
        %vm1368 = vc.u32 %v1360, %v1364
        %v1369 = vsel %vm1368, 1, 0
        %v1370 = vadd.s32 %v1360, %v1364
        %v1371 = vadd.s32 %v1363, %v1369
        %vm1372 = vc.u32 %v1370, %v1366
        %v1373 = vsel %vm1372, 1, 0
        %v1374 = vadd.s32 %v1370, %v1366
        %v1375 = vadd.s32 %v1371, %v1373
        %v1376 = vadd.s32 %v1375, %v1365
        %v1377 = vadd.s32 %v1376, %v1367
        %v1378 = vand.u32 %v1355, 65535
        %v1379 = vshrl.u32 %v1355, 16
        %v1380 = vand.u32 %v1350, 65535
        %v1381 = vshrl.u32 %v1350, 16
        %v1382 = vmul.u32 %v1378, %v1380
        %v1383 = vmul.u32 %v1378, %v1381
        %v1384 = vmul.u32 %v1379, %v1380
        %v1385 = vmul.u32 %v1379, %v1381
        %v1386 = vshll.u32 %v1383, 16
        %v1387 = vshrl.u32 %v1383, 16
        %v1388 = vshll.u32 %v1384, 16
        %v1389 = vshrl.u32 %v1384, 16
        %vm1390 = vc.u32 %v1382, %v1386
        %v1391 = vsel %vm1390, 1, 0
        %v1392 = vadd.s32 %v1382, %v1386
        %v1393 = vadd.s32 %v1385, %v1391
        %vm1394 = vc.u32 %v1392, %v1388
        %v1395 = vsel %vm1394, 1, 0
        %v1396 = vadd.s32 %v1392, %v1388
        %v1397 = vadd.s32 %v1393, %v1395
        %v1398 = vadd.s32 %v1397, %v1387
        %v1399 = vadd.s32 %v1398, %v1389
        %v1400 = vmul.u32 %v1355, %v1346
        %v1401 = vadd.s32 %v1377, %v1396
        %vm1402 = vc.u32 %v1377, %v1396
        %v1403 = vadd.s32 %v1399, 1
        %v1404 = vsel %vm1402, %v1403, %v1399
        %v1405 = vadd.s32 %v1400, %v1404
        %v1406 = vadd.s32 %v1405, 536870912
        %v1407 = vshrl.u32 %v1406, 30
        %v1408 = vshll.u32 %v1407, 30
        %v1409 = vsub.s32 %v1405, %v1408
        %vm1410 = vcmp.lt.s32.totalorder %v1409, 0
        %v1411 = vsub.s32 0, %v1409
        %v1412 = vsel %vm1410, %v1411, %v1409
        %v1413 = vclz %v1412
        %v1414 = vsub.s32 %v1413, 2
        %vm1415 = vcmp.gt.s32.totalorder 0, %v1414
        %v1416 = vsel %vm1415, 0, %v1414
        %v1417 = vsub.s32 32, %v1416
        %v1418 = vshll.u32 %v1409, %v1416
        %v1419 = vshrl.u32 %v1401, %v1417
        %v1420 = vor.u32 %v1418, %v1419
        %v1421 = vsub.s32 4294967266, %v1416
        %v1422 = vadd.s32 %v1421, 127
        %v1423 = vshll.u32 %v1422, 23
        %v1424 = vor.u32 4788187, %v1423
        %v1425 = vand.u32 2147483647, %v1424
        %v1427 = vcvt.s32.f32 %v1420
        %v1428 = vmul.f32 %v1427, %v1425
        %v1429 = vxor.u32 %v1428, 2147483648
        %v1430 = vsel %vm1309, %v1429, %v1428
        %v1431 = vsub.s32 4, %v1407
        %v1432 = vsel %vm1309, %v1431, %v1407
        %v1433 = vsel %vm1308, %v675, %v1430
        %v1434 = vsel %vm1308, 0, %v1432
        %v1435 = vmul.f32 %v1433, %v1433
        %v1436 = vmul.f32 %v1435, -0.001358992
        %v1437 = vadd.f32 %v1436, 0.041655596
        %v1438 = vmul.f32 %v1435, %v1437
        %v1439 = vadd.f32 %v1438, -0.4999988
        %v1440 = vmul.f32 %v1435, %v1439
        %v1441 = vadd.f32 1.0, %v1440
        %v1442 = vmul.f32 %v1433, %v1433
        %v1443 = vmul.f32 %v1442, -0.00019511016
        %v1444 = vadd.f32 %v1443, 0.008332121
        %v1445 = vmul.f32 %v1442, %v1444
        %v1446 = vadd.f32 %v1445, -0.16666654
        %v1447 = vmul.f32 %v1442, %v1446
        %v1448 = vadd.f32 %v1447, 1.0
        %v1449 = vmul.f32 %v1448, %v1433
        %vm1450 = vweird.f32 %v675
        %v1451 = vadd.s32 %v1434, 3
        %v1452 = vand.u32 %v1451, 3
        %vm1453 = vcmp.lt.s32.totalorder %v1452, 2
        %vm1454 = vcmp.eq.s32.totalorder %v1452, 0
        %v1455 = vxor.u32 %v1449, 2147483648
        %v1456 = vsel %vm1454, %v1441, %v1455
        %vm1457 = vcmp.eq.s32.totalorder %v1452, 2
        %v1458 = vxor.u32 %v1441, 2147483648
        %v1459 = vsel %vm1457, %v1458, %v1449
        %v1460 = vsel %vm1453, %v1456, %v1459
        %v1461 = vsel %vm1450, nan, %v1460
        %v1462 = vand.u32 2147483647, %v676
        %vm1463 = vcmp.le.f32.partialorder %v1462, 0.7853982
        %vm1464 = vcmp.lt.s32.totalorder %v676, 0
        %v1465 = vand.u32 %v676, 2139095040
        %v1466 = vshrl.u32 %v1465, 23
        %v1467 = vsub.s32 %v1466, 127
        %v1468 = vand.u32 2147483647, %v676
        %v1469 = vand.u32 %v1468, 8388607
        %v1470 = vor.u32 %v1469, 8388608
        %v1471 = vsub.s32 0, %v1470
        %v1472 = vadd.s32 %v1467, 1
        %vm1473 = vcmp.gt.s32.totalorder %v1472, 0
        %v1474 = vsel %vm1473, %v1472, 0
        %v1475 = vshrl.u32 %v1474, 5
        %v1476 = vand.u32 %v1474, 31
        %v1477 = vsub.s32 32, %v1476
        %v1478 = vshrl.u32 683565275, %v1477
        %v1479 = vshll.u32 683565275, %v1476
        %v1480 = vshrl.u32 2475754826, %v1477
        %v1481 = vor.u32 %v1479, %v1480
        %v1482 = vshll.u32 2475754826, %v1476
        %v1483 = vshrl.u32 2131351028, %v1477
        %v1484 = vor.u32 %v1482, %v1483
        %v1485 = vshll.u32 2131351028, %v1476
        %v1486 = vshrl.u32 2102212464, %v1477
        %v1487 = vor.u32 %v1485, %v1486
        %v1488 = vshll.u32 2102212464, %v1476
        %v1489 = vshrl.u32 920167782, %v1477
        %v1490 = vor.u32 %v1488, %v1489
        %v1491 = vshll.u32 920167782, %v1476
        %v1492 = vshrl.u32 1326507024, %v1477
        %v1493 = vor.u32 %v1491, %v1492
        %vm1494 = vcmp.lt.s32.totalorder %v1475, 1
        %vm1495 = vcmp.lt.s32.totalorder %v1475, 2
        %vm1496 = vcmp.lt.s32.totalorder %v1475, 3
        %vm1497 = vcmp.lt.s32.totalorder %v1475, 4
        %v1498 = vsel %vm1494, %v1478, %v1481
        %v1499 = vsel %vm1497, %v1487, 2102212464
        %v1500 = vsel %vm1496, %v1484, %v1499
        %v1501 = vsel %vm1495, %v1498, %v1500
        %v1502 = vsel %vm1494, %v1481, %v1484
        %v1503 = vsel %vm1497, %v1490, 920167782
        %v1504 = vsel %vm1496, %v1487, %v1503
        %v1505 = vsel %vm1495, %v1502, %v1504
        %v1506 = vsel %vm1494, %v1484, %v1487
        %v1507 = vsel %vm1497, %v1493, 1326507024
        %v1508 = vsel %vm1496, %v1490, %v1507
        %v1509 = vsel %vm1495, %v1506, %v1508
        %v1510 = vshll.u32 %v1470, 8
        %v1511 = vand.u32 %v1510, 65535
        %v1512 = vshrl.u32 %v1510, 16
        %v1513 = vand.u32 %v1509, 65535
        %v1514 = vshrl.u32 %v1509, 16
        %v1515 = vmul.u32 %v1511, %v1513
        %v1516 = vmul.u32 %v1511, %v1514
        %v1517 = vmul.u32 %v1512, %v1513
        %v1518 = vmul.u32 %v1512, %v1514
        %v1519 = vshll.u32 %v1516, 16
        %v1520 = vshrl.u32 %v1516, 16
        %v1521 = vshll.u32 %v1517, 16
        %v1522 = vshrl.u32 %v1517, 16
        %vm1523 = vc.u32 %v1515, %v1519
        %v1524 = vsel %vm1523, 1, 0
        %v1525 = vadd.s32 %v1515, %v1519
        %v1526 = vadd.s32 %v1518, %v1524
        %vm1527 = vc.u32 %v1525, %v1521
        %v1528 = vsel %vm1527, 1, 0
        %v1529 = vadd.s32 %v1525, %v1521
        %v1530 = vadd.s32 %v1526, %v1528
        %v1531 = vadd.s32 %v1530, %v1520
        %v1532 = vadd.s32 %v1531, %v1522
        %v1533 = vand.u32 %v1510, 65535
        %v1534 = vshrl.u32 %v1510, 16
        %v1535 = vand.u32 %v1505, 65535
        %v1536 = vshrl.u32 %v1505, 16
        %v1537 = vmul.u32 %v1533, %v1535
        %v1538 = vmul.u32 %v1533, %v1536
        %v1539 = vmul.u32 %v1534, %v1535
        %v1540 = vmul.u32 %v1534, %v1536
        %v1541 = vshll.u32 %v1538, 16
        %v1542 = vshrl.u32 %v1538, 16
        %v1543 = vshll.u32 %v1539, 16
        %v1544 = vshrl.u32 %v1539, 16
        %vm1545 = vc.u32 %v1537, %v1541
        %v1546 = vsel %vm1545, 1, 0
        %v1547 = vadd.s32 %v1537, %v1541
        %v1548 = vadd.s32 %v1540, %v1546
        %vm1549 = vc.u32 %v1547, %v1543
        %v1550 = vsel %vm1549, 1, 0
        %v1551 = vadd.s32 %v1547, %v1543
        %v1552 = vadd.s32 %v1548, %v1550
        %v1553 = vadd.s32 %v1552, %v1542
        %v1554 = vadd.s32 %v1553, %v1544
        %v1555 = vmul.u32 %v1510, %v1501
        %v1556 = vadd.s32 %v1532, %v1551
        %vm1557 = vc.u32 %v1532, %v1551
        %v1558 = vadd.s32 %v1554, 1
        %v1559 = vsel %vm1557, %v1558, %v1554
        %v1560 = vadd.s32 %v1555, %v1559
        %v1561 = vadd.s32 %v1560, 536870912
        %v1562 = vshrl.u32 %v1561, 30
        %v1563 = vshll.u32 %v1562, 30
        %v1564 = vsub.s32 %v1560, %v1563
        %vm1565 = vcmp.lt.s32.totalorder %v1564, 0
        %v1566 = vsub.s32 0, %v1564
        %v1567 = vsel %vm1565, %v1566, %v1564
        %v1568 = vclz %v1567
        %v1569 = vsub.s32 %v1568, 2
        %vm1570 = vcmp.gt.s32.totalorder 0, %v1569
        %v1571 = vsel %vm1570, 0, %v1569
        %v1572 = vsub.s32 32, %v1571
        %v1573 = vshll.u32 %v1564, %v1571
        %v1574 = vshrl.u32 %v1556, %v1572
        %v1575 = vor.u32 %v1573, %v1574
        %v1576 = vsub.s32 4294967266, %v1571
        %v1577 = vadd.s32 %v1576, 127
        %v1578 = vshll.u32 %v1577, 23
        %v1579 = vor.u32 4788187, %v1578
        %v1580 = vand.u32 2147483647, %v1579
        %v1582 = vcvt.s32.f32 %v1575
        %v1583 = vmul.f32 %v1582, %v1580
        %v1584 = vxor.u32 %v1583, 2147483648
        %v1585 = vsel %vm1464, %v1584, %v1583
        %v1586 = vsub.s32 4, %v1562
        %v1587 = vsel %vm1464, %v1586, %v1562
        %v1588 = vsel %vm1463, %v676, %v1585
        %v1589 = vsel %vm1463, 0, %v1587
        %v1590 = vmul.f32 %v1588, %v1588
        %v1591 = vmul.f32 %v1590, -0.001358992
        %v1592 = vadd.f32 %v1591, 0.041655596
        %v1593 = vmul.f32 %v1590, %v1592
        %v1594 = vadd.f32 %v1593, -0.4999988
        %v1595 = vmul.f32 %v1590, %v1594
        %v1596 = vadd.f32 1.0, %v1595
        %v1597 = vmul.f32 %v1588, %v1588
        %v1598 = vmul.f32 %v1597, -0.00019511016
        %v1599 = vadd.f32 %v1598, 0.008332121
        %v1600 = vmul.f32 %v1597, %v1599
        %v1601 = vadd.f32 %v1600, -0.16666654
        %v1602 = vmul.f32 %v1597, %v1601
        %v1603 = vadd.f32 %v1602, 1.0
        %v1604 = vmul.f32 %v1603, %v1588
        %vm1605 = vweird.f32 %v676
        %v1606 = vadd.s32 %v1589, 3
        %v1607 = vand.u32 %v1606, 3
        %vm1608 = vcmp.lt.s32.totalorder %v1607, 2
        %vm1609 = vcmp.eq.s32.totalorder %v1607, 0
        %v1610 = vxor.u32 %v1604, 2147483648
        %v1611 = vsel %vm1609, %v1596, %v1610
        %vm1612 = vcmp.eq.s32.totalorder %v1607, 2
        %v1613 = vxor.u32 %v1596, 2147483648
        %v1614 = vsel %vm1612, %v1613, %v1604
        %v1615 = vsel %vm1608, %v1611, %v1614
        %v1616 = vsel %vm1605, nan, %v1615
        %v1617 = vand.u32 2147483647, %v677
        %vm1618 = vcmp.le.f32.partialorder %v1617, 0.7853982
        %vm1619 = vcmp.lt.s32.totalorder %v677, 0
        %v1620 = vand.u32 %v677, 2139095040
        %v1621 = vshrl.u32 %v1620, 23
        %v1622 = vsub.s32 %v1621, 127
        %v1623 = vand.u32 2147483647, %v677
        %v1624 = vand.u32 %v1623, 8388607
        %v1625 = vor.u32 %v1624, 8388608
        %v1626 = vsub.s32 0, %v1625
        %v1627 = vadd.s32 %v1622, 1
        %vm1628 = vcmp.gt.s32.totalorder %v1627, 0
        %v1629 = vsel %vm1628, %v1627, 0
        %v1630 = vshrl.u32 %v1629, 5
        %v1631 = vand.u32 %v1629, 31
        %v1632 = vsub.s32 32, %v1631
        %v1633 = vshrl.u32 683565275, %v1632
        %v1634 = vshll.u32 683565275, %v1631
        %v1635 = vshrl.u32 2475754826, %v1632
        %v1636 = vor.u32 %v1634, %v1635
        %v1637 = vshll.u32 2475754826, %v1631
        %v1638 = vshrl.u32 2131351028, %v1632
        %v1639 = vor.u32 %v1637, %v1638
        %v1640 = vshll.u32 2131351028, %v1631
        %v1641 = vshrl.u32 2102212464, %v1632
        %v1642 = vor.u32 %v1640, %v1641
        %v1643 = vshll.u32 2102212464, %v1631
        %v1644 = vshrl.u32 920167782, %v1632
        %v1645 = vor.u32 %v1643, %v1644
        %v1646 = vshll.u32 920167782, %v1631
        %v1647 = vshrl.u32 1326507024, %v1632
        %v1648 = vor.u32 %v1646, %v1647
        %vm1649 = vcmp.lt.s32.totalorder %v1630, 1
        %vm1650 = vcmp.lt.s32.totalorder %v1630, 2
        %vm1651 = vcmp.lt.s32.totalorder %v1630, 3
        %vm1652 = vcmp.lt.s32.totalorder %v1630, 4
        %v1653 = vsel %vm1649, %v1633, %v1636
        %v1654 = vsel %vm1652, %v1642, 2102212464
        %v1655 = vsel %vm1651, %v1639, %v1654
        %v1656 = vsel %vm1650, %v1653, %v1655
        %v1657 = vsel %vm1649, %v1636, %v1639
        %v1658 = vsel %vm1652, %v1645, 920167782
        %v1659 = vsel %vm1651, %v1642, %v1658
        %v1660 = vsel %vm1650, %v1657, %v1659
        %v1661 = vsel %vm1649, %v1639, %v1642
        %v1662 = vsel %vm1652, %v1648, 1326507024
        %v1663 = vsel %vm1651, %v1645, %v1662
        %v1664 = vsel %vm1650, %v1661, %v1663
        %v1665 = vshll.u32 %v1625, 8
        %v1666 = vand.u32 %v1665, 65535
        %v1667 = vshrl.u32 %v1665, 16
        %v1668 = vand.u32 %v1664, 65535
        %v1669 = vshrl.u32 %v1664, 16
        %v1670 = vmul.u32 %v1666, %v1668
        %v1671 = vmul.u32 %v1666, %v1669
        %v1672 = vmul.u32 %v1667, %v1668
        %v1673 = vmul.u32 %v1667, %v1669
        %v1674 = vshll.u32 %v1671, 16
        %v1675 = vshrl.u32 %v1671, 16
        %v1676 = vshll.u32 %v1672, 16
        %v1677 = vshrl.u32 %v1672, 16
        %vm1678 = vc.u32 %v1670, %v1674
        %v1679 = vsel %vm1678, 1, 0
        %v1680 = vadd.s32 %v1670, %v1674
        %v1681 = vadd.s32 %v1673, %v1679
        %vm1682 = vc.u32 %v1680, %v1676
        %v1683 = vsel %vm1682, 1, 0
        %v1684 = vadd.s32 %v1680, %v1676
        %v1685 = vadd.s32 %v1681, %v1683
        %v1686 = vadd.s32 %v1685, %v1675
        %v1687 = vadd.s32 %v1686, %v1677
        %v1688 = vand.u32 %v1665, 65535
        %v1689 = vshrl.u32 %v1665, 16
        %v1690 = vand.u32 %v1660, 65535
        %v1691 = vshrl.u32 %v1660, 16
        %v1692 = vmul.u32 %v1688, %v1690
        %v1693 = vmul.u32 %v1688, %v1691
        %v1694 = vmul.u32 %v1689, %v1690
        %v1695 = vmul.u32 %v1689, %v1691
        %v1696 = vshll.u32 %v1693, 16
        %v1697 = vshrl.u32 %v1693, 16
        %v1698 = vshll.u32 %v1694, 16
        %v1699 = vshrl.u32 %v1694, 16
        %vm1700 = vc.u32 %v1692, %v1696
        %v1701 = vsel %vm1700, 1, 0
        %v1702 = vadd.s32 %v1692, %v1696
        %v1703 = vadd.s32 %v1695, %v1701
        %vm1704 = vc.u32 %v1702, %v1698
        %v1705 = vsel %vm1704, 1, 0
        %v1706 = vadd.s32 %v1702, %v1698
        %v1707 = vadd.s32 %v1703, %v1705
        %v1708 = vadd.s32 %v1707, %v1697
        %v1709 = vadd.s32 %v1708, %v1699
        %v1710 = vmul.u32 %v1665, %v1656
        %v1711 = vadd.s32 %v1687, %v1706
        %vm1712 = vc.u32 %v1687, %v1706
        %v1713 = vadd.s32 %v1709, 1
        %v1714 = vsel %vm1712, %v1713, %v1709
        %v1715 = vadd.s32 %v1710, %v1714
        %v1716 = vadd.s32 %v1715, 536870912
        %v1717 = vshrl.u32 %v1716, 30
        %v1718 = vshll.u32 %v1717, 30
        %v1719 = vsub.s32 %v1715, %v1718
        %vm1720 = vcmp.lt.s32.totalorder %v1719, 0
        %v1721 = vsub.s32 0, %v1719
        %v1722 = vsel %vm1720, %v1721, %v1719
        %v1723 = vclz %v1722
        %v1724 = vsub.s32 %v1723, 2
        %vm1725 = vcmp.gt.s32.totalorder 0, %v1724
        %v1726 = vsel %vm1725, 0, %v1724
        %v1727 = vsub.s32 32, %v1726
        %v1728 = vshll.u32 %v1719, %v1726
        %v1729 = vshrl.u32 %v1711, %v1727
        %v1730 = vor.u32 %v1728, %v1729
        %v1731 = vsub.s32 4294967266, %v1726
        %v1732 = vadd.s32 %v1731, 127
        %v1733 = vshll.u32 %v1732, 23
        %v1734 = vor.u32 4788187, %v1733
        %v1735 = vand.u32 2147483647, %v1734
        %v1737 = vcvt.s32.f32 %v1730
        %v1738 = vmul.f32 %v1737, %v1735
        %v1739 = vxor.u32 %v1738, 2147483648
        %v1740 = vsel %vm1619, %v1739, %v1738
        %v1741 = vsub.s32 4, %v1717
        %v1742 = vsel %vm1619, %v1741, %v1717
        %v1743 = vsel %vm1618, %v677, %v1740
        %v1744 = vsel %vm1618, 0, %v1742
        %v1745 = vmul.f32 %v1743, %v1743
        %v1746 = vmul.f32 %v1745, -0.001358992
        %v1747 = vadd.f32 %v1746, 0.041655596
        %v1748 = vmul.f32 %v1745, %v1747
        %v1749 = vadd.f32 %v1748, -0.4999988
        %v1750 = vmul.f32 %v1745, %v1749
        %v1751 = vadd.f32 1.0, %v1750
        %v1752 = vmul.f32 %v1743, %v1743
        %v1753 = vmul.f32 %v1752, -0.00019511016
        %v1754 = vadd.f32 %v1753, 0.008332121
        %v1755 = vmul.f32 %v1752, %v1754
        %v1756 = vadd.f32 %v1755, -0.16666654
        %v1757 = vmul.f32 %v1752, %v1756
        %v1758 = vadd.f32 %v1757, 1.0
        %v1759 = vmul.f32 %v1758, %v1743
        %vm1760 = vweird.f32 %v677
        %v1761 = vadd.s32 %v1744, 3
        %v1762 = vand.u32 %v1761, 3
        %vm1763 = vcmp.lt.s32.totalorder %v1762, 2
        %vm1764 = vcmp.eq.s32.totalorder %v1762, 0
        %v1765 = vxor.u32 %v1759, 2147483648
        %v1766 = vsel %vm1764, %v1751, %v1765
        %vm1767 = vcmp.eq.s32.totalorder %v1762, 2
        %v1768 = vxor.u32 %v1751, 2147483648
        %v1769 = vsel %vm1767, %v1768, %v1759
        %v1770 = vsel %vm1763, %v1766, %v1769
        %v1771 = vsel %vm1760, nan, %v1770
        %v1772 = vand.u32 2147483647, %v678
        %vm1773 = vcmp.le.f32.partialorder %v1772, 0.7853982
        %vm1774 = vcmp.lt.s32.totalorder %v678, 0
        %v1775 = vand.u32 %v678, 2139095040
        %v1776 = vshrl.u32 %v1775, 23
        %v1777 = vsub.s32 %v1776, 127
        %v1778 = vand.u32 2147483647, %v678
        %v1779 = vand.u32 %v1778, 8388607
        %v1780 = vor.u32 %v1779, 8388608
        %v1781 = vsub.s32 0, %v1780
        %v1782 = vadd.s32 %v1777, 1
        %vm1783 = vcmp.gt.s32.totalorder %v1782, 0
        %v1784 = vsel %vm1783, %v1782, 0
        %v1785 = vshrl.u32 %v1784, 5
        %v1786 = vand.u32 %v1784, 31
        %v1787 = vsub.s32 32, %v1786
        %v1788 = vshrl.u32 683565275, %v1787
        %v1789 = vshll.u32 683565275, %v1786
        %v1790 = vshrl.u32 2475754826, %v1787
        %v1791 = vor.u32 %v1789, %v1790
        %v1792 = vshll.u32 2475754826, %v1786
        %v1793 = vshrl.u32 2131351028, %v1787
        %v1794 = vor.u32 %v1792, %v1793
        %v1795 = vshll.u32 2131351028, %v1786
        %v1796 = vshrl.u32 2102212464, %v1787
        %v1797 = vor.u32 %v1795, %v1796
        %v1798 = vshll.u32 2102212464, %v1786
        %v1799 = vshrl.u32 920167782, %v1787
        %v1800 = vor.u32 %v1798, %v1799
        %v1801 = vshll.u32 920167782, %v1786
        %v1802 = vshrl.u32 1326507024, %v1787
        %v1803 = vor.u32 %v1801, %v1802
        %vm1804 = vcmp.lt.s32.totalorder %v1785, 1
        %vm1805 = vcmp.lt.s32.totalorder %v1785, 2
        %vm1806 = vcmp.lt.s32.totalorder %v1785, 3
        %vm1807 = vcmp.lt.s32.totalorder %v1785, 4
        %v1808 = vsel %vm1804, %v1788, %v1791
        %v1809 = vsel %vm1807, %v1797, 2102212464
        %v1810 = vsel %vm1806, %v1794, %v1809
        %v1811 = vsel %vm1805, %v1808, %v1810
        %v1812 = vsel %vm1804, %v1791, %v1794
        %v1813 = vsel %vm1807, %v1800, 920167782
        %v1814 = vsel %vm1806, %v1797, %v1813
        %v1815 = vsel %vm1805, %v1812, %v1814
        %v1816 = vsel %vm1804, %v1794, %v1797
        %v1817 = vsel %vm1807, %v1803, 1326507024
        %v1818 = vsel %vm1806, %v1800, %v1817
        %v1819 = vsel %vm1805, %v1816, %v1818
        %v1820 = vshll.u32 %v1780, 8
        %v1821 = vand.u32 %v1820, 65535
        %v1822 = vshrl.u32 %v1820, 16
        %v1823 = vand.u32 %v1819, 65535
        %v1824 = vshrl.u32 %v1819, 16
        %v1825 = vmul.u32 %v1821, %v1823
        %v1826 = vmul.u32 %v1821, %v1824
        %v1827 = vmul.u32 %v1822, %v1823
        %v1828 = vmul.u32 %v1822, %v1824
        %v1829 = vshll.u32 %v1826, 16
        %v1830 = vshrl.u32 %v1826, 16
        %v1831 = vshll.u32 %v1827, 16
        %v1832 = vshrl.u32 %v1827, 16
        %vm1833 = vc.u32 %v1825, %v1829
        %v1834 = vsel %vm1833, 1, 0
        %v1835 = vadd.s32 %v1825, %v1829
        %v1836 = vadd.s32 %v1828, %v1834
        %vm1837 = vc.u32 %v1835, %v1831
        %v1838 = vsel %vm1837, 1, 0
        %v1839 = vadd.s32 %v1835, %v1831
        %v1840 = vadd.s32 %v1836, %v1838
        %v1841 = vadd.s32 %v1840, %v1830
        %v1842 = vadd.s32 %v1841, %v1832
        %v1843 = vand.u32 %v1820, 65535
        %v1844 = vshrl.u32 %v1820, 16
        %v1845 = vand.u32 %v1815, 65535
        %v1846 = vshrl.u32 %v1815, 16
        %v1847 = vmul.u32 %v1843, %v1845
        %v1848 = vmul.u32 %v1843, %v1846
        %v1849 = vmul.u32 %v1844, %v1845
        %v1850 = vmul.u32 %v1844, %v1846
        %v1851 = vshll.u32 %v1848, 16
        %v1852 = vshrl.u32 %v1848, 16
        %v1853 = vshll.u32 %v1849, 16
        %v1854 = vshrl.u32 %v1849, 16
        %vm1855 = vc.u32 %v1847, %v1851
        %v1856 = vsel %vm1855, 1, 0
        %v1857 = vadd.s32 %v1847, %v1851
        %v1858 = vadd.s32 %v1850, %v1856
        %vm1859 = vc.u32 %v1857, %v1853
        %v1860 = vsel %vm1859, 1, 0
        %v1861 = vadd.s32 %v1857, %v1853
        %v1862 = vadd.s32 %v1858, %v1860
        %v1863 = vadd.s32 %v1862, %v1852
        %v1864 = vadd.s32 %v1863, %v1854
        %v1865 = vmul.u32 %v1820, %v1811
        %v1866 = vadd.s32 %v1842, %v1861
        %vm1867 = vc.u32 %v1842, %v1861
        %v1868 = vadd.s32 %v1864, 1
        %v1869 = vsel %vm1867, %v1868, %v1864
        %v1870 = vadd.s32 %v1865, %v1869
        %v1871 = vadd.s32 %v1870, 536870912
        %v1872 = vshrl.u32 %v1871, 30
        %v1873 = vshll.u32 %v1872, 30
        %v1874 = vsub.s32 %v1870, %v1873
        %vm1875 = vcmp.lt.s32.totalorder %v1874, 0
        %v1876 = vsub.s32 0, %v1874
        %v1877 = vsel %vm1875, %v1876, %v1874
        %v1878 = vclz %v1877
        %v1879 = vsub.s32 %v1878, 2
        %vm1880 = vcmp.gt.s32.totalorder 0, %v1879
        %v1881 = vsel %vm1880, 0, %v1879
        %v1882 = vsub.s32 32, %v1881
        %v1883 = vshll.u32 %v1874, %v1881
        %v1884 = vshrl.u32 %v1866, %v1882
        %v1885 = vor.u32 %v1883, %v1884
        %v1886 = vsub.s32 4294967266, %v1881
        %v1887 = vadd.s32 %v1886, 127
        %v1888 = vshll.u32 %v1887, 23
        %v1889 = vor.u32 4788187, %v1888
        %v1890 = vand.u32 2147483647, %v1889
        %v1892 = vcvt.s32.f32 %v1885
        %v1893 = vmul.f32 %v1892, %v1890
        %v1894 = vxor.u32 %v1893, 2147483648
        %v1895 = vsel %vm1774, %v1894, %v1893
        %v1896 = vsub.s32 4, %v1872
        %v1897 = vsel %vm1774, %v1896, %v1872
        %v1898 = vsel %vm1773, %v678, %v1895
        %v1899 = vsel %vm1773, 0, %v1897
        %v1900 = vmul.f32 %v1898, %v1898
        %v1901 = vmul.f32 %v1900, -0.001358992
        %v1902 = vadd.f32 %v1901, 0.041655596
        %v1903 = vmul.f32 %v1900, %v1902
        %v1904 = vadd.f32 %v1903, -0.4999988
        %v1905 = vmul.f32 %v1900, %v1904
        %v1906 = vadd.f32 1.0, %v1905
        %v1907 = vmul.f32 %v1898, %v1898
        %v1908 = vmul.f32 %v1907, -0.00019511016
        %v1909 = vadd.f32 %v1908, 0.008332121
        %v1910 = vmul.f32 %v1907, %v1909
        %v1911 = vadd.f32 %v1910, -0.16666654
        %v1912 = vmul.f32 %v1907, %v1911
        %v1913 = vadd.f32 %v1912, 1.0
        %v1914 = vmul.f32 %v1913, %v1898
        %vm1915 = vweird.f32 %v678
        %v1916 = vadd.s32 %v1899, 3
        %v1917 = vand.u32 %v1916, 3
        %vm1918 = vcmp.lt.s32.totalorder %v1917, 2
        %vm1919 = vcmp.eq.s32.totalorder %v1917, 0
        %v1920 = vxor.u32 %v1914, 2147483648
        %v1921 = vsel %vm1919, %v1906, %v1920
        %vm1922 = vcmp.eq.s32.totalorder %v1917, 2
        %v1923 = vxor.u32 %v1906, 2147483648
        %v1924 = vsel %vm1922, %v1923, %v1914
        %v1925 = vsel %vm1918, %v1921, %v1924
        %v1926 = vsel %vm1915, nan, %v1925
        %v1927 = vand.u32 2147483647, %v679
        %vm1928 = vcmp.le.f32.partialorder %v1927, 0.7853982
        %vm1929 = vcmp.lt.s32.totalorder %v679, 0
        %v1930 = vand.u32 %v679, 2139095040
        %v1931 = vshrl.u32 %v1930, 23
        %v1932 = vsub.s32 %v1931, 127
        %v1933 = vand.u32 2147483647, %v679
        %v1934 = vand.u32 %v1933, 8388607
        %v1935 = vor.u32 %v1934, 8388608
        %v1936 = vsub.s32 0, %v1935
        %v1937 = vadd.s32 %v1932, 1
        %vm1938 = vcmp.gt.s32.totalorder %v1937, 0
        %v1939 = vsel %vm1938, %v1937, 0
        %v1940 = vshrl.u32 %v1939, 5
        %v1941 = vand.u32 %v1939, 31
        %v1942 = vsub.s32 32, %v1941
        %v1943 = vshrl.u32 683565275, %v1942
        %v1944 = vshll.u32 683565275, %v1941
        %v1945 = vshrl.u32 2475754826, %v1942
        %v1946 = vor.u32 %v1944, %v1945
        %v1947 = vshll.u32 2475754826, %v1941
        %v1948 = vshrl.u32 2131351028, %v1942
        %v1949 = vor.u32 %v1947, %v1948
        %v1950 = vshll.u32 2131351028, %v1941
        %v1951 = vshrl.u32 2102212464, %v1942
        %v1952 = vor.u32 %v1950, %v1951
        %v1953 = vshll.u32 2102212464, %v1941
        %v1954 = vshrl.u32 920167782, %v1942
        %v1955 = vor.u32 %v1953, %v1954
        %v1956 = vshll.u32 920167782, %v1941
        %v1957 = vshrl.u32 1326507024, %v1942
        %v1958 = vor.u32 %v1956, %v1957
        %vm1959 = vcmp.lt.s32.totalorder %v1940, 1
        %vm1960 = vcmp.lt.s32.totalorder %v1940, 2
        %vm1961 = vcmp.lt.s32.totalorder %v1940, 3
        %vm1962 = vcmp.lt.s32.totalorder %v1940, 4
        %v1963 = vsel %vm1959, %v1943, %v1946
        %v1964 = vsel %vm1962, %v1952, 2102212464
        %v1965 = vsel %vm1961, %v1949, %v1964
        %v1966 = vsel %vm1960, %v1963, %v1965
        %v1967 = vsel %vm1959, %v1946, %v1949
        %v1968 = vsel %vm1962, %v1955, 920167782
        %v1969 = vsel %vm1961, %v1952, %v1968
        %v1970 = vsel %vm1960, %v1967, %v1969
        %v1971 = vsel %vm1959, %v1949, %v1952
        %v1972 = vsel %vm1962, %v1958, 1326507024
        %v1973 = vsel %vm1961, %v1955, %v1972
        %v1974 = vsel %vm1960, %v1971, %v1973
        %v1975 = vshll.u32 %v1935, 8
        %v1976 = vand.u32 %v1975, 65535
        %v1977 = vshrl.u32 %v1975, 16
        %v1978 = vand.u32 %v1974, 65535
        %v1979 = vshrl.u32 %v1974, 16
        %v1980 = vmul.u32 %v1976, %v1978
        %v1981 = vmul.u32 %v1976, %v1979
        %v1982 = vmul.u32 %v1977, %v1978
        %v1983 = vmul.u32 %v1977, %v1979
        %v1984 = vshll.u32 %v1981, 16
        %v1985 = vshrl.u32 %v1981, 16
        %v1986 = vshll.u32 %v1982, 16
        %v1987 = vshrl.u32 %v1982, 16
        %vm1988 = vc.u32 %v1980, %v1984
        %v1989 = vsel %vm1988, 1, 0
        %v1990 = vadd.s32 %v1980, %v1984
        %v1991 = vadd.s32 %v1983, %v1989
        %vm1992 = vc.u32 %v1990, %v1986
        %v1993 = vsel %vm1992, 1, 0
        %v1994 = vadd.s32 %v1990, %v1986
        %v1995 = vadd.s32 %v1991, %v1993
        %v1996 = vadd.s32 %v1995, %v1985
        %v1997 = vadd.s32 %v1996, %v1987
        %v1998 = vand.u32 %v1975, 65535
        %v1999 = vshrl.u32 %v1975, 16
        %v2000 = vand.u32 %v1970, 65535
        %v2001 = vshrl.u32 %v1970, 16
        %v2002 = vmul.u32 %v1998, %v2000
        %v2003 = vmul.u32 %v1998, %v2001
        %v2004 = vmul.u32 %v1999, %v2000
        %v2005 = vmul.u32 %v1999, %v2001
        %v2006 = vshll.u32 %v2003, 16
        %v2007 = vshrl.u32 %v2003, 16
        %v2008 = vshll.u32 %v2004, 16
        %v2009 = vshrl.u32 %v2004, 16
        %vm2010 = vc.u32 %v2002, %v2006
        %v2011 = vsel %vm2010, 1, 0
        %v2012 = vadd.s32 %v2002, %v2006
        %v2013 = vadd.s32 %v2005, %v2011
        %vm2014 = vc.u32 %v2012, %v2008
        %v2015 = vsel %vm2014, 1, 0
        %v2016 = vadd.s32 %v2012, %v2008
        %v2017 = vadd.s32 %v2013, %v2015
        %v2018 = vadd.s32 %v2017, %v2007
        %v2019 = vadd.s32 %v2018, %v2009
        %v2020 = vmul.u32 %v1975, %v1966
        %v2021 = vadd.s32 %v1997, %v2016
        %vm2022 = vc.u32 %v1997, %v2016
        %v2023 = vadd.s32 %v2019, 1
        %v2024 = vsel %vm2022, %v2023, %v2019
        %v2025 = vadd.s32 %v2020, %v2024
        %v2026 = vadd.s32 %v2025, 536870912
        %v2027 = vshrl.u32 %v2026, 30
        %v2028 = vshll.u32 %v2027, 30
        %v2029 = vsub.s32 %v2025, %v2028
        %vm2030 = vcmp.lt.s32.totalorder %v2029, 0
        %v2031 = vsub.s32 0, %v2029
        %v2032 = vsel %vm2030, %v2031, %v2029
        %v2033 = vclz %v2032
        %v2034 = vsub.s32 %v2033, 2
        %vm2035 = vcmp.gt.s32.totalorder 0, %v2034
        %v2036 = vsel %vm2035, 0, %v2034
        %v2037 = vsub.s32 32, %v2036
        %v2038 = vshll.u32 %v2029, %v2036
        %v2039 = vshrl.u32 %v2021, %v2037
        %v2040 = vor.u32 %v2038, %v2039
        %v2041 = vsub.s32 4294967266, %v2036
        %v2042 = vadd.s32 %v2041, 127
        %v2043 = vshll.u32 %v2042, 23
        %v2044 = vor.u32 4788187, %v2043
        %v2045 = vand.u32 2147483647, %v2044
        %v2047 = vcvt.s32.f32 %v2040
        %v2048 = vmul.f32 %v2047, %v2045
        %v2049 = vxor.u32 %v2048, 2147483648
        %v2050 = vsel %vm1929, %v2049, %v2048
        %v2051 = vsub.s32 4, %v2027
        %v2052 = vsel %vm1929, %v2051, %v2027
        %v2053 = vsel %vm1928, %v679, %v2050
        %v2054 = vsel %vm1928, 0, %v2052
        %v2055 = vmul.f32 %v2053, %v2053
        %v2056 = vmul.f32 %v2055, -0.001358992
        %v2057 = vadd.f32 %v2056, 0.041655596
        %v2058 = vmul.f32 %v2055, %v2057
        %v2059 = vadd.f32 %v2058, -0.4999988
        %v2060 = vmul.f32 %v2055, %v2059
        %v2061 = vadd.f32 1.0, %v2060
        %v2062 = vmul.f32 %v2053, %v2053
        %v2063 = vmul.f32 %v2062, -0.00019511016
        %v2064 = vadd.f32 %v2063, 0.008332121
        %v2065 = vmul.f32 %v2062, %v2064
        %v2066 = vadd.f32 %v2065, -0.16666654
        %v2067 = vmul.f32 %v2062, %v2066
        %v2068 = vadd.f32 %v2067, 1.0
        %v2069 = vmul.f32 %v2068, %v2053
        %vm2070 = vweird.f32 %v679
        %v2071 = vadd.s32 %v2054, 3
        %v2072 = vand.u32 %v2071, 3
        %vm2073 = vcmp.lt.s32.totalorder %v2072, 2
        %vm2074 = vcmp.eq.s32.totalorder %v2072, 0
        %v2075 = vxor.u32 %v2069, 2147483648
        %v2076 = vsel %vm2074, %v2061, %v2075
        %vm2077 = vcmp.eq.s32.totalorder %v2072, 2
        %v2078 = vxor.u32 %v2061, 2147483648
        %v2079 = vsel %vm2077, %v2078, %v2069
        %v2080 = vsel %vm2073, %v2076, %v2079
        %v2081 = vsel %vm2070, nan, %v2080
        %v2082 = vand.u32 2147483647, %v680
        %vm2083 = vcmp.le.f32.partialorder %v2082, 0.7853982
        %vm2084 = vcmp.lt.s32.totalorder %v680, 0
        %v2085 = vand.u32 %v680, 2139095040
        %v2086 = vshrl.u32 %v2085, 23
        %v2087 = vsub.s32 %v2086, 127
        %v2088 = vand.u32 2147483647, %v680
        %v2089 = vand.u32 %v2088, 8388607
        %v2090 = vor.u32 %v2089, 8388608
        %v2091 = vsub.s32 0, %v2090
        %v2092 = vadd.s32 %v2087, 1
        %vm2093 = vcmp.gt.s32.totalorder %v2092, 0
        %v2094 = vsel %vm2093, %v2092, 0
        %v2095 = vshrl.u32 %v2094, 5
        %v2096 = vand.u32 %v2094, 31
        %v2097 = vsub.s32 32, %v2096
        %v2098 = vshrl.u32 683565275, %v2097
        %v2099 = vshll.u32 683565275, %v2096
        %v2100 = vshrl.u32 2475754826, %v2097
        %v2101 = vor.u32 %v2099, %v2100
        %v2102 = vshll.u32 2475754826, %v2096
        %v2103 = vshrl.u32 2131351028, %v2097
        %v2104 = vor.u32 %v2102, %v2103
        %v2105 = vshll.u32 2131351028, %v2096
        %v2106 = vshrl.u32 2102212464, %v2097
        %v2107 = vor.u32 %v2105, %v2106
        %v2108 = vshll.u32 2102212464, %v2096
        %v2109 = vshrl.u32 920167782, %v2097
        %v2110 = vor.u32 %v2108, %v2109
        %v2111 = vshll.u32 920167782, %v2096
        %v2112 = vshrl.u32 1326507024, %v2097
        %v2113 = vor.u32 %v2111, %v2112
        %vm2114 = vcmp.lt.s32.totalorder %v2095, 1
        %vm2115 = vcmp.lt.s32.totalorder %v2095, 2
        %vm2116 = vcmp.lt.s32.totalorder %v2095, 3
        %vm2117 = vcmp.lt.s32.totalorder %v2095, 4
        %v2118 = vsel %vm2114, %v2098, %v2101
        %v2119 = vsel %vm2117, %v2107, 2102212464
        %v2120 = vsel %vm2116, %v2104, %v2119
        %v2121 = vsel %vm2115, %v2118, %v2120
        %v2122 = vsel %vm2114, %v2101, %v2104
        %v2123 = vsel %vm2117, %v2110, 920167782
        %v2124 = vsel %vm2116, %v2107, %v2123
        %v2125 = vsel %vm2115, %v2122, %v2124
        %v2126 = vsel %vm2114, %v2104, %v2107
        %v2127 = vsel %vm2117, %v2113, 1326507024
        %v2128 = vsel %vm2116, %v2110, %v2127
        %v2129 = vsel %vm2115, %v2126, %v2128
        %v2130 = vshll.u32 %v2090, 8
        %v2131 = vand.u32 %v2130, 65535
        %v2132 = vshrl.u32 %v2130, 16
        %v2133 = vand.u32 %v2129, 65535
        %v2134 = vshrl.u32 %v2129, 16
        %v2135 = vmul.u32 %v2131, %v2133
        %v2136 = vmul.u32 %v2131, %v2134
        %v2137 = vmul.u32 %v2132, %v2133
        %v2138 = vmul.u32 %v2132, %v2134
        %v2139 = vshll.u32 %v2136, 16
        %v2140 = vshrl.u32 %v2136, 16
        %v2141 = vshll.u32 %v2137, 16
        %v2142 = vshrl.u32 %v2137, 16
        %vm2143 = vc.u32 %v2135, %v2139
        %v2144 = vsel %vm2143, 1, 0
        %v2145 = vadd.s32 %v2135, %v2139
        %v2146 = vadd.s32 %v2138, %v2144
        %vm2147 = vc.u32 %v2145, %v2141
        %v2148 = vsel %vm2147, 1, 0
        %v2149 = vadd.s32 %v2145, %v2141
        %v2150 = vadd.s32 %v2146, %v2148
        %v2151 = vadd.s32 %v2150, %v2140
        %v2152 = vadd.s32 %v2151, %v2142
        %v2153 = vand.u32 %v2130, 65535
        %v2154 = vshrl.u32 %v2130, 16
        %v2155 = vand.u32 %v2125, 65535
        %v2156 = vshrl.u32 %v2125, 16
        %v2157 = vmul.u32 %v2153, %v2155
        %v2158 = vmul.u32 %v2153, %v2156
        %v2159 = vmul.u32 %v2154, %v2155
        %v2160 = vmul.u32 %v2154, %v2156
        %v2161 = vshll.u32 %v2158, 16
        %v2162 = vshrl.u32 %v2158, 16
        %v2163 = vshll.u32 %v2159, 16
        %v2164 = vshrl.u32 %v2159, 16
        %vm2165 = vc.u32 %v2157, %v2161
        %v2166 = vsel %vm2165, 1, 0
        %v2167 = vadd.s32 %v2157, %v2161
        %v2168 = vadd.s32 %v2160, %v2166
        %vm2169 = vc.u32 %v2167, %v2163
        %v2170 = vsel %vm2169, 1, 0
        %v2171 = vadd.s32 %v2167, %v2163
        %v2172 = vadd.s32 %v2168, %v2170
        %v2173 = vadd.s32 %v2172, %v2162
        %v2174 = vadd.s32 %v2173, %v2164
        %v2175 = vmul.u32 %v2130, %v2121
        %v2176 = vadd.s32 %v2152, %v2171
        %vm2177 = vc.u32 %v2152, %v2171
        %v2178 = vadd.s32 %v2174, 1
        %v2179 = vsel %vm2177, %v2178, %v2174
        %v2180 = vadd.s32 %v2175, %v2179
        %v2181 = vadd.s32 %v2180, 536870912
        %v2182 = vshrl.u32 %v2181, 30
        %v2183 = vshll.u32 %v2182, 30
        %v2184 = vsub.s32 %v2180, %v2183
        %vm2185 = vcmp.lt.s32.totalorder %v2184, 0
        %v2186 = vsub.s32 0, %v2184
        %v2187 = vsel %vm2185, %v2186, %v2184
        %v2188 = vclz %v2187
        %v2189 = vsub.s32 %v2188, 2
        %vm2190 = vcmp.gt.s32.totalorder 0, %v2189
        %v2191 = vsel %vm2190, 0, %v2189
        %v2192 = vsub.s32 32, %v2191
        %v2193 = vshll.u32 %v2184, %v2191
        %v2194 = vshrl.u32 %v2176, %v2192
        %v2195 = vor.u32 %v2193, %v2194
        %v2196 = vsub.s32 4294967266, %v2191
        %v2197 = vadd.s32 %v2196, 127
        %v2198 = vshll.u32 %v2197, 23
        %v2199 = vor.u32 4788187, %v2198
        %v2200 = vand.u32 2147483647, %v2199
        %v2202 = vcvt.s32.f32 %v2195
        %v2203 = vmul.f32 %v2202, %v2200
        %v2204 = vxor.u32 %v2203, 2147483648
        %v2205 = vsel %vm2084, %v2204, %v2203
        %v2206 = vsub.s32 4, %v2182
        %v2207 = vsel %vm2084, %v2206, %v2182
        %v2208 = vsel %vm2083, %v680, %v2205
        %v2209 = vsel %vm2083, 0, %v2207
        %v2210 = vmul.f32 %v2208, %v2208
        %v2211 = vmul.f32 %v2210, -0.001358992
        %v2212 = vadd.f32 %v2211, 0.041655596
        %v2213 = vmul.f32 %v2210, %v2212
        %v2214 = vadd.f32 %v2213, -0.4999988
        %v2215 = vmul.f32 %v2210, %v2214
        %v2216 = vadd.f32 1.0, %v2215
        %v2217 = vmul.f32 %v2208, %v2208
        %v2218 = vmul.f32 %v2217, -0.00019511016
        %v2219 = vadd.f32 %v2218, 0.008332121
        %v2220 = vmul.f32 %v2217, %v2219
        %v2221 = vadd.f32 %v2220, -0.16666654
        %v2222 = vmul.f32 %v2217, %v2221
        %v2223 = vadd.f32 %v2222, 1.0
        %v2224 = vmul.f32 %v2223, %v2208
        %vm2225 = vweird.f32 %v680
        %v2226 = vadd.s32 %v2209, 3
        %v2227 = vand.u32 %v2226, 3
        %vm2228 = vcmp.lt.s32.totalorder %v2227, 2
        %vm2229 = vcmp.eq.s32.totalorder %v2227, 0
        %v2230 = vxor.u32 %v2224, 2147483648
        %v2231 = vsel %vm2229, %v2216, %v2230
        %vm2232 = vcmp.eq.s32.totalorder %v2227, 2
        %v2233 = vxor.u32 %v2216, 2147483648
        %v2234 = vsel %vm2232, %v2233, %v2224
        %v2235 = vsel %vm2228, %v2231, %v2234
        %v2236 = vsel %vm2225, nan, %v2235
        %v2237 = vand.u32 2147483647, %v681
        %vm2238 = vcmp.le.f32.partialorder %v2237, 0.7853982
        %vm2239 = vcmp.lt.s32.totalorder %v681, 0
        %v2240 = vand.u32 %v681, 2139095040
        %v2241 = vshrl.u32 %v2240, 23
        %v2242 = vsub.s32 %v2241, 127
        %v2243 = vand.u32 2147483647, %v681
        %v2244 = vand.u32 %v2243, 8388607
        %v2245 = vor.u32 %v2244, 8388608
        %v2246 = vsub.s32 0, %v2245
        %v2247 = vadd.s32 %v2242, 1
        %vm2248 = vcmp.gt.s32.totalorder %v2247, 0
        %v2249 = vsel %vm2248, %v2247, 0
        %v2250 = vshrl.u32 %v2249, 5
        %v2251 = vand.u32 %v2249, 31
        %v2252 = vsub.s32 32, %v2251
        %v2253 = vshrl.u32 683565275, %v2252
        %v2254 = vshll.u32 683565275, %v2251
        %v2255 = vshrl.u32 2475754826, %v2252
        %v2256 = vor.u32 %v2254, %v2255
        %v2257 = vshll.u32 2475754826, %v2251
        %v2258 = vshrl.u32 2131351028, %v2252
        %v2259 = vor.u32 %v2257, %v2258
        %v2260 = vshll.u32 2131351028, %v2251
        %v2261 = vshrl.u32 2102212464, %v2252
        %v2262 = vor.u32 %v2260, %v2261
        %v2263 = vshll.u32 2102212464, %v2251
        %v2264 = vshrl.u32 920167782, %v2252
        %v2265 = vor.u32 %v2263, %v2264
        %v2266 = vshll.u32 920167782, %v2251
        %v2267 = vshrl.u32 1326507024, %v2252
        %v2268 = vor.u32 %v2266, %v2267
        %vm2269 = vcmp.lt.s32.totalorder %v2250, 1
        %vm2270 = vcmp.lt.s32.totalorder %v2250, 2
        %vm2271 = vcmp.lt.s32.totalorder %v2250, 3
        %vm2272 = vcmp.lt.s32.totalorder %v2250, 4
        %v2273 = vsel %vm2269, %v2253, %v2256
        %v2274 = vsel %vm2272, %v2262, 2102212464
        %v2275 = vsel %vm2271, %v2259, %v2274
        %v2276 = vsel %vm2270, %v2273, %v2275
        %v2277 = vsel %vm2269, %v2256, %v2259
        %v2278 = vsel %vm2272, %v2265, 920167782
        %v2279 = vsel %vm2271, %v2262, %v2278
        %v2280 = vsel %vm2270, %v2277, %v2279
        %v2281 = vsel %vm2269, %v2259, %v2262
        %v2282 = vsel %vm2272, %v2268, 1326507024
        %v2283 = vsel %vm2271, %v2265, %v2282
        %v2284 = vsel %vm2270, %v2281, %v2283
        %v2285 = vshll.u32 %v2245, 8
        %v2286 = vand.u32 %v2285, 65535
        %v2287 = vshrl.u32 %v2285, 16
        %v2288 = vand.u32 %v2284, 65535
        %v2289 = vshrl.u32 %v2284, 16
        %v2290 = vmul.u32 %v2286, %v2288
        %v2291 = vmul.u32 %v2286, %v2289
        %v2292 = vmul.u32 %v2287, %v2288
        %v2293 = vmul.u32 %v2287, %v2289
        %v2294 = vshll.u32 %v2291, 16
        %v2295 = vshrl.u32 %v2291, 16
        %v2296 = vshll.u32 %v2292, 16
        %v2297 = vshrl.u32 %v2292, 16
        %vm2298 = vc.u32 %v2290, %v2294
        %v2299 = vsel %vm2298, 1, 0
        %v2300 = vadd.s32 %v2290, %v2294
        %v2301 = vadd.s32 %v2293, %v2299
        %vm2302 = vc.u32 %v2300, %v2296
        %v2303 = vsel %vm2302, 1, 0
        %v2304 = vadd.s32 %v2300, %v2296
        %v2305 = vadd.s32 %v2301, %v2303
        %v2306 = vadd.s32 %v2305, %v2295
        %v2307 = vadd.s32 %v2306, %v2297
        %v2308 = vand.u32 %v2285, 65535
        %v2309 = vshrl.u32 %v2285, 16
        %v2310 = vand.u32 %v2280, 65535
        %v2311 = vshrl.u32 %v2280, 16
        %v2312 = vmul.u32 %v2308, %v2310
        %v2313 = vmul.u32 %v2308, %v2311
        %v2314 = vmul.u32 %v2309, %v2310
        %v2315 = vmul.u32 %v2309, %v2311
        %v2316 = vshll.u32 %v2313, 16
        %v2317 = vshrl.u32 %v2313, 16
        %v2318 = vshll.u32 %v2314, 16
        %v2319 = vshrl.u32 %v2314, 16
        %vm2320 = vc.u32 %v2312, %v2316
        %v2321 = vsel %vm2320, 1, 0
        %v2322 = vadd.s32 %v2312, %v2316
        %v2323 = vadd.s32 %v2315, %v2321
        %vm2324 = vc.u32 %v2322, %v2318
        %v2325 = vsel %vm2324, 1, 0
        %v2326 = vadd.s32 %v2322, %v2318
        %v2327 = vadd.s32 %v2323, %v2325
        %v2328 = vadd.s32 %v2327, %v2317
        %v2329 = vadd.s32 %v2328, %v2319
        %v2330 = vmul.u32 %v2285, %v2276
        %v2331 = vadd.s32 %v2307, %v2326
        %vm2332 = vc.u32 %v2307, %v2326
        %v2333 = vadd.s32 %v2329, 1
        %v2334 = vsel %vm2332, %v2333, %v2329
        %v2335 = vadd.s32 %v2330, %v2334
        %v2336 = vadd.s32 %v2335, 536870912
        %v2337 = vshrl.u32 %v2336, 30
        %v2338 = vshll.u32 %v2337, 30
        %v2339 = vsub.s32 %v2335, %v2338
        %vm2340 = vcmp.lt.s32.totalorder %v2339, 0
        %v2341 = vsub.s32 0, %v2339
        %v2342 = vsel %vm2340, %v2341, %v2339
        %v2343 = vclz %v2342
        %v2344 = vsub.s32 %v2343, 2
        %vm2345 = vcmp.gt.s32.totalorder 0, %v2344
        %v2346 = vsel %vm2345, 0, %v2344
        %v2347 = vsub.s32 32, %v2346
        %v2348 = vshll.u32 %v2339, %v2346
        %v2349 = vshrl.u32 %v2331, %v2347
        %v2350 = vor.u32 %v2348, %v2349
        %v2351 = vsub.s32 4294967266, %v2346
        %v2352 = vadd.s32 %v2351, 127
        %v2353 = vshll.u32 %v2352, 23
        %v2354 = vor.u32 4788187, %v2353
        %v2355 = vand.u32 2147483647, %v2354
        %v2357 = vcvt.s32.f32 %v2350
        %v2358 = vmul.f32 %v2357, %v2355
        %v2359 = vxor.u32 %v2358, 2147483648
        %v2360 = vsel %vm2239, %v2359, %v2358
        %v2361 = vsub.s32 4, %v2337
        %v2362 = vsel %vm2239, %v2361, %v2337
        %v2363 = vsel %vm2238, %v681, %v2360
        %v2364 = vsel %vm2238, 0, %v2362
        %v2365 = vmul.f32 %v2363, %v2363
        %v2366 = vmul.f32 %v2365, -0.001358992
        %v2367 = vadd.f32 %v2366, 0.041655596
        %v2368 = vmul.f32 %v2365, %v2367
        %v2369 = vadd.f32 %v2368, -0.4999988
        %v2370 = vmul.f32 %v2365, %v2369
        %v2371 = vadd.f32 1.0, %v2370
        %v2372 = vmul.f32 %v2363, %v2363
        %v2373 = vmul.f32 %v2372, -0.00019511016
        %v2374 = vadd.f32 %v2373, 0.008332121
        %v2375 = vmul.f32 %v2372, %v2374
        %v2376 = vadd.f32 %v2375, -0.16666654
        %v2377 = vmul.f32 %v2372, %v2376
        %v2378 = vadd.f32 %v2377, 1.0
        %v2379 = vmul.f32 %v2378, %v2363
        %vm2380 = vweird.f32 %v681
        %v2381 = vadd.s32 %v2364, 3
        %v2382 = vand.u32 %v2381, 3
        %vm2383 = vcmp.lt.s32.totalorder %v2382, 2
        %vm2384 = vcmp.eq.s32.totalorder %v2382, 0
        %v2385 = vxor.u32 %v2379, 2147483648
        %v2386 = vsel %vm2384, %v2371, %v2385
        %vm2387 = vcmp.eq.s32.totalorder %v2382, 2
        %v2388 = vxor.u32 %v2371, 2147483648
        %v2389 = vsel %vm2387, %v2388, %v2379
        %v2390 = vsel %vm2383, %v2386, %v2389
        %v2391 = vsel %vm2380, nan, %v2390
        %v2392 = vand.u32 2147483647, %v682
        %vm2393 = vcmp.le.f32.partialorder %v2392, 0.7853982
        %vm2394 = vcmp.lt.s32.totalorder %v682, 0
        %v2395 = vand.u32 %v682, 2139095040
        %v2396 = vshrl.u32 %v2395, 23
        %v2397 = vsub.s32 %v2396, 127
        %v2398 = vand.u32 2147483647, %v682
        %v2399 = vand.u32 %v2398, 8388607
        %v2400 = vor.u32 %v2399, 8388608
        %v2401 = vsub.s32 0, %v2400
        %v2402 = vadd.s32 %v2397, 1
        %vm2403 = vcmp.gt.s32.totalorder %v2402, 0
        %v2404 = vsel %vm2403, %v2402, 0
        %v2405 = vshrl.u32 %v2404, 5
        %v2406 = vand.u32 %v2404, 31
        %v2407 = vsub.s32 32, %v2406
        %v2408 = vshrl.u32 683565275, %v2407
        %v2409 = vshll.u32 683565275, %v2406
        %v2410 = vshrl.u32 2475754826, %v2407
        %v2411 = vor.u32 %v2409, %v2410
        %v2412 = vshll.u32 2475754826, %v2406
        %v2413 = vshrl.u32 2131351028, %v2407
        %v2414 = vor.u32 %v2412, %v2413
        %v2415 = vshll.u32 2131351028, %v2406
        %v2416 = vshrl.u32 2102212464, %v2407
        %v2417 = vor.u32 %v2415, %v2416
        %v2418 = vshll.u32 2102212464, %v2406
        %v2419 = vshrl.u32 920167782, %v2407
        %v2420 = vor.u32 %v2418, %v2419
        %v2421 = vshll.u32 920167782, %v2406
        %v2422 = vshrl.u32 1326507024, %v2407
        %v2423 = vor.u32 %v2421, %v2422
        %vm2424 = vcmp.lt.s32.totalorder %v2405, 1
        %vm2425 = vcmp.lt.s32.totalorder %v2405, 2
        %vm2426 = vcmp.lt.s32.totalorder %v2405, 3
        %vm2427 = vcmp.lt.s32.totalorder %v2405, 4
        %v2428 = vsel %vm2424, %v2408, %v2411
        %v2429 = vsel %vm2427, %v2417, 2102212464
        %v2430 = vsel %vm2426, %v2414, %v2429
        %v2431 = vsel %vm2425, %v2428, %v2430
        %v2432 = vsel %vm2424, %v2411, %v2414
        %v2433 = vsel %vm2427, %v2420, 920167782
        %v2434 = vsel %vm2426, %v2417, %v2433
        %v2435 = vsel %vm2425, %v2432, %v2434
        %v2436 = vsel %vm2424, %v2414, %v2417
        %v2437 = vsel %vm2427, %v2423, 1326507024
        %v2438 = vsel %vm2426, %v2420, %v2437
        %v2439 = vsel %vm2425, %v2436, %v2438
        %v2440 = vshll.u32 %v2400, 8
        %v2441 = vand.u32 %v2440, 65535
        %v2442 = vshrl.u32 %v2440, 16
        %v2443 = vand.u32 %v2439, 65535
        %v2444 = vshrl.u32 %v2439, 16
        %v2445 = vmul.u32 %v2441, %v2443
        %v2446 = vmul.u32 %v2441, %v2444
        %v2447 = vmul.u32 %v2442, %v2443
        %v2448 = vmul.u32 %v2442, %v2444
        %v2449 = vshll.u32 %v2446, 16
        %v2450 = vshrl.u32 %v2446, 16
        %v2451 = vshll.u32 %v2447, 16
        %v2452 = vshrl.u32 %v2447, 16
        %vm2453 = vc.u32 %v2445, %v2449
        %v2454 = vsel %vm2453, 1, 0
        %v2455 = vadd.s32 %v2445, %v2449
        %v2456 = vadd.s32 %v2448, %v2454
        %vm2457 = vc.u32 %v2455, %v2451
        %v2458 = vsel %vm2457, 1, 0
        %v2459 = vadd.s32 %v2455, %v2451
        %v2460 = vadd.s32 %v2456, %v2458
        %v2461 = vadd.s32 %v2460, %v2450
        %v2462 = vadd.s32 %v2461, %v2452
        %v2463 = vand.u32 %v2440, 65535
        %v2464 = vshrl.u32 %v2440, 16
        %v2465 = vand.u32 %v2435, 65535
        %v2466 = vshrl.u32 %v2435, 16
        %v2467 = vmul.u32 %v2463, %v2465
        %v2468 = vmul.u32 %v2463, %v2466
        %v2469 = vmul.u32 %v2464, %v2465
        %v2470 = vmul.u32 %v2464, %v2466
        %v2471 = vshll.u32 %v2468, 16
        %v2472 = vshrl.u32 %v2468, 16
        %v2473 = vshll.u32 %v2469, 16
        %v2474 = vshrl.u32 %v2469, 16
        %vm2475 = vc.u32 %v2467, %v2471
        %v2476 = vsel %vm2475, 1, 0
        %v2477 = vadd.s32 %v2467, %v2471
        %v2478 = vadd.s32 %v2470, %v2476
        %vm2479 = vc.u32 %v2477, %v2473
        %v2480 = vsel %vm2479, 1, 0
        %v2481 = vadd.s32 %v2477, %v2473
        %v2482 = vadd.s32 %v2478, %v2480
        %v2483 = vadd.s32 %v2482, %v2472
        %v2484 = vadd.s32 %v2483, %v2474
        %v2485 = vmul.u32 %v2440, %v2431
        %v2486 = vadd.s32 %v2462, %v2481
        %vm2487 = vc.u32 %v2462, %v2481
        %v2488 = vadd.s32 %v2484, 1
        %v2489 = vsel %vm2487, %v2488, %v2484
        %v2490 = vadd.s32 %v2485, %v2489
        %v2491 = vadd.s32 %v2490, 536870912
        %v2492 = vshrl.u32 %v2491, 30
        %v2493 = vshll.u32 %v2492, 30
        %v2494 = vsub.s32 %v2490, %v2493
        %vm2495 = vcmp.lt.s32.totalorder %v2494, 0
        %v2496 = vsub.s32 0, %v2494
        %v2497 = vsel %vm2495, %v2496, %v2494
        %v2498 = vclz %v2497
        %v2499 = vsub.s32 %v2498, 2
        %vm2500 = vcmp.gt.s32.totalorder 0, %v2499
        %v2501 = vsel %vm2500, 0, %v2499
        %v2502 = vsub.s32 32, %v2501
        %v2503 = vshll.u32 %v2494, %v2501
        %v2504 = vshrl.u32 %v2486, %v2502
        %v2505 = vor.u32 %v2503, %v2504
        %v2506 = vsub.s32 4294967266, %v2501
        %v2507 = vadd.s32 %v2506, 127
        %v2508 = vshll.u32 %v2507, 23
        %v2509 = vor.u32 4788187, %v2508
        %v2510 = vand.u32 2147483647, %v2509
        %v2512 = vcvt.s32.f32 %v2505
        %v2513 = vmul.f32 %v2512, %v2510
        %v2514 = vxor.u32 %v2513, 2147483648
        %v2515 = vsel %vm2394, %v2514, %v2513
        %v2516 = vsub.s32 4, %v2492
        %v2517 = vsel %vm2394, %v2516, %v2492
        %v2518 = vsel %vm2393, %v682, %v2515
        %v2519 = vsel %vm2393, 0, %v2517
        %v2520 = vmul.f32 %v2518, %v2518
        %v2521 = vmul.f32 %v2520, -0.001358992
        %v2522 = vadd.f32 %v2521, 0.041655596
        %v2523 = vmul.f32 %v2520, %v2522
        %v2524 = vadd.f32 %v2523, -0.4999988
        %v2525 = vmul.f32 %v2520, %v2524
        %v2526 = vadd.f32 1.0, %v2525
        %v2527 = vmul.f32 %v2518, %v2518
        %v2528 = vmul.f32 %v2527, -0.00019511016
        %v2529 = vadd.f32 %v2528, 0.008332121
        %v2530 = vmul.f32 %v2527, %v2529
        %v2531 = vadd.f32 %v2530, -0.16666654
        %v2532 = vmul.f32 %v2527, %v2531
        %v2533 = vadd.f32 %v2532, 1.0
        %v2534 = vmul.f32 %v2533, %v2518
        %vm2535 = vweird.f32 %v682
        %v2536 = vadd.s32 %v2519, 3
        %v2537 = vand.u32 %v2536, 3
        %vm2538 = vcmp.lt.s32.totalorder %v2537, 2
        %vm2539 = vcmp.eq.s32.totalorder %v2537, 0
        %v2540 = vxor.u32 %v2534, 2147483648
        %v2541 = vsel %vm2539, %v2526, %v2540
        %vm2542 = vcmp.eq.s32.totalorder %v2537, 2
        %v2543 = vxor.u32 %v2526, 2147483648
        %v2544 = vsel %vm2542, %v2543, %v2534
        %v2545 = vsel %vm2538, %v2541, %v2544
        %v2546 = vsel %vm2535, nan, %v2545
        %v2547 = vand.u32 2147483647, %v683
        %vm2548 = vcmp.le.f32.partialorder %v2547, 0.7853982
        %vm2549 = vcmp.lt.s32.totalorder %v683, 0
        %v2550 = vand.u32 %v683, 2139095040
        %v2551 = vshrl.u32 %v2550, 23
        %v2552 = vsub.s32 %v2551, 127
        %v2553 = vand.u32 2147483647, %v683
        %v2554 = vand.u32 %v2553, 8388607
        %v2555 = vor.u32 %v2554, 8388608
        %v2556 = vsub.s32 0, %v2555
        %v2557 = vadd.s32 %v2552, 1
        %vm2558 = vcmp.gt.s32.totalorder %v2557, 0
        %v2559 = vsel %vm2558, %v2557, 0
        %v2560 = vshrl.u32 %v2559, 5
        %v2561 = vand.u32 %v2559, 31
        %v2562 = vsub.s32 32, %v2561
        %v2563 = vshrl.u32 683565275, %v2562
        %v2564 = vshll.u32 683565275, %v2561
        %v2565 = vshrl.u32 2475754826, %v2562
        %v2566 = vor.u32 %v2564, %v2565
        %v2567 = vshll.u32 2475754826, %v2561
        %v2568 = vshrl.u32 2131351028, %v2562
        %v2569 = vor.u32 %v2567, %v2568
        %v2570 = vshll.u32 2131351028, %v2561
        %v2571 = vshrl.u32 2102212464, %v2562
        %v2572 = vor.u32 %v2570, %v2571
        %v2573 = vshll.u32 2102212464, %v2561
        %v2574 = vshrl.u32 920167782, %v2562
        %v2575 = vor.u32 %v2573, %v2574
        %v2576 = vshll.u32 920167782, %v2561
        %v2577 = vshrl.u32 1326507024, %v2562
        %v2578 = vor.u32 %v2576, %v2577
        %vm2579 = vcmp.lt.s32.totalorder %v2560, 1
        %vm2580 = vcmp.lt.s32.totalorder %v2560, 2
        %vm2581 = vcmp.lt.s32.totalorder %v2560, 3
        %vm2582 = vcmp.lt.s32.totalorder %v2560, 4
        %v2583 = vsel %vm2579, %v2563, %v2566
        %v2584 = vsel %vm2582, %v2572, 2102212464
        %v2585 = vsel %vm2581, %v2569, %v2584
        %v2586 = vsel %vm2580, %v2583, %v2585
        %v2587 = vsel %vm2579, %v2566, %v2569
        %v2588 = vsel %vm2582, %v2575, 920167782
        %v2589 = vsel %vm2581, %v2572, %v2588
        %v2590 = vsel %vm2580, %v2587, %v2589
        %v2591 = vsel %vm2579, %v2569, %v2572
        %v2592 = vsel %vm2582, %v2578, 1326507024
        %v2593 = vsel %vm2581, %v2575, %v2592
        %v2594 = vsel %vm2580, %v2591, %v2593
        %v2595 = vshll.u32 %v2555, 8
        %v2596 = vand.u32 %v2595, 65535
        %v2597 = vshrl.u32 %v2595, 16
        %v2598 = vand.u32 %v2594, 65535
        %v2599 = vshrl.u32 %v2594, 16
        %v2600 = vmul.u32 %v2596, %v2598
        %v2601 = vmul.u32 %v2596, %v2599
        %v2602 = vmul.u32 %v2597, %v2598
        %v2603 = vmul.u32 %v2597, %v2599
        %v2604 = vshll.u32 %v2601, 16
        %v2605 = vshrl.u32 %v2601, 16
        %v2606 = vshll.u32 %v2602, 16
        %v2607 = vshrl.u32 %v2602, 16
        %vm2608 = vc.u32 %v2600, %v2604
        %v2609 = vsel %vm2608, 1, 0
        %v2610 = vadd.s32 %v2600, %v2604
        %v2611 = vadd.s32 %v2603, %v2609
        %vm2612 = vc.u32 %v2610, %v2606
        %v2613 = vsel %vm2612, 1, 0
        %v2614 = vadd.s32 %v2610, %v2606
        %v2615 = vadd.s32 %v2611, %v2613
        %v2616 = vadd.s32 %v2615, %v2605
        %v2617 = vadd.s32 %v2616, %v2607
        %v2618 = vand.u32 %v2595, 65535
        %v2619 = vshrl.u32 %v2595, 16
        %v2620 = vand.u32 %v2590, 65535
        %v2621 = vshrl.u32 %v2590, 16
        %v2622 = vmul.u32 %v2618, %v2620
        %v2623 = vmul.u32 %v2618, %v2621
        %v2624 = vmul.u32 %v2619, %v2620
        %v2625 = vmul.u32 %v2619, %v2621
        %v2626 = vshll.u32 %v2623, 16
        %v2627 = vshrl.u32 %v2623, 16
        %v2628 = vshll.u32 %v2624, 16
        %v2629 = vshrl.u32 %v2624, 16
        %vm2630 = vc.u32 %v2622, %v2626
        %v2631 = vsel %vm2630, 1, 0
        %v2632 = vadd.s32 %v2622, %v2626
        %v2633 = vadd.s32 %v2625, %v2631
        %vm2634 = vc.u32 %v2632, %v2628
        %v2635 = vsel %vm2634, 1, 0
        %v2636 = vadd.s32 %v2632, %v2628
        %v2637 = vadd.s32 %v2633, %v2635
        %v2638 = vadd.s32 %v2637, %v2627
        %v2639 = vadd.s32 %v2638, %v2629
        %v2640 = vmul.u32 %v2595, %v2586
        %v2641 = vadd.s32 %v2617, %v2636
        %vm2642 = vc.u32 %v2617, %v2636
        %v2643 = vadd.s32 %v2639, 1
        %v2644 = vsel %vm2642, %v2643, %v2639
        %v2645 = vadd.s32 %v2640, %v2644
        %v2646 = vadd.s32 %v2645, 536870912
        %v2647 = vshrl.u32 %v2646, 30
        %v2648 = vshll.u32 %v2647, 30
        %v2649 = vsub.s32 %v2645, %v2648
        %vm2650 = vcmp.lt.s32.totalorder %v2649, 0
        %v2651 = vsub.s32 0, %v2649
        %v2652 = vsel %vm2650, %v2651, %v2649
        %v2653 = vclz %v2652
        %v2654 = vsub.s32 %v2653, 2
        %vm2655 = vcmp.gt.s32.totalorder 0, %v2654
        %v2656 = vsel %vm2655, 0, %v2654
        %v2657 = vsub.s32 32, %v2656
        %v2658 = vshll.u32 %v2649, %v2656
        %v2659 = vshrl.u32 %v2641, %v2657
        %v2660 = vor.u32 %v2658, %v2659
        %v2661 = vsub.s32 4294967266, %v2656
        %v2662 = vadd.s32 %v2661, 127
        %v2663 = vshll.u32 %v2662, 23
        %v2664 = vor.u32 4788187, %v2663
        %v2665 = vand.u32 2147483647, %v2664
        %v2667 = vcvt.s32.f32 %v2660
        %v2668 = vmul.f32 %v2667, %v2665
        %v2669 = vxor.u32 %v2668, 2147483648
        %v2670 = vsel %vm2549, %v2669, %v2668
        %v2671 = vsub.s32 4, %v2647
        %v2672 = vsel %vm2549, %v2671, %v2647
        %v2673 = vsel %vm2548, %v683, %v2670
        %v2674 = vsel %vm2548, 0, %v2672
        %v2675 = vmul.f32 %v2673, %v2673
        %v2676 = vmul.f32 %v2675, -0.001358992
        %v2677 = vadd.f32 %v2676, 0.041655596
        %v2678 = vmul.f32 %v2675, %v2677
        %v2679 = vadd.f32 %v2678, -0.4999988
        %v2680 = vmul.f32 %v2675, %v2679
        %v2681 = vadd.f32 1.0, %v2680
        %v2682 = vmul.f32 %v2673, %v2673
        %v2683 = vmul.f32 %v2682, -0.00019511016
        %v2684 = vadd.f32 %v2683, 0.008332121
        %v2685 = vmul.f32 %v2682, %v2684
        %v2686 = vadd.f32 %v2685, -0.16666654
        %v2687 = vmul.f32 %v2682, %v2686
        %v2688 = vadd.f32 %v2687, 1.0
        %v2689 = vmul.f32 %v2688, %v2673
        %vm2690 = vweird.f32 %v683
        %v2691 = vadd.s32 %v2674, 3
        %v2692 = vand.u32 %v2691, 3
        %vm2693 = vcmp.lt.s32.totalorder %v2692, 2
        %vm2694 = vcmp.eq.s32.totalorder %v2692, 0
        %v2695 = vxor.u32 %v2689, 2147483648
        %v2696 = vsel %vm2694, %v2681, %v2695
        %vm2697 = vcmp.eq.s32.totalorder %v2692, 2
        %v2698 = vxor.u32 %v2681, 2147483648
        %v2699 = vsel %vm2697, %v2698, %v2689
        %v2700 = vsel %vm2693, %v2696, %v2699
        %v2701 = vsel %vm2690, nan, %v2700
        %v2702 = vand.u32 2147483647, %v684
        %vm2703 = vcmp.le.f32.partialorder %v2702, 0.7853982
        %vm2704 = vcmp.lt.s32.totalorder %v684, 0
        %v2705 = vand.u32 %v684, 2139095040
        %v2706 = vshrl.u32 %v2705, 23
        %v2707 = vsub.s32 %v2706, 127
        %v2708 = vand.u32 2147483647, %v684
        %v2709 = vand.u32 %v2708, 8388607
        %v2710 = vor.u32 %v2709, 8388608
        %v2711 = vsub.s32 0, %v2710
        %v2712 = vadd.s32 %v2707, 1
        %vm2713 = vcmp.gt.s32.totalorder %v2712, 0
        %v2714 = vsel %vm2713, %v2712, 0
        %v2715 = vshrl.u32 %v2714, 5
        %v2716 = vand.u32 %v2714, 31
        %v2717 = vsub.s32 32, %v2716
        %v2718 = vshrl.u32 683565275, %v2717
        %v2719 = vshll.u32 683565275, %v2716
        %v2720 = vshrl.u32 2475754826, %v2717
        %v2721 = vor.u32 %v2719, %v2720
        %v2722 = vshll.u32 2475754826, %v2716
        %v2723 = vshrl.u32 2131351028, %v2717
        %v2724 = vor.u32 %v2722, %v2723
        %v2725 = vshll.u32 2131351028, %v2716
        %v2726 = vshrl.u32 2102212464, %v2717
        %v2727 = vor.u32 %v2725, %v2726
        %v2728 = vshll.u32 2102212464, %v2716
        %v2729 = vshrl.u32 920167782, %v2717
        %v2730 = vor.u32 %v2728, %v2729
        %v2731 = vshll.u32 920167782, %v2716
        %v2732 = vshrl.u32 1326507024, %v2717
        %v2733 = vor.u32 %v2731, %v2732
        %vm2734 = vcmp.lt.s32.totalorder %v2715, 1
        %vm2735 = vcmp.lt.s32.totalorder %v2715, 2
        %vm2736 = vcmp.lt.s32.totalorder %v2715, 3
        %vm2737 = vcmp.lt.s32.totalorder %v2715, 4
        %v2738 = vsel %vm2734, %v2718, %v2721
        %v2739 = vsel %vm2737, %v2727, 2102212464
        %v2740 = vsel %vm2736, %v2724, %v2739
        %v2741 = vsel %vm2735, %v2738, %v2740
        %v2742 = vsel %vm2734, %v2721, %v2724
        %v2743 = vsel %vm2737, %v2730, 920167782
        %v2744 = vsel %vm2736, %v2727, %v2743
        %v2745 = vsel %vm2735, %v2742, %v2744
        %v2746 = vsel %vm2734, %v2724, %v2727
        %v2747 = vsel %vm2737, %v2733, 1326507024
        %v2748 = vsel %vm2736, %v2730, %v2747
        %v2749 = vsel %vm2735, %v2746, %v2748
        %v2750 = vshll.u32 %v2710, 8
        %v2751 = vand.u32 %v2750, 65535
        %v2752 = vshrl.u32 %v2750, 16
        %v2753 = vand.u32 %v2749, 65535
        %v2754 = vshrl.u32 %v2749, 16
        %v2755 = vmul.u32 %v2751, %v2753
        %v2756 = vmul.u32 %v2751, %v2754
        %v2757 = vmul.u32 %v2752, %v2753
        %v2758 = vmul.u32 %v2752, %v2754
        %v2759 = vshll.u32 %v2756, 16
        %v2760 = vshrl.u32 %v2756, 16
        %v2761 = vshll.u32 %v2757, 16
        %v2762 = vshrl.u32 %v2757, 16
        %vm2763 = vc.u32 %v2755, %v2759
        %v2764 = vsel %vm2763, 1, 0
        %v2765 = vadd.s32 %v2755, %v2759
        %v2766 = vadd.s32 %v2758, %v2764
        %vm2767 = vc.u32 %v2765, %v2761
        %v2768 = vsel %vm2767, 1, 0
        %v2769 = vadd.s32 %v2765, %v2761
        %v2770 = vadd.s32 %v2766, %v2768
        %v2771 = vadd.s32 %v2770, %v2760
        %v2772 = vadd.s32 %v2771, %v2762
        %v2773 = vand.u32 %v2750, 65535
        %v2774 = vshrl.u32 %v2750, 16
        %v2775 = vand.u32 %v2745, 65535
        %v2776 = vshrl.u32 %v2745, 16
        %v2777 = vmul.u32 %v2773, %v2775
        %v2778 = vmul.u32 %v2773, %v2776
        %v2779 = vmul.u32 %v2774, %v2775
        %v2780 = vmul.u32 %v2774, %v2776
        %v2781 = vshll.u32 %v2778, 16
        %v2782 = vshrl.u32 %v2778, 16
        %v2783 = vshll.u32 %v2779, 16
        %v2784 = vshrl.u32 %v2779, 16
        %vm2785 = vc.u32 %v2777, %v2781
        %v2786 = vsel %vm2785, 1, 0
        %v2787 = vadd.s32 %v2777, %v2781
        %v2788 = vadd.s32 %v2780, %v2786
        %vm2789 = vc.u32 %v2787, %v2783
        %v2790 = vsel %vm2789, 1, 0
        %v2791 = vadd.s32 %v2787, %v2783
        %v2792 = vadd.s32 %v2788, %v2790
        %v2793 = vadd.s32 %v2792, %v2782
        %v2794 = vadd.s32 %v2793, %v2784
        %v2795 = vmul.u32 %v2750, %v2741
        %v2796 = vadd.s32 %v2772, %v2791
        %vm2797 = vc.u32 %v2772, %v2791
        %v2798 = vadd.s32 %v2794, 1
        %v2799 = vsel %vm2797, %v2798, %v2794
        %v2800 = vadd.s32 %v2795, %v2799
        %v2801 = vadd.s32 %v2800, 536870912
        %v2802 = vshrl.u32 %v2801, 30
        %v2803 = vshll.u32 %v2802, 30
        %v2804 = vsub.s32 %v2800, %v2803
        %vm2805 = vcmp.lt.s32.totalorder %v2804, 0
        %v2806 = vsub.s32 0, %v2804
        %v2807 = vsel %vm2805, %v2806, %v2804
        %v2808 = vclz %v2807
        %v2809 = vsub.s32 %v2808, 2
        %vm2810 = vcmp.gt.s32.totalorder 0, %v2809
        %v2811 = vsel %vm2810, 0, %v2809
        %v2812 = vsub.s32 32, %v2811
        %v2813 = vshll.u32 %v2804, %v2811
        %v2814 = vshrl.u32 %v2796, %v2812
        %v2815 = vor.u32 %v2813, %v2814
        %v2816 = vsub.s32 4294967266, %v2811
        %v2817 = vadd.s32 %v2816, 127
        %v2818 = vshll.u32 %v2817, 23
        %v2819 = vor.u32 4788187, %v2818
        %v2820 = vand.u32 2147483647, %v2819
        %v2822 = vcvt.s32.f32 %v2815
        %v2823 = vmul.f32 %v2822, %v2820
        %v2824 = vxor.u32 %v2823, 2147483648
        %v2825 = vsel %vm2704, %v2824, %v2823
        %v2826 = vsub.s32 4, %v2802
        %v2827 = vsel %vm2704, %v2826, %v2802
        %v2828 = vsel %vm2703, %v684, %v2825
        %v2829 = vsel %vm2703, 0, %v2827
        %v2830 = vmul.f32 %v2828, %v2828
        %v2831 = vmul.f32 %v2830, -0.001358992
        %v2832 = vadd.f32 %v2831, 0.041655596
        %v2833 = vmul.f32 %v2830, %v2832
        %v2834 = vadd.f32 %v2833, -0.4999988
        %v2835 = vmul.f32 %v2830, %v2834
        %v2836 = vadd.f32 1.0, %v2835
        %v2837 = vmul.f32 %v2828, %v2828
        %v2838 = vmul.f32 %v2837, -0.00019511016
        %v2839 = vadd.f32 %v2838, 0.008332121
        %v2840 = vmul.f32 %v2837, %v2839
        %v2841 = vadd.f32 %v2840, -0.16666654
        %v2842 = vmul.f32 %v2837, %v2841
        %v2843 = vadd.f32 %v2842, 1.0
        %v2844 = vmul.f32 %v2843, %v2828
        %vm2845 = vweird.f32 %v684
        %v2846 = vadd.s32 %v2829, 3
        %v2847 = vand.u32 %v2846, 3
        %vm2848 = vcmp.lt.s32.totalorder %v2847, 2
        %vm2849 = vcmp.eq.s32.totalorder %v2847, 0
        %v2850 = vxor.u32 %v2844, 2147483648
        %v2851 = vsel %vm2849, %v2836, %v2850
        %vm2852 = vcmp.eq.s32.totalorder %v2847, 2
        %v2853 = vxor.u32 %v2836, 2147483648
        %v2854 = vsel %vm2852, %v2853, %v2844
        %v2855 = vsel %vm2848, %v2851, %v2854
        %v2856 = vsel %vm2845, nan, %v2855
        %v2857 = vand.u32 2147483647, %v685
        %vm2858 = vcmp.le.f32.partialorder %v2857, 0.7853982
        %vm2859 = vcmp.lt.s32.totalorder %v685, 0
        %v2860 = vand.u32 %v685, 2139095040
        %v2861 = vshrl.u32 %v2860, 23
        %v2862 = vsub.s32 %v2861, 127
        %v2863 = vand.u32 2147483647, %v685
        %v2864 = vand.u32 %v2863, 8388607
        %v2865 = vor.u32 %v2864, 8388608
        %v2866 = vsub.s32 0, %v2865
        %v2867 = vadd.s32 %v2862, 1
        %vm2868 = vcmp.gt.s32.totalorder %v2867, 0
        %v2869 = vsel %vm2868, %v2867, 0
        %v2870 = vshrl.u32 %v2869, 5
        %v2871 = vand.u32 %v2869, 31
        %v2872 = vsub.s32 32, %v2871
        %v2873 = vshrl.u32 683565275, %v2872
        %v2874 = vshll.u32 683565275, %v2871
        %v2875 = vshrl.u32 2475754826, %v2872
        %v2876 = vor.u32 %v2874, %v2875
        %v2877 = vshll.u32 2475754826, %v2871
        %v2878 = vshrl.u32 2131351028, %v2872
        %v2879 = vor.u32 %v2877, %v2878
        %v2880 = vshll.u32 2131351028, %v2871
        %v2881 = vshrl.u32 2102212464, %v2872
        %v2882 = vor.u32 %v2880, %v2881
        %v2883 = vshll.u32 2102212464, %v2871
        %v2884 = vshrl.u32 920167782, %v2872
        %v2885 = vor.u32 %v2883, %v2884
        %v2886 = vshll.u32 920167782, %v2871
        %v2887 = vshrl.u32 1326507024, %v2872
        %v2888 = vor.u32 %v2886, %v2887
        %vm2889 = vcmp.lt.s32.totalorder %v2870, 1
        %vm2890 = vcmp.lt.s32.totalorder %v2870, 2
        %vm2891 = vcmp.lt.s32.totalorder %v2870, 3
        %vm2892 = vcmp.lt.s32.totalorder %v2870, 4
        %v2893 = vsel %vm2889, %v2873, %v2876
        %v2894 = vsel %vm2892, %v2882, 2102212464
        %v2895 = vsel %vm2891, %v2879, %v2894
        %v2896 = vsel %vm2890, %v2893, %v2895
        %v2897 = vsel %vm2889, %v2876, %v2879
        %v2898 = vsel %vm2892, %v2885, 920167782
        %v2899 = vsel %vm2891, %v2882, %v2898
        %v2900 = vsel %vm2890, %v2897, %v2899
        %v2901 = vsel %vm2889, %v2879, %v2882
        %v2902 = vsel %vm2892, %v2888, 1326507024
        %v2903 = vsel %vm2891, %v2885, %v2902
        %v2904 = vsel %vm2890, %v2901, %v2903
        %v2905 = vshll.u32 %v2865, 8
        %v2906 = vand.u32 %v2905, 65535
        %v2907 = vshrl.u32 %v2905, 16
        %v2908 = vand.u32 %v2904, 65535
        %v2909 = vshrl.u32 %v2904, 16
        %v2910 = vmul.u32 %v2906, %v2908
        %v2911 = vmul.u32 %v2906, %v2909
        %v2912 = vmul.u32 %v2907, %v2908
        %v2913 = vmul.u32 %v2907, %v2909
        %v2914 = vshll.u32 %v2911, 16
        %v2915 = vshrl.u32 %v2911, 16
        %v2916 = vshll.u32 %v2912, 16
        %v2917 = vshrl.u32 %v2912, 16
        %vm2918 = vc.u32 %v2910, %v2914
        %v2919 = vsel %vm2918, 1, 0
        %v2920 = vadd.s32 %v2910, %v2914
        %v2921 = vadd.s32 %v2913, %v2919
        %vm2922 = vc.u32 %v2920, %v2916
        %v2923 = vsel %vm2922, 1, 0
        %v2924 = vadd.s32 %v2920, %v2916
        %v2925 = vadd.s32 %v2921, %v2923
        %v2926 = vadd.s32 %v2925, %v2915
        %v2927 = vadd.s32 %v2926, %v2917
        %v2928 = vand.u32 %v2905, 65535
        %v2929 = vshrl.u32 %v2905, 16
        %v2930 = vand.u32 %v2900, 65535
        %v2931 = vshrl.u32 %v2900, 16
        %v2932 = vmul.u32 %v2928, %v2930
        %v2933 = vmul.u32 %v2928, %v2931
        %v2934 = vmul.u32 %v2929, %v2930
        %v2935 = vmul.u32 %v2929, %v2931
        %v2936 = vshll.u32 %v2933, 16
        %v2937 = vshrl.u32 %v2933, 16
        %v2938 = vshll.u32 %v2934, 16
        %v2939 = vshrl.u32 %v2934, 16
        %vm2940 = vc.u32 %v2932, %v2936
        %v2941 = vsel %vm2940, 1, 0
        %v2942 = vadd.s32 %v2932, %v2936
        %v2943 = vadd.s32 %v2935, %v2941
        %vm2944 = vc.u32 %v2942, %v2938
        %v2945 = vsel %vm2944, 1, 0
        %v2946 = vadd.s32 %v2942, %v2938
        %v2947 = vadd.s32 %v2943, %v2945
        %v2948 = vadd.s32 %v2947, %v2937
        %v2949 = vadd.s32 %v2948, %v2939
        %v2950 = vmul.u32 %v2905, %v2896
        %v2951 = vadd.s32 %v2927, %v2946
        %vm2952 = vc.u32 %v2927, %v2946
        %v2953 = vadd.s32 %v2949, 1
        %v2954 = vsel %vm2952, %v2953, %v2949
        %v2955 = vadd.s32 %v2950, %v2954
        %v2956 = vadd.s32 %v2955, 536870912
        %v2957 = vshrl.u32 %v2956, 30
        %v2958 = vshll.u32 %v2957, 30
        %v2959 = vsub.s32 %v2955, %v2958
        %vm2960 = vcmp.lt.s32.totalorder %v2959, 0
        %v2961 = vsub.s32 0, %v2959
        %v2962 = vsel %vm2960, %v2961, %v2959
        %v2963 = vclz %v2962
        %v2964 = vsub.s32 %v2963, 2
        %vm2965 = vcmp.gt.s32.totalorder 0, %v2964
        %v2966 = vsel %vm2965, 0, %v2964
        %v2967 = vsub.s32 32, %v2966
        %v2968 = vshll.u32 %v2959, %v2966
        %v2969 = vshrl.u32 %v2951, %v2967
        %v2970 = vor.u32 %v2968, %v2969
        %v2971 = vsub.s32 4294967266, %v2966
        %v2972 = vadd.s32 %v2971, 127
        %v2973 = vshll.u32 %v2972, 23
        %v2974 = vor.u32 4788187, %v2973
        %v2975 = vand.u32 2147483647, %v2974
        %v2977 = vcvt.s32.f32 %v2970
        %v2978 = vmul.f32 %v2977, %v2975
        %v2979 = vxor.u32 %v2978, 2147483648
        %v2980 = vsel %vm2859, %v2979, %v2978
        %v2981 = vsub.s32 4, %v2957
        %v2982 = vsel %vm2859, %v2981, %v2957
        %v2983 = vsel %vm2858, %v685, %v2980
        %v2984 = vsel %vm2858, 0, %v2982
        %v2985 = vmul.f32 %v2983, %v2983
        %v2986 = vmul.f32 %v2985, -0.001358992
        %v2987 = vadd.f32 %v2986, 0.041655596
        %v2988 = vmul.f32 %v2985, %v2987
        %v2989 = vadd.f32 %v2988, -0.4999988
        %v2990 = vmul.f32 %v2985, %v2989
        %v2991 = vadd.f32 1.0, %v2990
        %v2992 = vmul.f32 %v2983, %v2983
        %v2993 = vmul.f32 %v2992, -0.00019511016
        %v2994 = vadd.f32 %v2993, 0.008332121
        %v2995 = vmul.f32 %v2992, %v2994
        %v2996 = vadd.f32 %v2995, -0.16666654
        %v2997 = vmul.f32 %v2992, %v2996
        %v2998 = vadd.f32 %v2997, 1.0
        %v2999 = vmul.f32 %v2998, %v2983
        %vm3000 = vweird.f32 %v685
        %v3001 = vadd.s32 %v2984, 3
        %v3002 = vand.u32 %v3001, 3
        %vm3003 = vcmp.lt.s32.totalorder %v3002, 2
        %vm3004 = vcmp.eq.s32.totalorder %v3002, 0
        %v3005 = vxor.u32 %v2999, 2147483648
        %v3006 = vsel %vm3004, %v2991, %v3005
        %vm3007 = vcmp.eq.s32.totalorder %v3002, 2
        %v3008 = vxor.u32 %v2991, 2147483648
        %v3009 = vsel %vm3007, %v3008, %v2999
        %v3010 = vsel %vm3003, %v3006, %v3009
        %v3011 = vsel %vm3000, nan, %v3010
        %v3012 = vand.u32 2147483647, %v686
        %vm3013 = vcmp.le.f32.partialorder %v3012, 0.7853982
        %vm3014 = vcmp.lt.s32.totalorder %v686, 0
        %v3015 = vand.u32 %v686, 2139095040
        %v3016 = vshrl.u32 %v3015, 23
        %v3017 = vsub.s32 %v3016, 127
        %v3018 = vand.u32 2147483647, %v686
        %v3019 = vand.u32 %v3018, 8388607
        %v3020 = vor.u32 %v3019, 8388608
        %v3021 = vsub.s32 0, %v3020
        %v3022 = vadd.s32 %v3017, 1
        %vm3023 = vcmp.gt.s32.totalorder %v3022, 0
        %v3024 = vsel %vm3023, %v3022, 0
        %v3025 = vshrl.u32 %v3024, 5
        %v3026 = vand.u32 %v3024, 31
        %v3027 = vsub.s32 32, %v3026
        %v3028 = vshrl.u32 683565275, %v3027
        %v3029 = vshll.u32 683565275, %v3026
        %v3030 = vshrl.u32 2475754826, %v3027
        %v3031 = vor.u32 %v3029, %v3030
        %v3032 = vshll.u32 2475754826, %v3026
        %v3033 = vshrl.u32 2131351028, %v3027
        %v3034 = vor.u32 %v3032, %v3033
        %v3035 = vshll.u32 2131351028, %v3026
        %v3036 = vshrl.u32 2102212464, %v3027
        %v3037 = vor.u32 %v3035, %v3036
        %v3038 = vshll.u32 2102212464, %v3026
        %v3039 = vshrl.u32 920167782, %v3027
        %v3040 = vor.u32 %v3038, %v3039
        %v3041 = vshll.u32 920167782, %v3026
        %v3042 = vshrl.u32 1326507024, %v3027
        %v3043 = vor.u32 %v3041, %v3042
        %vm3044 = vcmp.lt.s32.totalorder %v3025, 1
        %vm3045 = vcmp.lt.s32.totalorder %v3025, 2
        %vm3046 = vcmp.lt.s32.totalorder %v3025, 3
        %vm3047 = vcmp.lt.s32.totalorder %v3025, 4
        %v3048 = vsel %vm3044, %v3028, %v3031
        %v3049 = vsel %vm3047, %v3037, 2102212464
        %v3050 = vsel %vm3046, %v3034, %v3049
        %v3051 = vsel %vm3045, %v3048, %v3050
        %v3052 = vsel %vm3044, %v3031, %v3034
        %v3053 = vsel %vm3047, %v3040, 920167782
        %v3054 = vsel %vm3046, %v3037, %v3053
        %v3055 = vsel %vm3045, %v3052, %v3054
        %v3056 = vsel %vm3044, %v3034, %v3037
        %v3057 = vsel %vm3047, %v3043, 1326507024
        %v3058 = vsel %vm3046, %v3040, %v3057
        %v3059 = vsel %vm3045, %v3056, %v3058
        %v3060 = vshll.u32 %v3020, 8
        %v3061 = vand.u32 %v3060, 65535
        %v3062 = vshrl.u32 %v3060, 16
        %v3063 = vand.u32 %v3059, 65535
        %v3064 = vshrl.u32 %v3059, 16
        %v3065 = vmul.u32 %v3061, %v3063
        %v3066 = vmul.u32 %v3061, %v3064
        %v3067 = vmul.u32 %v3062, %v3063
        %v3068 = vmul.u32 %v3062, %v3064
        %v3069 = vshll.u32 %v3066, 16
        %v3070 = vshrl.u32 %v3066, 16
        %v3071 = vshll.u32 %v3067, 16
        %v3072 = vshrl.u32 %v3067, 16
        %vm3073 = vc.u32 %v3065, %v3069
        %v3074 = vsel %vm3073, 1, 0
        %v3075 = vadd.s32 %v3065, %v3069
        %v3076 = vadd.s32 %v3068, %v3074
        %vm3077 = vc.u32 %v3075, %v3071
        %v3078 = vsel %vm3077, 1, 0
        %v3079 = vadd.s32 %v3075, %v3071
        %v3080 = vadd.s32 %v3076, %v3078
        %v3081 = vadd.s32 %v3080, %v3070
        %v3082 = vadd.s32 %v3081, %v3072
        %v3083 = vand.u32 %v3060, 65535
        %v3084 = vshrl.u32 %v3060, 16
        %v3085 = vand.u32 %v3055, 65535
        %v3086 = vshrl.u32 %v3055, 16
        %v3087 = vmul.u32 %v3083, %v3085
        %v3088 = vmul.u32 %v3083, %v3086
        %v3089 = vmul.u32 %v3084, %v3085
        %v3090 = vmul.u32 %v3084, %v3086
        %v3091 = vshll.u32 %v3088, 16
        %v3092 = vshrl.u32 %v3088, 16
        %v3093 = vshll.u32 %v3089, 16
        %v3094 = vshrl.u32 %v3089, 16
        %vm3095 = vc.u32 %v3087, %v3091
        %v3096 = vsel %vm3095, 1, 0
        %v3097 = vadd.s32 %v3087, %v3091
        %v3098 = vadd.s32 %v3090, %v3096
        %vm3099 = vc.u32 %v3097, %v3093
        %v3100 = vsel %vm3099, 1, 0
        %v3101 = vadd.s32 %v3097, %v3093
        %v3102 = vadd.s32 %v3098, %v3100
        %v3103 = vadd.s32 %v3102, %v3092
        %v3104 = vadd.s32 %v3103, %v3094
        %v3105 = vmul.u32 %v3060, %v3051
        %v3106 = vadd.s32 %v3082, %v3101
        %vm3107 = vc.u32 %v3082, %v3101
        %v3108 = vadd.s32 %v3104, 1
        %v3109 = vsel %vm3107, %v3108, %v3104
        %v3110 = vadd.s32 %v3105, %v3109
        %v3111 = vadd.s32 %v3110, 536870912
        %v3112 = vshrl.u32 %v3111, 30
        %v3113 = vshll.u32 %v3112, 30
        %v3114 = vsub.s32 %v3110, %v3113
        %vm3115 = vcmp.lt.s32.totalorder %v3114, 0
        %v3116 = vsub.s32 0, %v3114
        %v3117 = vsel %vm3115, %v3116, %v3114
        %v3118 = vclz %v3117
        %v3119 = vsub.s32 %v3118, 2
        %vm3120 = vcmp.gt.s32.totalorder 0, %v3119
        %v3121 = vsel %vm3120, 0, %v3119
        %v3122 = vsub.s32 32, %v3121
        %v3123 = vshll.u32 %v3114, %v3121
        %v3124 = vshrl.u32 %v3106, %v3122
        %v3125 = vor.u32 %v3123, %v3124
        %v3126 = vsub.s32 4294967266, %v3121
        %v3127 = vadd.s32 %v3126, 127
        %v3128 = vshll.u32 %v3127, 23
        %v3129 = vor.u32 4788187, %v3128
        %v3130 = vand.u32 2147483647, %v3129
        %v3132 = vcvt.s32.f32 %v3125
        %v3133 = vmul.f32 %v3132, %v3130
        %v3134 = vxor.u32 %v3133, 2147483648
        %v3135 = vsel %vm3014, %v3134, %v3133
        %v3136 = vsub.s32 4, %v3112
        %v3137 = vsel %vm3014, %v3136, %v3112
        %v3138 = vsel %vm3013, %v686, %v3135
        %v3139 = vsel %vm3013, 0, %v3137
        %v3140 = vmul.f32 %v3138, %v3138
        %v3141 = vmul.f32 %v3140, -0.001358992
        %v3142 = vadd.f32 %v3141, 0.041655596
        %v3143 = vmul.f32 %v3140, %v3142
        %v3144 = vadd.f32 %v3143, -0.4999988
        %v3145 = vmul.f32 %v3140, %v3144
        %v3146 = vadd.f32 1.0, %v3145
        %v3147 = vmul.f32 %v3138, %v3138
        %v3148 = vmul.f32 %v3147, -0.00019511016
        %v3149 = vadd.f32 %v3148, 0.008332121
        %v3150 = vmul.f32 %v3147, %v3149
        %v3151 = vadd.f32 %v3150, -0.16666654
        %v3152 = vmul.f32 %v3147, %v3151
        %v3153 = vadd.f32 %v3152, 1.0
        %v3154 = vmul.f32 %v3153, %v3138
        %vm3155 = vweird.f32 %v686
        %v3156 = vadd.s32 %v3139, 3
        %v3157 = vand.u32 %v3156, 3
        %vm3158 = vcmp.lt.s32.totalorder %v3157, 2
        %vm3159 = vcmp.eq.s32.totalorder %v3157, 0
        %v3160 = vxor.u32 %v3154, 2147483648
        %v3161 = vsel %vm3159, %v3146, %v3160
        %vm3162 = vcmp.eq.s32.totalorder %v3157, 2
        %v3163 = vxor.u32 %v3146, 2147483648
        %v3164 = vsel %vm3162, %v3163, %v3154
        %v3165 = vsel %vm3158, %v3161, %v3164
        %v3166 = vsel %vm3155, nan, %v3165
        %3167 = vst [vmem:[%s364] sm:$0xff] %v841
        %3168 = vst [vmem:[%s364 + $0x8] sm:$0xff] %v996
        %3169 = vst [vmem:[%s364 + $0x10] sm:$0xff] %v1151
        %3170 = vst [vmem:[%s364 + $0x18] sm:$0xff] %v1306
        %3171 = vst [vmem:[%s364 + $0x20] sm:$0xff] %v1461
        %3172 = vst [vmem:[%s364 + $0x28] sm:$0xff] %v1616
        %3173 = vst [vmem:[%s364 + $0x30] sm:$0xff] %v1771
        %3174 = vst [vmem:[%s364 + $0x38] sm:$0xff] %v1926
        %3175 = vst [vmem:[%s364 + $0x40] sm:$0xff] %v2081
        %3176 = vst [vmem:[%s364 + $0x48] sm:$0xff] %v2236
        %3177 = vst [vmem:[%s364 + $0x50] sm:$0xff] %v2391
        %3178 = vst [vmem:[%s364 + $0x58] sm:$0xff] %v2546
        %3179 = vst [vmem:[%s364 + $0x60] sm:$0xff] %v2701
        %3180 = vst [vmem:[%s364 + $0x68] sm:$0xff] %v2856
        %3181 = vst [vmem:[%s364 + $0x70] sm:$0xff] %v3011
        %3182 = vst [vmem:[%s364 + $0x78] sm:$0xff] %v3166
        %s3183 = sand.u32 %s190, 1
        %s3184 = scalar_lea.sflag [#allocation4], %s3183
        %s3185 = sand.u32 %s190, 1
        %s3186 = smul.addr %s3185, 128
        %s3187 = scalar_lea.vmem [#allocation9], %s3186
        // Predicated region
        $region65: #{tpu_custom_call.1} parent=47 // pred_check
          %p3188 = pneg %p200
        $region66: #{tpu_custom_call.1} parent=47 // pred_check_branch
          %3190 = sbr.rel (%p3188) target = $region68
        $region67: #{tpu_custom_call.1} parent=47 // pred_region
          %s3191 = smul.u32 8, %s25
          %3193 = vsyncadd %s3184, 0
          %s3194 = smul.addr %s3191, 2
          %s3195 = smul.addr %s3194, 8
          %s3196 = scalar_lea.hbm %s7, %s3195
          %s3197 = sshll.u32 %s3187, 4
          %s3198 = int_to_ptr.vmem [resolvable:$true] %s3197
          %s3199 = sshll.u32 %s3196, 4
          %s3200 = int_to_ptr.hbm [resolvable:$true] %s3199
          %3205 = dma.vmem_to_hbm [thread:$0]  %s3198, 2048, %s3200, %s3184, 128, 128, 8
        $region68: #{tpu_custom_call.1} parent=47 // pred_fallthru
          _
      $region48: #{tpu_custom_call.1} parent=5 // pred_fallthru
        _
      %p3206 = scmp.le.s32.totalorder 2, %s20
      // Predicated region
      $region69: #{tpu_custom_call.1} parent=5 // pred_check
        %p3207 = pneg %p3206
      $region70: #{tpu_custom_call.1} parent=5 // pred_check_branch
        %3209 = sbr.rel (%p3207) target = $region72
      $region71: #{tpu_custom_call.1} parent=5 // pred_region
        %s3210 = ssub.s32 %s20, 2
        // Predicated region
        $region73: #{tpu_custom_call.1} parent=71 // pred_check
          %p3211 = pneg %p206
        $region74: #{tpu_custom_call.1} parent=71 // pred_check_branch
          %3213 = sbr.rel (%p3211) target = $region76
        $region75: #{tpu_custom_call.1} parent=71 // pred_region
          %s3214 = sand.u32 %s191, 1
          %s3215 = scalar_lea.sflag [#allocation4], %s3214
          %s3216 = sand.u32 %s191, 1
          %s3217 = smul.addr %s3216, 128
          %s3218 = scalar_lea.vmem [#allocation9], %s3217
          %3220 = dma.done %s3215, 2048
        $region76: #{tpu_custom_call.1} parent=71 // pred_fallthru
          _
      $region72: #{tpu_custom_call.1} parent=5 // pred_fallthru
        _
    $region6: #{tpu_custom_call.1} parent=1 // loop_footer
      %s24 = sadd.s32 1, %s20
    $region7: #{tpu_custom_call.1} parent=1 // loop_footer_branch
      %19 = sbr.rel target = $region3
    $region8: #{tpu_custom_call.1} parent=1 // loop_exit
      _
    %3221 = vsyncpa [#allocation3], 1
    %s3222 = scalar_lea.sflag [#allocation3], 1
    %3223 = vsyncpa %s3222, 1
    %3224 = vsyncpa [#allocation6], 1
    %3225 = vsyncpa [#allocation4], 1
    %s3226 = scalar_lea.sflag [#allocation4], 1
    %3227 = vsyncpa %s3226, 1

</llo_original>
